<compile_context>
chip_gen: v7x
topology: tpu7x:2x2x1
jax: 0.10.0
libtpu: 0.0.40
codegen_flags: <defaults>
</compile_context>

<pallas_src>
import numpy as np
import jax
import jax.numpy as jnp
from jax.experimental import pallas as pl
from jax.experimental.pallas import tpu as pltpu  # noqa: F401  (TPU backend)

# ---------------------------------------------------------------------------
# Problem constants (mirroring the PyTorch module)
# ---------------------------------------------------------------------------
NUMCLASSES = 3
NOUT = 2 ** NUMCLASSES - 1          # 7 focal elements -> fc outputs
SIZE_IMAGES = (4, 16, 16)           # (C, H, W)
BATCH = 2                           # per-branch batch size
BN_EPS = 1e-5

CIN, HIN, WIN = SIZE_IMAGES
COUT = 12
KSIZE, STRIDE, PAD = 4, 2, 1

OH1 = (HIN + 2 * PAD - KSIZE) // STRIDE + 1     # 8
OW1 = (WIN + 2 * PAD - KSIZE) // STRIDE + 1     # 8
OH2 = (OH1 + 2 * PAD - KSIZE) // STRIDE + 1     # 4
OW2 = (OW1 + 2 * PAD - KSIZE) // STRIDE + 1     # 4
PH, PW = OH2 // 2, OW2 // 2                     # 2, 2 after MaxPool2d(2,2)

LANE = 128
IN_COLS = CIN * HIN * WIN                       # 1024
OUT1_COLS = COUT * OH1 * OW1                    # 768  (6*128, lane-dense)
OUT2_COLS = COUT * OH2 * OW2                    # 192
OUT2_PAD = ((OUT2_COLS + LANE - 1) // LANE) * LANE   # 256
POOL_COLS = COUT * PH * PW                      # 48 == last_conv_size
POOL_PAD = LANE                                 # 128
NOUT_PAD = LANE                                 # 128
NEG = -1e30                                     # softmax mask for pad lanes


# ---------------------------------------------------------------------------
# Synthetic replacement for get_Cmatrix_and_forDecision (DS-theory style)
# ---------------------------------------------------------------------------
def get_Cmatrix_and_forDecision(num_classes):
    n = 2 ** num_classes - 1
    subsets = np.arange(1, n + 1)
    cmat = ((subsets[:, None] & subsets[None, :]) == 0).astype(np.float32)
    for_decision = np.stack(
        [((subsets >> k) & 1).astype(np.float32) for k in range(num_classes)], axis=1
    )
    return jnp.asarray(cmat), jnp.asarray(for_decision)


# ---------------------------------------------------------------------------
# Init-time weight packing (pure numpy, runs once)
# ---------------------------------------------------------------------------
def _conv_operator(w, hin, win, oh, ow, cin, out_pad):
    """Dense 'unrolled convolution' operator T so that, with x flattened in
    (c, h, w) order,  (x @ T)[n, co*oh*ow + i*ow + j] == Conv2d(x)[n, co, i, j]
    (kernel 4, stride 2, padding 1, bias 0).  Zero padding is handled by
    simply skipping out-of-range taps.  Each T entry holds exactly one weight
    value, so it is bf16-exact when w is bf16-exact."""
    cout = w.shape[0]
    T = np.zeros((cin * hin * win, out_pad), np.float32)
    for co in range(cout):
        for i in range(oh):
            for j in range(ow):
                col = co * oh * ow + i * ow + j
                for ci in range(cin):
                    for kh in range(KSIZE):
                        h = STRIDE * i + kh - PAD
                        if h < 0 or h >= hin:
                            continue
                        for kw in range(KSIZE):
                            ww = STRIDE * j + kw - PAD
                            if ww < 0 or ww >= win:
                                continue
                            T[ci * hin * win + h * win + ww, col] += w[co, ci, kh, kw]
    return T
# TODO(synk): conv1 could instead be an in-kernel im2col matmul (K=64, M=2B*64)
# to drop this mostly-zero 1024x768 operator; kept the dense bf16 operator here
# because padding-aware patch assembly needs rolls + masked selects.


def _bn_indicator(spatial, ncols):
    """(ncols, COUT) 0/1 matrix: lane -> its channel (pad lanes -> no channel)."""
    B = np.zeros((ncols, COUT), np.float32)
    for c in range(COUT):
        B[c * spatial:(c + 1) * spatial, c] = 1.0
    return B


def _pool_selectors_merged():
    """(OUT2_PAD, 4*POOL_PAD) 0/1 matrix: four 128-lane blocks, one per 2x2
    window tap; output column ordering within a block matches torch.flatten's
    (C, H, W) ordering of the pooled map."""
    S = np.zeros((OUT2_PAD, 4 * POOL_PAD), np.float32)
    for t, (di, dj) in enumerate([(0, 0), (0, 1), (1, 0), (1, 1)]):
        for c in range(COUT):
            for a in range(PH):
                for b in range(PW):
                    row = c * OH2 * OW2 + (2 * a + di) * OW2 + (2 * b + dj)
                    S[row, t * POOL_PAD + c * PH * PW + a * PW + b] = 1.0
    return S


def xavier_normal(key, shape, fan_in, fan_out):
    std = (2.0 / (fan_in + fan_out)) ** 0.5
    return std * jax.random.normal(key, shape, dtype=jnp.float32)


def init_params(key, cmat):
    """Sample PyTorch-style weights, bf16-round-trip them (so bf16 packing is
    lossless), and pack everything into 4 lane-dense bf16 constant slabs."""
    k1, k2, k3 = jax.random.split(key, 3)
    w1 = xavier_normal(k1, (COUT, CIN, KSIZE, KSIZE),
                       CIN * KSIZE * KSIZE, COUT * KSIZE * KSIZE)
    w2 = xavier_normal(k2, (COUT, COUT, KSIZE, KSIZE),
                       COUT * KSIZE * KSIZE, COUT * KSIZE * KSIZE)
    wfc = xavier_normal(k3, (NOUT, POOL_COLS), POOL_COLS, NOUT)
    # bf16 round-trip: the model's weights become bf16-representable values,
    # so the kernel's bf16 constants equal the reference's f32 weights exactly.
    w1 = w1.astype(jnp.bfloat16).astype(jnp.float32)
    w2 = w2.astype(jnp.bfloat16).astype(jnp.float32)
    wfc = wfc.astype(jnp.bfloat16).astype(jnp.float32)
    w1n, w2n, wfcn = np.asarray(w1), np.asarray(w2), np.asarray(wfc)

    t1 = _conv_operator(w1n, HIN, WIN, OH1, OW1, CIN, OUT1_COLS)      # (1024, 768)
    t2 = _conv_operator(w2n, OH1, OW1, OH2, OW2, COUT, OUT2_PAD)      # (768, 256)
    bm1 = _bn_indicator(OH1 * OW1, OUT1_COLS)                         # (768, 12)
    bm2 = _bn_indicator(OH2 * OW2, OUT2_PAD)                          # (256, 12)
    sel4 = _pool_selectors_merged()                                   # (256, 512)

    wfc_p = np.zeros((POOL_PAD, NOUT_PAD), np.float32)
    wfc_p[:POOL_COLS, :NOUT] = wfcn.T
    cmat_p = np.zeros((NOUT_PAD, NOUT_PAD), np.float32)
    cmat_p[:NOUT, :NOUT] = np.asarray(cmat)

    # ---- 4 lane-dense bf16 constant slabs (5 input DMAs total incl. x) ----
    slab_a = t1                                                       # (1024, 768)

    slab_b = np.zeros((OUT1_COLS, 384), np.float32)                   # (768, 384)
    slab_b[:, 0:256] = t2                                             # conv2 operator
    slab_b[:, 256:256 + COUT] = bm1                                   # bn1 reduce (128-wide view)

    slab_c = np.zeros((OUT2_PAD, 640), np.float32)                    # (256, 640)
    slab_c[:, 0:512] = sel4                                           # merged pool selector
    slab_c[:, 512:512 + COUT] = bm2                                   # bn2 reduce

    slab_d = np.zeros((256, 768), np.float32)                         # (256, 768)
    slab_d[0:COUT, :] = bm1.T                                         # rows 0:128   -> bn1 expand
    slab_d[128:128 + COUT, 0:OUT2_PAD] = bm2.T                        # rows 128:256 -> bn2 expand
    slab_d[128:256, 256:384] = wfc_p                                  # fc weight
    slab_d[128:256, 384:512] = cmat_p                                 # DS conflict matrix

    bf16 = lambda a: jnp.asarray(a, dtype=jnp.bfloat16)   # entries are 0/1 or bf16-exact weights
    consts = {"slab_a": bf16(slab_a), "slab_b": bf16(slab_b),
              "slab_c": bf16(slab_c), "slab_d": bf16(slab_d)}
    raw = {"w1": w1, "w2": w2, "wfc": wfc}
    return consts, raw


# ---------------------------------------------------------------------------
# Fused Pallas kernel: whole forward, both branches, one launch
# ---------------------------------------------------------------------------
def _bn(y, bm, bmt, count):
    """Training-mode BatchNorm (gamma=1, beta=0), per-branch batch statistics,
    single-pass (sum + sum-of-squares):
      * channel reduce:  ONE stacked dot of [y ; y*y] with the 0/1 indicator.
      * per-branch sums: sublane adds of static row slices (no ravg matmul).
      * broadcast back:  ONE dot of [inv ; -mu*inv] rows with the transposed
        indicator (no rexp matmul), applied as y*inv + shift on the VPU."""
    f32 = jnp.float32
    B = BATCH
    stacked = jnp.concatenate([y, y * y], axis=0)                    # (4B, L)
    red = jnp.dot(stacked, bm, preferred_element_type=f32)           # (4B, 128)
    cinv = 1.0 / count
    s1 = jnp.sum(red[0 * B:1 * B], axis=0, keepdims=True) * cinv     # branch-1 mean
    s2 = jnp.sum(red[1 * B:2 * B], axis=0, keepdims=True) * cinv     # branch-2 mean
    q1 = jnp.sum(red[2 * B:3 * B], axis=0, keepdims=True) * cinv     # branch-1 E[y^2]
    q2 = jnp.sum(red[3 * B:4 * B], axis=0, keepdims=True) * cinv     # branch-2 E[y^2]
    inv1 = jax.lax.rsqrt(q1 - s1 * s1 + BN_EPS)
    inv2 = jax.lax.rsqrt(q2 - s2 * s2 + BN_EPS)
    sh1, sh2 = -s1 * inv1, -s2 * inv2
    coef = jnp.concatenate([inv1] * B + [inv2] * B + [sh1] * B + [sh2] * B,
                           axis=0)                                   # (4B, 128)
    full = jnp.dot(coef, bmt, preferred_element_type=f32)            # (4B, L)
    return y * full[0:2 * B] + full[2 * B:4 * B]


def fused_forward_kernel(x_ref, a_ref, b_ref, c_ref, d_ref, bba_ref, conf_ref):
    f32 = jnp.float32
    x = x_ref[...]                                                   # (2B, 1024) f32

    # conv1 (dense unrolled-conv matmul, bf16 weight upcast in VMEM) -> bn1 -> relu1
    y1 = jnp.dot(x, a_ref[...].astype(f32), preferred_element_type=f32)        # (2B, 768)
    z1 = jnp.maximum(
        _bn(y1, b_ref[:, 256:384].astype(f32), d_ref[0:128, :].astype(f32),
            float(BATCH * OH1 * OW1)), 0.0)

    # conv2 -> bn2
    y2 = jnp.dot(z1, b_ref[:, 0:256].astype(f32), preferred_element_type=f32)  # (2B, 256)
    z2 = _bn(y2, c_ref[:, 512:640].astype(f32), d_ref[128:256, 0:256].astype(f32),
             float(BATCH * OH2 * OW2))

    # 2x2 maxpool + relu2 (+ torch.flatten (C,H,W) order): one merged selector
    # matmul, then VPU max over the four 128-lane tap slabs.
    p = jnp.dot(z2, c_ref[:, 0:512].astype(f32), preferred_element_type=f32)   # (2B, 512)
    pooled = jnp.maximum(
        jnp.maximum(jnp.maximum(p[:, 0:128], p[:, 128:256]),
                    jnp.maximum(p[:, 256:384], p[:, 384:512])), 0.0)           # (2B, 128)

    # fc + masked softmax (pad logit lanes pinned at -1e30 via iota mask)
    logits = jnp.dot(pooled, d_ref[128:256, 256:384].astype(f32),
                     preferred_element_type=f32)                               # (2B, 128)
    lane = jax.lax.broadcasted_iota(jnp.int32, (2 * BATCH, NOUT_PAD), 1)
    logits = jnp.where(lane < NOUT, logits, NEG)
    m = jnp.max(logits, axis=1, keepdims=True)
    e = jnp.exp(logits - m)
    bba = e / jnp.sum(e, axis=1, keepdims=True)                                # (2B, 128)
    bba_ref[...] = bba

    # Dempster-Shafer conflict between branch 1 (rows :B) and branch 2 (rows B:)
    mtc = jnp.dot(bba[0:BATCH, :], d_ref[128:256, 384:512].astype(f32),
                  preferred_element_type=f32)                                  # (B, 128)
    kij = jnp.sum(mtc * bba[BATCH:2 * BATCH, :], axis=1, keepdims=True)        # (B, 1)
    conf_ref[...] = kij + jnp.zeros((BATCH, NOUT_PAD), f32)                    # lane-replicated


def _spec(shape):
    return pl.BlockSpec(shape, lambda: (0, 0))


@jax.jit
def forward(input1, input2, consts):
    x = jnp.concatenate([input1, input2], axis=0).reshape(2 * BATCH, IN_COLS)
    args = (x, consts["slab_a"], consts["slab_b"], consts["slab_c"], consts["slab_d"])
    bba, conf = pl.pallas_call(
        fused_forward_kernel,
        out_shape=(jax.ShapeDtypeStruct((2 * BATCH, NOUT_PAD), jnp.float32),
                   jax.ShapeDtypeStruct((BATCH, NOUT_PAD), jnp.float32)),
        in_specs=[_spec(a.shape) for a in args],
        out_specs=(_spec((2 * BATCH, NOUT_PAD)), _spec((BATCH, NOUT_PAD))),
    )(*args)
    return conf[:, 0], bba[:BATCH, :NOUT], bba[BATCH:, :NOUT]


# ---------------------------------------------------------------------------
# Plain-JAX reference (for a correctness self-check in __main__)
# ---------------------------------------------------------------------------
def reference_forward(input1, input2, raw, cmat):
    dn = ("NCHW", "OIHW", "NCHW")

    def bn(y):
        mean = jnp.mean(y, axis=(0, 2, 3), keepdims=True)
        var = jnp.mean(jnp.square(y - mean), axis=(0, 2, 3), keepdims=True)
        return (y - mean) / jnp.sqrt(var + BN_EPS)

    def once(x):
        y = jax.lax.conv_general_dilated(x, raw["w1"], (STRIDE, STRIDE),
                                         [(PAD, PAD), (PAD, PAD)],
                                         dimension_numbers=dn)
        y = jnp.maximum(bn(y), 0.0)
        y = jax.lax.conv_general_dilated(y, raw["w2"], (STRIDE, STRIDE),
                                         [(PAD, PAD), (PAD, PAD)],
                                         dimension_numbers=dn)
        y = bn(y)
        y = jax.lax.reduce_window(y, -jnp.inf, jax.lax.max,
                                  (1, 1, 2, 2), (1, 1, 2, 2), "VALID")
        y = jnp.maximum(y, 0.0)
        y = y.reshape(y.shape[0], -1)
        return y @ raw["wfc"].T

    b1 = jax.nn.softmax(once(input1), axis=1)
    b2 = jax.nn.softmax(once(input2), axis=1)
    k = jnp.sum((b1 @ cmat) * b2, axis=1)
    return k, b1, b2


# ---------------------------------------------------------------------------
if __name__ == "__main__":
    cmat, _for_decision = get_Cmatrix_and_forDecision(NUMCLASSES)

    key = jax.random.PRNGKey(0)
    kx1, kx2, kp = jax.random.split(key, 3)
    input1 = jax.random.normal(kx1, (BATCH, CIN, HIN, WIN), dtype=jnp.float32)
    input2 = jax.random.normal(kx2, (BATCH, CIN, HIN, WIN), dtype=jnp.float32)
    consts, raw = init_params(kp, cmat)

    conflict, bba1, bba2 = forward(input1, input2, consts)
    jax.block_until_ready((conflict, bba1, bba2))

    assert conflict.shape == (BATCH,)
    assert bba1.shape == (BATCH, NOUT) and bba2.shape == (BATCH, NOUT)
    assert bool(jnp.all(jnp.isfinite(bba1)) & jnp.all(jnp.isfinite(bba2)))
    assert bool(jnp.allclose(jnp.sum(bba1, axis=1), 1.0, atol=1e-4))

    # cross-check against a plain-JAX/XLA reference of the PyTorch forward
    rk, rb1, rb2 = reference_forward(input1, input2, raw, cmat)
    np.testing.assert_allclose(np.asarray(bba1), np.asarray(rb1), rtol=2e-3, atol=2e-3)
    np.testing.assert_allclose(np.asarray(bba2), np.asarray(rb2), rtol=2e-3, atol=2e-3)
    np.testing.assert_allclose(np.asarray(conflict), np.asarray(rk), rtol=2e-3, atol=2e-3)

    print("KERNEL_OK")
</pallas_src>

<mosaic_0001>
module attributes {stable_mosaic.version = 11 : i64} {
  func.func @fused_forward_kernel(%arg0: memref<4x1024xf32, #tpu.memory_space<vmem>>, %arg1: memref<1024x768xbf16, #tpu.memory_space<vmem>>, %arg2: memref<768x384xbf16, #tpu.memory_space<vmem>>, %arg3: memref<256x640xbf16, #tpu.memory_space<vmem>>, %arg4: memref<256x768xbf16, #tpu.memory_space<vmem>>, %arg5: memref<4x128xf32, #tpu.memory_space<vmem>>, %arg6: memref<2x128xf32, #tpu.memory_space<vmem>>) attributes {dimension_semantics = [], scalar_prefetch = 0 : i64, scratch_operands = 0 : i64, tpu.core_type = #tpu.core_type<tc>} {
    %c0 = arith.constant 0 : index
    %c0_0 = arith.constant 0 : index
    %0 = vector.load %arg0[%c0, %c0_0] : memref<4x1024xf32, #tpu.memory_space<vmem>>, vector<4x1024xf32>
    %c0_1 = arith.constant 0 : index
    %c0_2 = arith.constant 0 : index
    %1 = vector.load %arg1[%c0_1, %c0_2] : memref<1024x768xbf16, #tpu.memory_space<vmem>>, vector<1024x768xbf16>
    %2 = arith.extf %1 : vector<1024x768xbf16> to vector<1024x768xf32>
    %cst = arith.constant dense<0.000000e+00> : vector<4x768xf32>
    %3 = tpu.matmul %0, %2, %cst {dimension_numbers = #tpu.dot_dimension_numbers<[1], [0], [0], [1], [0, 0, 1, 1], [], []>} : vector<4x1024xf32>, vector<1024x768xf32>, vector<4x768xf32> -> vector<4x768xf32>
    %c0_3 = arith.constant 0 : index
    %c256 = arith.constant 256 : index
    %4 = vector.load %arg2[%c0_3, %c256] : memref<768x384xbf16, #tpu.memory_space<vmem>>, vector<768x128xbf16>
    %5 = arith.extf %4 : vector<768x128xbf16> to vector<768x128xf32>
    %c0_4 = arith.constant 0 : index
    %c0_5 = arith.constant 0 : index
    %6 = vector.load %arg4[%c0_4, %c0_5] : memref<256x768xbf16, #tpu.memory_space<vmem>>, vector<128x768xbf16>
    %7 = arith.extf %6 : vector<128x768xbf16> to vector<128x768xf32>
    %8 = arith.mulf %3, %3 : vector<4x768xf32>
    %9 = tpu.concatenate %3, %8 in 0 : vector<4x768xf32>, vector<4x768xf32> -> vector<8x768xf32>
    %cst_6 = arith.constant dense<0.000000e+00> : vector<8x128xf32>
    %10 = tpu.matmul %9, %5, %cst_6 {dimension_numbers = #tpu.dot_dimension_numbers<[1], [0], [0], [1], [0, 0, 1, 1], [], []>} : vector<8x768xf32>, vector<768x128xf32>, vector<8x128xf32> -> vector<8x128xf32>
    %11 = vector.extract_strided_slice %10 {offsets = [0, 0], sizes = [2, 128], strides = [1, 1]} : vector<8x128xf32> to vector<2x128xf32>
    %cst_7 = arith.constant dense<0.000000e+00> : vector<128xf32>
    %12 = vector.multi_reduction <add>, %11, %cst_7 [0] : vector<2x128xf32> to vector<128xf32>
    %13 = vector.shape_cast %12 : vector<128xf32> to vector<1x128xf32>
    %cst_8 = arith.constant 7.812500e-03 : f32
    %14 = vector.broadcast %cst_8 : f32 to vector<1x128xf32>
    %15 = arith.mulf %13, %14 : vector<1x128xf32>
    %16 = vector.extract_strided_slice %10 {offsets = [2, 0], sizes = [2, 128], strides = [1, 1]} : vector<8x128xf32> to vector<2x128xf32>
    %cst_9 = arith.constant dense<0.000000e+00> : vector<128xf32>
    %17 = vector.multi_reduction <add>, %16, %cst_9 [0] : vector<2x128xf32> to vector<128xf32>
    %18 = vector.shape_cast %17 : vector<128xf32> to vector<1x128xf32>
    %cst_10 = arith.constant 7.812500e-03 : f32
    %19 = vector.broadcast %cst_10 : f32 to vector<1x128xf32>
    %20 = arith.mulf %18, %19 : vector<1x128xf32>
    %21 = vector.extract_strided_slice %10 {offsets = [4, 0], sizes = [2, 128], strides = [1, 1]} : vector<8x128xf32> to vector<2x128xf32>
    %cst_11 = arith.constant dense<0.000000e+00> : vector<128xf32>
    %22 = vector.multi_reduction <add>, %21, %cst_11 [0] : vector<2x128xf32> to vector<128xf32>
    %23 = vector.shape_cast %22 : vector<128xf32> to vector<1x128xf32>
    %cst_12 = arith.constant 7.812500e-03 : f32
    %24 = vector.broadcast %cst_12 : f32 to vector<1x128xf32>
    %25 = arith.mulf %23, %24 : vector<1x128xf32>
    %26 = vector.extract_strided_slice %10 {offsets = [6, 0], sizes = [2, 128], strides = [1, 1]} : vector<8x128xf32> to vector<2x128xf32>
    %cst_13 = arith.constant dense<0.000000e+00> : vector<128xf32>
    %27 = vector.multi_reduction <add>, %26, %cst_13 [0] : vector<2x128xf32> to vector<128xf32>
    %28 = vector.shape_cast %27 : vector<128xf32> to vector<1x128xf32>
    %cst_14 = arith.constant 7.812500e-03 : f32
    %29 = vector.broadcast %cst_14 : f32 to vector<1x128xf32>
    %30 = arith.mulf %28, %29 : vector<1x128xf32>
    %31 = arith.mulf %15, %15 : vector<1x128xf32>
    %32 = arith.subf %25, %31 : vector<1x128xf32>
    %cst_15 = arith.constant 9.99999974E-6 : f32
    %33 = vector.broadcast %cst_15 : f32 to vector<1x128xf32>
    %34 = arith.addf %32, %33 : vector<1x128xf32>
    %35 = math.rsqrt %34 : vector<1x128xf32>
    %36 = arith.mulf %20, %20 : vector<1x128xf32>
    %37 = arith.subf %30, %36 : vector<1x128xf32>
    %cst_16 = arith.constant 9.99999974E-6 : f32
    %38 = vector.broadcast %cst_16 : f32 to vector<1x128xf32>
    %39 = arith.addf %37, %38 : vector<1x128xf32>
    %40 = math.rsqrt %39 : vector<1x128xf32>
    %cst_17 = arith.constant 0.000000e+00 : f32
    %41 = vector.broadcast %cst_17 : f32 to vector<1x128xf32>
    %42 = arith.subf %41, %15 : vector<1x128xf32>
    %43 = arith.mulf %42, %35 : vector<1x128xf32>
    %cst_18 = arith.constant 0.000000e+00 : f32
    %44 = vector.broadcast %cst_18 : f32 to vector<1x128xf32>
    %45 = arith.subf %44, %20 : vector<1x128xf32>
    %46 = arith.mulf %45, %40 : vector<1x128xf32>
    %47 = tpu.concatenate %35, %35, %40, %40, %43, %43, %46, %46 in 0 : vector<1x128xf32>, vector<1x128xf32>, vector<1x128xf32>, vector<1x128xf32>, vector<1x128xf32>, vector<1x128xf32>, vector<1x128xf32>, vector<1x128xf32> -> vector<8x128xf32>
    %cst_19 = arith.constant dense<0.000000e+00> : vector<8x768xf32>
    %48 = tpu.matmul %47, %7, %cst_19 {dimension_numbers = #tpu.dot_dimension_numbers<[1], [0], [0], [1], [0, 0, 1, 1], [], []>} : vector<8x128xf32>, vector<128x768xf32>, vector<8x768xf32> -> vector<8x768xf32>
    %49 = vector.extract_strided_slice %48 {offsets = [0, 0], sizes = [4, 768], strides = [1, 1]} : vector<8x768xf32> to vector<4x768xf32>
    %50 = arith.mulf %3, %49 : vector<4x768xf32>
    %51 = vector.extract_strided_slice %48 {offsets = [4, 0], sizes = [4, 768], strides = [1, 1]} : vector<8x768xf32> to vector<4x768xf32>
    %52 = arith.addf %50, %51 : vector<4x768xf32>
    %cst_20 = arith.constant 0.000000e+00 : f32
    %53 = vector.broadcast %cst_20 : f32 to vector<4x768xf32>
    %54 = arith.maximumf %52, %53 : vector<4x768xf32>
    %c0_21 = arith.constant 0 : index
    %c0_22 = arith.constant 0 : index
    %55 = vector.load %arg2[%c0_21, %c0_22] : memref<768x384xbf16, #tpu.memory_space<vmem>>, vector<768x256xbf16>
    %56 = arith.extf %55 : vector<768x256xbf16> to vector<768x256xf32>
    %cst_23 = arith.constant dense<0.000000e+00> : vector<4x256xf32>
    %57 = tpu.matmul %54, %56, %cst_23 {dimension_numbers = #tpu.dot_dimension_numbers<[1], [0], [0], [1], [0, 0, 1, 1], [], []>} : vector<4x768xf32>, vector<768x256xf32>, vector<4x256xf32> -> vector<4x256xf32>
    %c0_24 = arith.constant 0 : index
    %c512 = arith.constant 512 : index
    %58 = vector.load %arg3[%c0_24, %c512] : memref<256x640xbf16, #tpu.memory_space<vmem>>, vector<256x128xbf16>
    %59 = arith.extf %58 : vector<256x128xbf16> to vector<256x128xf32>
    %c128 = arith.constant 128 : index
    %c0_25 = arith.constant 0 : index
    %60 = vector.load %arg4[%c128, %c0_25] : memref<256x768xbf16, #tpu.memory_space<vmem>>, vector<128x256xbf16>
    %61 = arith.extf %60 : vector<128x256xbf16> to vector<128x256xf32>
    %62 = arith.mulf %57, %57 : vector<4x256xf32>
    %63 = tpu.concatenate %57, %62 in 0 : vector<4x256xf32>, vector<4x256xf32> -> vector<8x256xf32>
    %cst_26 = arith.constant dense<0.000000e+00> : vector<8x128xf32>
    %64 = tpu.matmul %63, %59, %cst_26 {dimension_numbers = #tpu.dot_dimension_numbers<[1], [0], [0], [1], [0, 0, 1, 1], [], []>} : vector<8x256xf32>, vector<256x128xf32>, vector<8x128xf32> -> vector<8x128xf32>
    %65 = vector.extract_strided_slice %64 {offsets = [0, 0], sizes = [2, 128], strides = [1, 1]} : vector<8x128xf32> to vector<2x128xf32>
    %cst_27 = arith.constant dense<0.000000e+00> : vector<128xf32>
    %66 = vector.multi_reduction <add>, %65, %cst_27 [0] : vector<2x128xf32> to vector<128xf32>
    %67 = vector.shape_cast %66 : vector<128xf32> to vector<1x128xf32>
    %cst_28 = arith.constant 3.125000e-02 : f32
    %68 = vector.broadcast %cst_28 : f32 to vector<1x128xf32>
    %69 = arith.mulf %67, %68 : vector<1x128xf32>
    %70 = vector.extract_strided_slice %64 {offsets = [2, 0], sizes = [2, 128], strides = [1, 1]} : vector<8x128xf32> to vector<2x128xf32>
    %cst_29 = arith.constant dense<0.000000e+00> : vector<128xf32>
    %71 = vector.multi_reduction <add>, %70, %cst_29 [0] : vector<2x128xf32> to vector<128xf32>
    %72 = vector.shape_cast %71 : vector<128xf32> to vector<1x128xf32>
    %cst_30 = arith.constant 3.125000e-02 : f32
    %73 = vector.broadcast %cst_30 : f32 to vector<1x128xf32>
    %74 = arith.mulf %72, %73 : vector<1x128xf32>
    %75 = vector.extract_strided_slice %64 {offsets = [4, 0], sizes = [2, 128], strides = [1, 1]} : vector<8x128xf32> to vector<2x128xf32>
    %cst_31 = arith.constant dense<0.000000e+00> : vector<128xf32>
    %76 = vector.multi_reduction <add>, %75, %cst_31 [0] : vector<2x128xf32> to vector<128xf32>
    %77 = vector.shape_cast %76 : vector<128xf32> to vector<1x128xf32>
    %cst_32 = arith.constant 3.125000e-02 : f32
    %78 = vector.broadcast %cst_32 : f32 to vector<1x128xf32>
    %79 = arith.mulf %77, %78 : vector<1x128xf32>
    %80 = vector.extract_strided_slice %64 {offsets = [6, 0], sizes = [2, 128], strides = [1, 1]} : vector<8x128xf32> to vector<2x128xf32>
    %cst_33 = arith.constant dense<0.000000e+00> : vector<128xf32>
    %81 = vector.multi_reduction <add>, %80, %cst_33 [0] : vector<2x128xf32> to vector<128xf32>
    %82 = vector.shape_cast %81 : vector<128xf32> to vector<1x128xf32>
    %cst_34 = arith.constant 3.125000e-02 : f32
    %83 = vector.broadcast %cst_34 : f32 to vector<1x128xf32>
    %84 = arith.mulf %82, %83 : vector<1x128xf32>
    %85 = arith.mulf %69, %69 : vector<1x128xf32>
    %86 = arith.subf %79, %85 : vector<1x128xf32>
    %cst_35 = arith.constant 9.99999974E-6 : f32
    %87 = vector.broadcast %cst_35 : f32 to vector<1x128xf32>
    %88 = arith.addf %86, %87 : vector<1x128xf32>
    %89 = math.rsqrt %88 : vector<1x128xf32>
    %90 = arith.mulf %74, %74 : vector<1x128xf32>
    %91 = arith.subf %84, %90 : vector<1x128xf32>
    %cst_36 = arith.constant 9.99999974E-6 : f32
    %92 = vector.broadcast %cst_36 : f32 to vector<1x128xf32>
    %93 = arith.addf %91, %92 : vector<1x128xf32>
    %94 = math.rsqrt %93 : vector<1x128xf32>
    %cst_37 = arith.constant 0.000000e+00 : f32
    %95 = vector.broadcast %cst_37 : f32 to vector<1x128xf32>
    %96 = arith.subf %95, %69 : vector<1x128xf32>
    %97 = arith.mulf %96, %89 : vector<1x128xf32>
    %cst_38 = arith.constant 0.000000e+00 : f32
    %98 = vector.broadcast %cst_38 : f32 to vector<1x128xf32>
    %99 = arith.subf %98, %74 : vector<1x128xf32>
    %100 = arith.mulf %99, %94 : vector<1x128xf32>
    %101 = tpu.concatenate %89, %89, %94, %94, %97, %97, %100, %100 in 0 : vector<1x128xf32>, vector<1x128xf32>, vector<1x128xf32>, vector<1x128xf32>, vector<1x128xf32>, vector<1x128xf32>, vector<1x128xf32>, vector<1x128xf32> -> vector<8x128xf32>
    %cst_39 = arith.constant dense<0.000000e+00> : vector<8x256xf32>
    %102 = tpu.matmul %101, %61, %cst_39 {dimension_numbers = #tpu.dot_dimension_numbers<[1], [0], [0], [1], [0, 0, 1, 1], [], []>} : vector<8x128xf32>, vector<128x256xf32>, vector<8x256xf32> -> vector<8x256xf32>
    %103 = vector.extract_strided_slice %102 {offsets = [0, 0], sizes = [4, 256], strides = [1, 1]} : vector<8x256xf32> to vector<4x256xf32>
    %104 = arith.mulf %57, %103 : vector<4x256xf32>
    %105 = vector.extract_strided_slice %102 {offsets = [4, 0], sizes = [4, 256], strides = [1, 1]} : vector<8x256xf32> to vector<4x256xf32>
    %106 = arith.addf %104, %105 : vector<4x256xf32>
    %c0_40 = arith.constant 0 : index
    %c0_41 = arith.constant 0 : index
    %107 = vector.load %arg3[%c0_40, %c0_41] : memref<256x640xbf16, #tpu.memory_space<vmem>>, vector<256x512xbf16>
    %108 = arith.extf %107 : vector<256x512xbf16> to vector<256x512xf32>
    %cst_42 = arith.constant dense<0.000000e+00> : vector<4x512xf32>
    %109 = tpu.matmul %106, %108, %cst_42 {dimension_numbers = #tpu.dot_dimension_numbers<[1], [0], [0], [1], [0, 0, 1, 1], [], []>} : vector<4x256xf32>, vector<256x512xf32>, vector<4x512xf32> -> vector<4x512xf32>
    %110 = vector.extract_strided_slice %109 {offsets = [0, 0], sizes = [4, 128], strides = [1, 1]} : vector<4x512xf32> to vector<4x128xf32>
    %111 = vector.extract_strided_slice %109 {offsets = [0, 128], sizes = [4, 128], strides = [1, 1]} : vector<4x512xf32> to vector<4x128xf32>
    %112 = arith.maximumf %110, %111 : vector<4x128xf32>
    %113 = vector.extract_strided_slice %109 {offsets = [0, 256], sizes = [4, 128], strides = [1, 1]} : vector<4x512xf32> to vector<4x128xf32>
    %114 = vector.extract_strided_slice %109 {offsets = [0, 384], sizes = [4, 128], strides = [1, 1]} : vector<4x512xf32> to vector<4x128xf32>
    %115 = arith.maximumf %113, %114 : vector<4x128xf32>
    %116 = arith.maximumf %112, %115 : vector<4x128xf32>
    %cst_43 = arith.constant 0.000000e+00 : f32
    %117 = vector.broadcast %cst_43 : f32 to vector<4x128xf32>
    %118 = arith.maximumf %116, %117 : vector<4x128xf32>
    %c128_44 = arith.constant 128 : index
    %c256_45 = arith.constant 256 : index
    %119 = vector.load %arg4[%c128_44, %c256_45] : memref<256x768xbf16, #tpu.memory_space<vmem>>, vector<128x128xbf16>
    %120 = arith.extf %119 : vector<128x128xbf16> to vector<128x128xf32>
    %cst_46 = arith.constant dense<0.000000e+00> : vector<4x128xf32>
    %121 = tpu.matmul %118, %120, %cst_46 {dimension_numbers = #tpu.dot_dimension_numbers<[1], [0], [0], [1], [0, 0, 1, 1], [], []>} : vector<4x128xf32>, vector<128x128xf32>, vector<4x128xf32> -> vector<4x128xf32>
    %122 = tpu.iota {dimensions = array<i32: 1>} : vector<4x128xi32>
    %c7_i32 = arith.constant 7 : i32
    %123 = vector.broadcast %c7_i32 : i32 to vector<4x128xi32>
    %124 = arith.cmpi slt, %122, %123 : vector<4x128xi32>
    %cst_47 = arith.constant -1.000000e+30 : f32
    %125 = vector.broadcast %cst_47 : f32 to vector<4x128xf32>
    %126 = arith.select %124, %121, %125 : vector<4x128xi1>, vector<4x128xf32>
    %cst_48 = arith.constant dense<0xFF800000> : vector<4xf32>
    %127 = vector.multi_reduction <maximumf>, %126, %cst_48 [1] : vector<4x128xf32> to vector<4xf32>
    %128 = vector.shape_cast %127 : vector<4xf32> to vector<4x1xf32>
    %129 = vector.broadcast %128 : vector<4x1xf32> to vector<4x128xf32>
    %130 = arith.subf %126, %129 : vector<4x128xf32>
    %131 = math.exp %130 : vector<4x128xf32>
    %cst_49 = arith.constant dense<0.000000e+00> : vector<4xf32>
    %132 = vector.multi_reduction <add>, %131, %cst_49 [1] : vector<4x128xf32> to vector<4xf32>
    %133 = vector.shape_cast %132 : vector<4xf32> to vector<4x1xf32>
    %134 = vector.broadcast %133 : vector<4x1xf32> to vector<4x128xf32>
    %135 = arith.divf %131, %134 : vector<4x128xf32>
    %c0_50 = arith.constant 0 : index
    %c0_51 = arith.constant 0 : index
    %136 = vector.load %arg5[%c0_50, %c0_51] : memref<4x128xf32, #tpu.memory_space<vmem>>, vector<4x128xf32>
    tpu.vector_store %arg5[%c0_50, %c0_51], %135 {strides = array<i32>} : memref<4x128xf32, #tpu.memory_space<vmem>>, vector<4x128xf32>,
    %137 = vector.extract_strided_slice %135 {offsets = [0, 0], sizes = [2, 128], strides = [1, 1]} : vector<4x128xf32> to vector<2x128xf32>
    %c128_52 = arith.constant 128 : index
    %c384 = arith.constant 384 : index
    %138 = vector.load %arg4[%c128_52, %c384] : memref<256x768xbf16, #tpu.memory_space<vmem>>, vector<128x128xbf16>
    %139 = arith.extf %138 : vector<128x128xbf16> to vector<128x128xf32>
    %cst_53 = arith.constant dense<0.000000e+00> : vector<2x128xf32>
    %140 = tpu.matmul %137, %139, %cst_53 {dimension_numbers = #tpu.dot_dimension_numbers<[1], [0], [0], [1], [0, 0, 1, 1], [], []>} : vector<2x128xf32>, vector<128x128xf32>, vector<2x128xf32> -> vector<2x128xf32>
    %141 = vector.extract_strided_slice %135 {offsets = [2, 0], sizes = [2, 128], strides = [1, 1]} : vector<4x128xf32> to vector<2x128xf32>
    %142 = arith.mulf %140, %141 : vector<2x128xf32>
    %cst_54 = arith.constant dense<0.000000e+00> : vector<2xf32>
    %143 = vector.multi_reduction <add>, %142, %cst_54 [1] : vector<2x128xf32> to vector<2xf32>
    %144 = vector.shape_cast %143 : vector<2xf32> to vector<2x1xf32>
    %cst_55 = arith.constant 0.000000e+00 : f32
    %145 = vector.broadcast %cst_55 : f32 to vector<2x128xf32>
    %146 = vector.broadcast %144 : vector<2x1xf32> to vector<2x128xf32>
    %147 = arith.addf %146, %145 : vector<2x128xf32>
    %c0_56 = arith.constant 0 : index
    %c0_57 = arith.constant 0 : index
    %148 = vector.load %arg6[%c0_56, %c0_57] : memref<2x128xf32, #tpu.memory_space<vmem>>, vector<2x128xf32>
    tpu.vector_store %arg6[%c0_56, %c0_57], %147 {strides = array<i32>} : memref<2x128xf32, #tpu.memory_space<vmem>>, vector<2x128xf32>,
    return
  }
}

</mosaic_0001>

<llo_original>
// kernel: forward.1
$region0: #{forward.1}
  #allocation0 [shape = 'u32[]', space=smem, size = 0x4, offset = 0x4, fixed_abs, tag = 'smem constant byte address 0x4 - core index']
  #allocation1 [shape = 'u32[144,128]{1,0:T(1,128)}', space=vmem, size = 0x12000, scoped, tag = 'internal scratch']
  %s0 = inlined_call_operand.vmem [shape: f32[4,1024], index: 0, kind: input, shape index: {}]
  %s1 = inlined_call_operand.hbm [shape: bf16[1024,768], index: 1, kind: input, shape index: {}]
  %s2 = inlined_call_operand.hbm [shape: bf16[768,384], index: 2, kind: input, shape index: {}]
  %s3 = inlined_call_operand.hbm [shape: bf16[256,640], index: 3, kind: input, shape index: {}]
  %s4 = inlined_call_operand.hbm [shape: bf16[256,768], index: 4, kind: input, shape index: {}]
  %s5 = inlined_call_operand.vmem [shape: f32[4,128], index: 5, kind: output, shape index: {0}]
  %s6 = inlined_call_operand.vmem [shape: f32[2,128], index: 6, kind: output, shape index: {1}]
  %7 = xla_tuple %s5, %s6
  %s8 = sld [smem:[#allocation0]]
  $region54: #{forward.1} parent=0
    _
  %s10 = ssub.s32 1, %s8
  %s11 = scalar_select 0, %s10, %s8
  $region1: #{forward.1} parent=0
    #allocation2 [shape = 'u8[1572864]{0}', space=vmem, size = 0x180000, scoped, tag = 'input window, operand 1, single buffered']
    #allocation3 [shape = 's32[1]{0}', space=sflag, size = 0x4, scoped, tag = 'scoped memory for forward.1']
    #allocation4 [shape = 'u8[589824]{0}', space=vmem, size = 0x90000, scoped, tag = 'input window, operand 2, single buffered']
    #allocation5 [shape = 's32[1]{0}', space=sflag, size = 0x4, scoped, tag = 'scoped memory for forward.1']
    #allocation6 [shape = 'u8[327680]{0}', space=vmem, size = 0x50000, scoped, tag = 'input window, operand 3, single buffered']
    #allocation7 [shape = 'u8[393216]{0}', space=vmem, size = 0x60000, scoped, tag = 'input window, operand 4, single buffered']
    #allocation8 [shape = 's32[1]{0}', space=sflag, size = 0x4, scoped, tag = 'scoped memory for forward.1']
    %12 = vsyncpa [#allocation3], 0
    %13 = vsyncpa [#allocation5], 0
    %14 = vsyncpa [#allocation8], 0
    // Predicated region
    $region2: #{forward.1} parent=1 // pred_check
      _
    $region3: #{forward.1} parent=1 // pred_check_branch
      %16 = sbr.rel (0) target = $region5
    $region4: #{forward.1} parent=1 // pred_region
      _
    $region5: #{forward.1} parent=1 // pred_fallthru
      _
    // Predicated region
    $region6: #{forward.1} parent=1 // pred_check
      _
    $region7: #{forward.1} parent=1 // pred_check_branch
      %18 = sbr.rel (0) target = $region9
    $region8: #{forward.1} parent=1 // pred_region
      %s20 = ssub.s32 49152, 49152
      %21 = vsyncadd [#allocation3], %s20
      %s22 = sshll.u32 [#allocation2], 4
      %s23 = int_to_ptr.vmem [resolvable:$true] %s22
      %28 = dma.hbm_to_vmem [thread:$0]  %s1, 49152, %s23, [#allocation3], 384, 384, 24
    $region9: #{forward.1} parent=1 // pred_fallthru
      _
    // Predicated region
    $region10: #{forward.1} parent=1 // pred_check
      _
    $region11: #{forward.1} parent=1 // pred_check_branch
      %30 = sbr.rel (0) target = $region13
    $region12: #{forward.1} parent=1 // pred_region
      %s32 = ssub.s32 18432, 18432
      %33 = vsyncadd [#allocation5], %s32
      %s34 = sshll.u32 [#allocation4], 4
      %s35 = int_to_ptr.vmem [resolvable:$true] %s34
      %40 = dma.hbm_to_vmem [thread:$0]  %s2, 18432, %s35, [#allocation5], 192, 192, 12
    $region13: #{forward.1} parent=1 // pred_fallthru
      _
    // Predicated region
    $region14: #{forward.1} parent=1 // pred_check
      _
    $region15: #{forward.1} parent=1 // pred_check_branch
      %42 = sbr.rel (0) target = $region17
    $region16: #{forward.1} parent=1 // pred_region
      %s44 = ssub.s32 10240, 10240
      %45 = vsyncadd [#allocation5], %s44
      %s46 = sshll.u32 [#allocation6], 4
      %s47 = int_to_ptr.vmem [resolvable:$true] %s46
      %52 = dma.hbm_to_vmem [thread:$0]  %s3, 10240, %s47, [#allocation5], 320, 320, 20
    $region17: #{forward.1} parent=1 // pred_fallthru
      _
    // Predicated region
    $region18: #{forward.1} parent=1 // pred_check
      _
    $region19: #{forward.1} parent=1 // pred_check_branch
      %54 = sbr.rel (0) target = $region21
    $region20: #{forward.1} parent=1 // pred_region
      %s56 = ssub.s32 12288, 12288
      %57 = vsyncadd [#allocation8], %s56
      %s58 = sshll.u32 [#allocation7], 4
      %s59 = int_to_ptr.vmem [resolvable:$true] %s58
      %64 = dma.hbm_to_vmem [thread:$0]  %s4, 12288, %s59, [#allocation8], 384, 384, 24
    $region21: #{forward.1} parent=1 // pred_fallthru
      _
    // Predicated region
    $region22: #{forward.1} parent=1 // pred_check
      _
    $region23: #{forward.1} parent=1 // pred_check_branch
      %66 = sbr.rel (0) target = $region25
    $region24: #{forward.1} parent=1 // pred_region
      %67 = dma.done [#allocation3], 49152
    $region25: #{forward.1} parent=1 // pred_fallthru
      _
    // Predicated region
    $region26: #{forward.1} parent=1 // pred_check
      _
    $region27: #{forward.1} parent=1 // pred_check_branch
      %69 = sbr.rel (0) target = $region29
    $region28: #{forward.1} parent=1 // pred_region
      %70 = dma.done [#allocation5], 18432
    $region29: #{forward.1} parent=1 // pred_fallthru
      _
    // Predicated region
    $region30: #{forward.1} parent=1 // pred_check
      _
    $region31: #{forward.1} parent=1 // pred_check_branch
      %72 = sbr.rel (0) target = $region33
    $region32: #{forward.1} parent=1 // pred_region
      %73 = dma.done [#allocation5], 10240
    $region33: #{forward.1} parent=1 // pred_fallthru
      _
    // Predicated region
    $region34: #{forward.1} parent=1 // pred_check
      _
    $region35: #{forward.1} parent=1 // pred_check_branch
      %75 = sbr.rel (0) target = $region37
    $region36: #{forward.1} parent=1 // pred_region
      %76 = dma.done [#allocation8], 12288
    $region37: #{forward.1} parent=1 // pred_fallthru
      _
    %v77 = vld [vmem:[%s0] sm:$0xff]
    %v78 = vld [vmem:[%s0 + $0x8] sm:$0xff]
    %v79 = vld [vmem:[%s0 + $0x10] sm:$0xff]
    %v80 = vld [vmem:[%s0 + $0x18] sm:$0xff]
    %v81 = vld [vmem:[#allocation2] sm:$0xff]
    %v82 = vld [vmem:[#allocation2 + $0x8] sm:$0xff]
    %v83 = vld [vmem:[#allocation2 + $0x10] sm:$0xff]
    %v84 = vld [vmem:[#allocation2 + $0x18] sm:$0xff]
    %v85 = vld [vmem:[#allocation2 + $0x20] sm:$0xff]
    %v86 = vld [vmem:[#allocation2 + $0x28] sm:$0xff]
    %v87 = vld [vmem:[#allocation2 + $0x30] sm:$0xff]
    %v88 = vld [vmem:[#allocation2 + $0x38] sm:$0xff]
    %v89 = vld [vmem:[#allocation2 + $0x40] sm:$0xff]
    %v90 = vld [vmem:[#allocation2 + $0x48] sm:$0xff]
    %v91 = vld [vmem:[#allocation2 + $0x50] sm:$0xff]
    %v92 = vld [vmem:[#allocation2 + $0x58] sm:$0xff]
    %v93 = vld [vmem:[#allocation2 + $0x60] sm:$0xff]
    %v94 = vld [vmem:[#allocation2 + $0x68] sm:$0xff]
    %v95 = vld [vmem:[#allocation2 + $0x70] sm:$0xff]
    %v96 = vld [vmem:[#allocation2 + $0x78] sm:$0xff]
    %v97 = vld [vmem:[#allocation2 + $0x80] sm:$0xff]
    %v98 = vld [vmem:[#allocation2 + $0x88] sm:$0xff]
    %v99 = vld [vmem:[#allocation2 + $0x90] sm:$0xff]
    %v100 = vld [vmem:[#allocation2 + $0x98] sm:$0xff]
    %v101 = vld [vmem:[#allocation2 + $0xa0] sm:$0xff]
    %v102 = vld [vmem:[#allocation2 + $0xa8] sm:$0xff]
    %v103 = vld [vmem:[#allocation2 + $0xb0] sm:$0xff]
    %v104 = vld [vmem:[#allocation2 + $0xb8] sm:$0xff]
    %v105 = vld [vmem:[#allocation2 + $0xc0] sm:$0xff]
    %v106 = vld [vmem:[#allocation2 + $0xc8] sm:$0xff]
    %v107 = vld [vmem:[#allocation2 + $0xd0] sm:$0xff]
    %v108 = vld [vmem:[#allocation2 + $0xd8] sm:$0xff]
    %v109 = vld [vmem:[#allocation2 + $0xe0] sm:$0xff]
    %v110 = vld [vmem:[#allocation2 + $0xe8] sm:$0xff]
    %v111 = vld [vmem:[#allocation2 + $0xf0] sm:$0xff]
    %v112 = vld [vmem:[#allocation2 + $0xf8] sm:$0xff]
    %v113 = vld [vmem:[#allocation2 + $0x100] sm:$0xff]
    %v114 = vld [vmem:[#allocation2 + $0x108] sm:$0xff]
    %v115 = vld [vmem:[#allocation2 + $0x110] sm:$0xff]
    %v116 = vld [vmem:[#allocation2 + $0x118] sm:$0xff]
    %v117 = vld [vmem:[#allocation2 + $0x120] sm:$0xff]
    %v118 = vld [vmem:[#allocation2 + $0x128] sm:$0xff]
    %v119 = vld [vmem:[#allocation2 + $0x130] sm:$0xff]
    %v120 = vld [vmem:[#allocation2 + $0x138] sm:$0xff]
    %v121 = vld [vmem:[#allocation2 + $0x140] sm:$0xff]
    %v122 = vld [vmem:[#allocation2 + $0x148] sm:$0xff]
    %v123 = vld [vmem:[#allocation2 + $0x150] sm:$0xff]
    %v124 = vld [vmem:[#allocation2 + $0x158] sm:$0xff]
    %v125 = vld [vmem:[#allocation2 + $0x160] sm:$0xff]
    %v126 = vld [vmem:[#allocation2 + $0x168] sm:$0xff]
    %v127 = vld [vmem:[#allocation2 + $0x170] sm:$0xff]
    %v128 = vld [vmem:[#allocation2 + $0x178] sm:$0xff]
    %v129 = vld [vmem:[#allocation2 + $0x180] sm:$0xff]
    %v130 = vld [vmem:[#allocation2 + $0x188] sm:$0xff]
    %v131 = vld [vmem:[#allocation2 + $0x190] sm:$0xff]
    %v132 = vld [vmem:[#allocation2 + $0x198] sm:$0xff]
    %v133 = vld [vmem:[#allocation2 + $0x1a0] sm:$0xff]
    %v134 = vld [vmem:[#allocation2 + $0x1a8] sm:$0xff]
    %v135 = vld [vmem:[#allocation2 + $0x1b0] sm:$0xff]
    %v136 = vld [vmem:[#allocation2 + $0x1b8] sm:$0xff]
    %v137 = vld [vmem:[#allocation2 + $0x1c0] sm:$0xff]
    %v138 = vld [vmem:[#allocation2 + $0x1c8] sm:$0xff]
    %v139 = vld [vmem:[#allocation2 + $0x1d0] sm:$0xff]
    %v140 = vld [vmem:[#allocation2 + $0x1d8] sm:$0xff]
    %v141 = vld [vmem:[#allocation2 + $0x1e0] sm:$0xff]
    %v142 = vld [vmem:[#allocation2 + $0x1e8] sm:$0xff]
    %v143 = vld [vmem:[#allocation2 + $0x1f0] sm:$0xff]
    %v144 = vld [vmem:[#allocation2 + $0x1f8] sm:$0xff]
    %v145 = vld [vmem:[#allocation2 + $0x200] sm:$0xff]
    %v146 = vld [vmem:[#allocation2 + $0x208] sm:$0xff]
    %v147 = vld [vmem:[#allocation2 + $0x210] sm:$0xff]
    %v148 = vld [vmem:[#allocation2 + $0x218] sm:$0xff]
    %v149 = vld [vmem:[#allocation2 + $0x220] sm:$0xff]
    %v150 = vld [vmem:[#allocation2 + $0x228] sm:$0xff]
    %v151 = vld [vmem:[#allocation2 + $0x230] sm:$0xff]
    %v152 = vld [vmem:[#allocation2 + $0x238] sm:$0xff]
    %v153 = vld [vmem:[#allocation2 + $0x240] sm:$0xff]
    %v154 = vld [vmem:[#allocation2 + $0x248] sm:$0xff]
    %v155 = vld [vmem:[#allocation2 + $0x250] sm:$0xff]
    %v156 = vld [vmem:[#allocation2 + $0x258] sm:$0xff]
    %v157 = vld [vmem:[#allocation2 + $0x260] sm:$0xff]
    %v158 = vld [vmem:[#allocation2 + $0x268] sm:$0xff]
    %v159 = vld [vmem:[#allocation2 + $0x270] sm:$0xff]
    %v160 = vld [vmem:[#allocation2 + $0x278] sm:$0xff]
    %v161 = vld [vmem:[#allocation2 + $0x280] sm:$0xff]
    %v162 = vld [vmem:[#allocation2 + $0x288] sm:$0xff]
    %v163 = vld [vmem:[#allocation2 + $0x290] sm:$0xff]
    %v164 = vld [vmem:[#allocation2 + $0x298] sm:$0xff]
    %v165 = vld [vmem:[#allocation2 + $0x2a0] sm:$0xff]
    %v166 = vld [vmem:[#allocation2 + $0x2a8] sm:$0xff]
    %v167 = vld [vmem:[#allocation2 + $0x2b0] sm:$0xff]
    %v168 = vld [vmem:[#allocation2 + $0x2b8] sm:$0xff]
    %v169 = vld [vmem:[#allocation2 + $0x2c0] sm:$0xff]
    %v170 = vld [vmem:[#allocation2 + $0x2c8] sm:$0xff]
    %v171 = vld [vmem:[#allocation2 + $0x2d0] sm:$0xff]
    %v172 = vld [vmem:[#allocation2 + $0x2d8] sm:$0xff]
    %v173 = vld [vmem:[#allocation2 + $0x2e0] sm:$0xff]
    %v174 = vld [vmem:[#allocation2 + $0x2e8] sm:$0xff]
    %v175 = vld [vmem:[#allocation2 + $0x2f0] sm:$0xff]
    %v176 = vld [vmem:[#allocation2 + $0x2f8] sm:$0xff]
    %v177 = vld [vmem:[#allocation2 + $0x300] sm:$0xff]
    %v178 = vld [vmem:[#allocation2 + $0x308] sm:$0xff]
    %v179 = vld [vmem:[#allocation2 + $0x310] sm:$0xff]
    %v180 = vld [vmem:[#allocation2 + $0x318] sm:$0xff]
    %v181 = vld [vmem:[#allocation2 + $0x320] sm:$0xff]
    %v182 = vld [vmem:[#allocation2 + $0x328] sm:$0xff]
    %v183 = vld [vmem:[#allocation2 + $0x330] sm:$0xff]
    %v184 = vld [vmem:[#allocation2 + $0x338] sm:$0xff]
    %v185 = vld [vmem:[#allocation2 + $0x340] sm:$0xff]
    %v186 = vld [vmem:[#allocation2 + $0x348] sm:$0xff]
    %v187 = vld [vmem:[#allocation2 + $0x350] sm:$0xff]
    %v188 = vld [vmem:[#allocation2 + $0x358] sm:$0xff]
    %v189 = vld [vmem:[#allocation2 + $0x360] sm:$0xff]
    %v190 = vld [vmem:[#allocation2 + $0x368] sm:$0xff]
    %v191 = vld [vmem:[#allocation2 + $0x370] sm:$0xff]
    %v192 = vld [vmem:[#allocation2 + $0x378] sm:$0xff]
    %v193 = vld [vmem:[#allocation2 + $0x380] sm:$0xff]
    %v194 = vld [vmem:[#allocation2 + $0x388] sm:$0xff]
    %v195 = vld [vmem:[#allocation2 + $0x390] sm:$0xff]
    %v196 = vld [vmem:[#allocation2 + $0x398] sm:$0xff]
    %v197 = vld [vmem:[#allocation2 + $0x3a0] sm:$0xff]
    %v198 = vld [vmem:[#allocation2 + $0x3a8] sm:$0xff]
    %v199 = vld [vmem:[#allocation2 + $0x3b0] sm:$0xff]
    %v200 = vld [vmem:[#allocation2 + $0x3b8] sm:$0xff]
    %v201 = vld [vmem:[#allocation2 + $0x3c0] sm:$0xff]
    %v202 = vld [vmem:[#allocation2 + $0x3c8] sm:$0xff]
    %v203 = vld [vmem:[#allocation2 + $0x3d0] sm:$0xff]
    %v204 = vld [vmem:[#allocation2 + $0x3d8] sm:$0xff]
    %v205 = vld [vmem:[#allocation2 + $0x3e0] sm:$0xff]
    %v206 = vld [vmem:[#allocation2 + $0x3e8] sm:$0xff]
    %v207 = vld [vmem:[#allocation2 + $0x3f0] sm:$0xff]
    %v208 = vld [vmem:[#allocation2 + $0x3f8] sm:$0xff]
    %v209 = vld [vmem:[#allocation2 + $0x400] sm:$0xff]
    %v210 = vld [vmem:[#allocation2 + $0x408] sm:$0xff]
    %v211 = vld [vmem:[#allocation2 + $0x410] sm:$0xff]
    %v212 = vld [vmem:[#allocation2 + $0x418] sm:$0xff]
    %v213 = vld [vmem:[#allocation2 + $0x420] sm:$0xff]
    %v214 = vld [vmem:[#allocation2 + $0x428] sm:$0xff]
    %v215 = vld [vmem:[#allocation2 + $0x430] sm:$0xff]
    %v216 = vld [vmem:[#allocation2 + $0x438] sm:$0xff]
    %v217 = vld [vmem:[#allocation2 + $0x440] sm:$0xff]
    %v218 = vld [vmem:[#allocation2 + $0x448] sm:$0xff]
    %v219 = vld [vmem:[#allocation2 + $0x450] sm:$0xff]
    %v220 = vld [vmem:[#allocation2 + $0x458] sm:$0xff]
    %v221 = vld [vmem:[#allocation2 + $0x460] sm:$0xff]
    %v222 = vld [vmem:[#allocation2 + $0x468] sm:$0xff]
    %v223 = vld [vmem:[#allocation2 + $0x470] sm:$0xff]
    %v224 = vld [vmem:[#allocation2 + $0x478] sm:$0xff]
    %v225 = vld [vmem:[#allocation2 + $0x480] sm:$0xff]
    %v226 = vld [vmem:[#allocation2 + $0x488] sm:$0xff]
    %v227 = vld [vmem:[#allocation2 + $0x490] sm:$0xff]
    %v228 = vld [vmem:[#allocation2 + $0x498] sm:$0xff]
    %v229 = vld [vmem:[#allocation2 + $0x4a0] sm:$0xff]
    %v230 = vld [vmem:[#allocation2 + $0x4a8] sm:$0xff]
    %v231 = vld [vmem:[#allocation2 + $0x4b0] sm:$0xff]
    %v232 = vld [vmem:[#allocation2 + $0x4b8] sm:$0xff]
    %v233 = vld [vmem:[#allocation2 + $0x4c0] sm:$0xff]
    %v234 = vld [vmem:[#allocation2 + $0x4c8] sm:$0xff]
    %v235 = vld [vmem:[#allocation2 + $0x4d0] sm:$0xff]
    %v236 = vld [vmem:[#allocation2 + $0x4d8] sm:$0xff]
    %v237 = vld [vmem:[#allocation2 + $0x4e0] sm:$0xff]
    %v238 = vld [vmem:[#allocation2 + $0x4e8] sm:$0xff]
    %v239 = vld [vmem:[#allocation2 + $0x4f0] sm:$0xff]
    %v240 = vld [vmem:[#allocation2 + $0x4f8] sm:$0xff]
    %v241 = vld [vmem:[#allocation2 + $0x500] sm:$0xff]
    %v242 = vld [vmem:[#allocation2 + $0x508] sm:$0xff]
    %v243 = vld [vmem:[#allocation2 + $0x510] sm:$0xff]
    %v244 = vld [vmem:[#allocation2 + $0x518] sm:$0xff]
    %v245 = vld [vmem:[#allocation2 + $0x520] sm:$0xff]
    %v246 = vld [vmem:[#allocation2 + $0x528] sm:$0xff]
    %v247 = vld [vmem:[#allocation2 + $0x530] sm:$0xff]
    %v248 = vld [vmem:[#allocation2 + $0x538] sm:$0xff]
    %v249 = vld [vmem:[#allocation2 + $0x540] sm:$0xff]
    %v250 = vld [vmem:[#allocation2 + $0x548] sm:$0xff]
    %v251 = vld [vmem:[#allocation2 + $0x550] sm:$0xff]
    %v252 = vld [vmem:[#allocation2 + $0x558] sm:$0xff]
    %v253 = vld [vmem:[#allocation2 + $0x560] sm:$0xff]
    %v254 = vld [vmem:[#allocation2 + $0x568] sm:$0xff]
    %v255 = vld [vmem:[#allocation2 + $0x570] sm:$0xff]
    %v256 = vld [vmem:[#allocation2 + $0x578] sm:$0xff]
    %v257 = vld [vmem:[#allocation2 + $0x580] sm:$0xff]
    %v258 = vld [vmem:[#allocation2 + $0x588] sm:$0xff]
    %v259 = vld [vmem:[#allocation2 + $0x590] sm:$0xff]
    %v260 = vld [vmem:[#allocation2 + $0x598] sm:$0xff]
    %v261 = vld [vmem:[#allocation2 + $0x5a0] sm:$0xff]
    %v262 = vld [vmem:[#allocation2 + $0x5a8] sm:$0xff]
    %v263 = vld [vmem:[#allocation2 + $0x5b0] sm:$0xff]
    %v264 = vld [vmem:[#allocation2 + $0x5b8] sm:$0xff]
    %v265 = vld [vmem:[#allocation2 + $0x5c0] sm:$0xff]
    %v266 = vld [vmem:[#allocation2 + $0x5c8] sm:$0xff]
    %v267 = vld [vmem:[#allocation2 + $0x5d0] sm:$0xff]
    %v268 = vld [vmem:[#allocation2 + $0x5d8] sm:$0xff]
    %v269 = vld [vmem:[#allocation2 + $0x5e0] sm:$0xff]
    %v270 = vld [vmem:[#allocation2 + $0x5e8] sm:$0xff]
    %v271 = vld [vmem:[#allocation2 + $0x5f0] sm:$0xff]
    %v272 = vld [vmem:[#allocation2 + $0x5f8] sm:$0xff]
    %v273 = vld [vmem:[#allocation2 + $0x600] sm:$0xff]
    %v274 = vld [vmem:[#allocation2 + $0x608] sm:$0xff]
    %v275 = vld [vmem:[#allocation2 + $0x610] sm:$0xff]
    %v276 = vld [vmem:[#allocation2 + $0x618] sm:$0xff]
    %v277 = vld [vmem:[#allocation2 + $0x620] sm:$0xff]
    %v278 = vld [vmem:[#allocation2 + $0x628] sm:$0xff]
    %v279 = vld [vmem:[#allocation2 + $0x630] sm:$0xff]
    %v280 = vld [vmem:[#allocation2 + $0x638] sm:$0xff]
    %v281 = vld [vmem:[#allocation2 + $0x640] sm:$0xff]
    %v282 = vld [vmem:[#allocation2 + $0x648] sm:$0xff]
    %v283 = vld [vmem:[#allocation2 + $0x650] sm:$0xff]
    %v284 = vld [vmem:[#allocation2 + $0x658] sm:$0xff]
    %v285 = vld [vmem:[#allocation2 + $0x660] sm:$0xff]
    %v286 = vld [vmem:[#allocation2 + $0x668] sm:$0xff]
    %v287 = vld [vmem:[#allocation2 + $0x670] sm:$0xff]
    %v288 = vld [vmem:[#allocation2 + $0x678] sm:$0xff]
    %v289 = vld [vmem:[#allocation2 + $0x680] sm:$0xff]
    %v290 = vld [vmem:[#allocation2 + $0x688] sm:$0xff]
    %v291 = vld [vmem:[#allocation2 + $0x690] sm:$0xff]
    %v292 = vld [vmem:[#allocation2 + $0x698] sm:$0xff]
    %v293 = vld [vmem:[#allocation2 + $0x6a0] sm:$0xff]
    %v294 = vld [vmem:[#allocation2 + $0x6a8] sm:$0xff]
    %v295 = vld [vmem:[#allocation2 + $0x6b0] sm:$0xff]
    %v296 = vld [vmem:[#allocation2 + $0x6b8] sm:$0xff]
    %v297 = vld [vmem:[#allocation2 + $0x6c0] sm:$0xff]
    %v298 = vld [vmem:[#allocation2 + $0x6c8] sm:$0xff]
    %v299 = vld [vmem:[#allocation2 + $0x6d0] sm:$0xff]
    %v300 = vld [vmem:[#allocation2 + $0x6d8] sm:$0xff]
    %v301 = vld [vmem:[#allocation2 + $0x6e0] sm:$0xff]
    %v302 = vld [vmem:[#allocation2 + $0x6e8] sm:$0xff]
    %v303 = vld [vmem:[#allocation2 + $0x6f0] sm:$0xff]
    %v304 = vld [vmem:[#allocation2 + $0x6f8] sm:$0xff]
    %v305 = vld [vmem:[#allocation2 + $0x700] sm:$0xff]
    %v306 = vld [vmem:[#allocation2 + $0x708] sm:$0xff]
    %v307 = vld [vmem:[#allocation2 + $0x710] sm:$0xff]
    %v308 = vld [vmem:[#allocation2 + $0x718] sm:$0xff]
    %v309 = vld [vmem:[#allocation2 + $0x720] sm:$0xff]
    %v310 = vld [vmem:[#allocation2 + $0x728] sm:$0xff]
    %v311 = vld [vmem:[#allocation2 + $0x730] sm:$0xff]
    %v312 = vld [vmem:[#allocation2 + $0x738] sm:$0xff]
    %v313 = vld [vmem:[#allocation2 + $0x740] sm:$0xff]
    %v314 = vld [vmem:[#allocation2 + $0x748] sm:$0xff]
    %v315 = vld [vmem:[#allocation2 + $0x750] sm:$0xff]
    %v316 = vld [vmem:[#allocation2 + $0x758] sm:$0xff]
    %v317 = vld [vmem:[#allocation2 + $0x760] sm:$0xff]
    %v318 = vld [vmem:[#allocation2 + $0x768] sm:$0xff]
    %v319 = vld [vmem:[#allocation2 + $0x770] sm:$0xff]
    %v320 = vld [vmem:[#allocation2 + $0x778] sm:$0xff]
    %v321 = vld [vmem:[#allocation2 + $0x780] sm:$0xff]
    %v322 = vld [vmem:[#allocation2 + $0x788] sm:$0xff]
    %v323 = vld [vmem:[#allocation2 + $0x790] sm:$0xff]
    %v324 = vld [vmem:[#allocation2 + $0x798] sm:$0xff]
    %v325 = vld [vmem:[#allocation2 + $0x7a0] sm:$0xff]
    %v326 = vld [vmem:[#allocation2 + $0x7a8] sm:$0xff]
    %v327 = vld [vmem:[#allocation2 + $0x7b0] sm:$0xff]
    %v328 = vld [vmem:[#allocation2 + $0x7b8] sm:$0xff]
    %v329 = vld [vmem:[#allocation2 + $0x7c0] sm:$0xff]
    %v330 = vld [vmem:[#allocation2 + $0x7c8] sm:$0xff]
    %v331 = vld [vmem:[#allocation2 + $0x7d0] sm:$0xff]
    %v332 = vld [vmem:[#allocation2 + $0x7d8] sm:$0xff]
    %v333 = vld [vmem:[#allocation2 + $0x7e0] sm:$0xff]
    %v334 = vld [vmem:[#allocation2 + $0x7e8] sm:$0xff]
    %v335 = vld [vmem:[#allocation2 + $0x7f0] sm:$0xff]
    %v336 = vld [vmem:[#allocation2 + $0x7f8] sm:$0xff]
    %v337 = vld [vmem:[#allocation2 + $0x800] sm:$0xff]
    %v338 = vld [vmem:[#allocation2 + $0x808] sm:$0xff]
    %v339 = vld [vmem:[#allocation2 + $0x810] sm:$0xff]
    %v340 = vld [vmem:[#allocation2 + $0x818] sm:$0xff]
    %v341 = vld [vmem:[#allocation2 + $0x820] sm:$0xff]
    %v342 = vld [vmem:[#allocation2 + $0x828] sm:$0xff]
    %v343 = vld [vmem:[#allocation2 + $0x830] sm:$0xff]
    %v344 = vld [vmem:[#allocation2 + $0x838] sm:$0xff]
    %v345 = vld [vmem:[#allocation2 + $0x840] sm:$0xff]
    %v346 = vld [vmem:[#allocation2 + $0x848] sm:$0xff]
    %v347 = vld [vmem:[#allocation2 + $0x850] sm:$0xff]
    %v348 = vld [vmem:[#allocation2 + $0x858] sm:$0xff]
    %v349 = vld [vmem:[#allocation2 + $0x860] sm:$0xff]
    %v350 = vld [vmem:[#allocation2 + $0x868] sm:$0xff]
    %v351 = vld [vmem:[#allocation2 + $0x870] sm:$0xff]
    %v352 = vld [vmem:[#allocation2 + $0x878] sm:$0xff]
    %v353 = vld [vmem:[#allocation2 + $0x880] sm:$0xff]
    %v354 = vld [vmem:[#allocation2 + $0x888] sm:$0xff]
    %v355 = vld [vmem:[#allocation2 + $0x890] sm:$0xff]
    %v356 = vld [vmem:[#allocation2 + $0x898] sm:$0xff]
    %v357 = vld [vmem:[#allocation2 + $0x8a0] sm:$0xff]
    %v358 = vld [vmem:[#allocation2 + $0x8a8] sm:$0xff]
    %v359 = vld [vmem:[#allocation2 + $0x8b0] sm:$0xff]
    %v360 = vld [vmem:[#allocation2 + $0x8b8] sm:$0xff]
    %v361 = vld [vmem:[#allocation2 + $0x8c0] sm:$0xff]
    %v362 = vld [vmem:[#allocation2 + $0x8c8] sm:$0xff]
    %v363 = vld [vmem:[#allocation2 + $0x8d0] sm:$0xff]
    %v364 = vld [vmem:[#allocation2 + $0x8d8] sm:$0xff]
    %v365 = vld [vmem:[#allocation2 + $0x8e0] sm:$0xff]
    %v366 = vld [vmem:[#allocation2 + $0x8e8] sm:$0xff]
    %v367 = vld [vmem:[#allocation2 + $0x8f0] sm:$0xff]
    %v368 = vld [vmem:[#allocation2 + $0x8f8] sm:$0xff]
    %v369 = vld [vmem:[#allocation2 + $0x900] sm:$0xff]
    %v370 = vld [vmem:[#allocation2 + $0x908] sm:$0xff]
    %v371 = vld [vmem:[#allocation2 + $0x910] sm:$0xff]
    %v372 = vld [vmem:[#allocation2 + $0x918] sm:$0xff]
    %v373 = vld [vmem:[#allocation2 + $0x920] sm:$0xff]
    %v374 = vld [vmem:[#allocation2 + $0x928] sm:$0xff]
    %v375 = vld [vmem:[#allocation2 + $0x930] sm:$0xff]
    %v376 = vld [vmem:[#allocation2 + $0x938] sm:$0xff]
    %v377 = vld [vmem:[#allocation2 + $0x940] sm:$0xff]
    %v378 = vld [vmem:[#allocation2 + $0x948] sm:$0xff]
    %v379 = vld [vmem:[#allocation2 + $0x950] sm:$0xff]
    %v380 = vld [vmem:[#allocation2 + $0x958] sm:$0xff]
    %v381 = vld [vmem:[#allocation2 + $0x960] sm:$0xff]
    %v382 = vld [vmem:[#allocation2 + $0x968] sm:$0xff]
    %v383 = vld [vmem:[#allocation2 + $0x970] sm:$0xff]
    %v384 = vld [vmem:[#allocation2 + $0x978] sm:$0xff]
    %v385 = vld [vmem:[#allocation2 + $0x980] sm:$0xff]
    %v386 = vld [vmem:[#allocation2 + $0x988] sm:$0xff]
    %v387 = vld [vmem:[#allocation2 + $0x990] sm:$0xff]
    %v388 = vld [vmem:[#allocation2 + $0x998] sm:$0xff]
    %v389 = vld [vmem:[#allocation2 + $0x9a0] sm:$0xff]
    %v390 = vld [vmem:[#allocation2 + $0x9a8] sm:$0xff]
    %v391 = vld [vmem:[#allocation2 + $0x9b0] sm:$0xff]
    %v392 = vld [vmem:[#allocation2 + $0x9b8] sm:$0xff]
    %v393 = vld [vmem:[#allocation2 + $0x9c0] sm:$0xff]
    %v394 = vld [vmem:[#allocation2 + $0x9c8] sm:$0xff]
    %v395 = vld [vmem:[#allocation2 + $0x9d0] sm:$0xff]
    %v396 = vld [vmem:[#allocation2 + $0x9d8] sm:$0xff]
    %v397 = vld [vmem:[#allocation2 + $0x9e0] sm:$0xff]
    %v398 = vld [vmem:[#allocation2 + $0x9e8] sm:$0xff]
    %v399 = vld [vmem:[#allocation2 + $0x9f0] sm:$0xff]
    %v400 = vld [vmem:[#allocation2 + $0x9f8] sm:$0xff]
    %v401 = vld [vmem:[#allocation2 + $0xa00] sm:$0xff]
    %v402 = vld [vmem:[#allocation2 + $0xa08] sm:$0xff]
    %v403 = vld [vmem:[#allocation2 + $0xa10] sm:$0xff]
    %v404 = vld [vmem:[#allocation2 + $0xa18] sm:$0xff]
    %v405 = vld [vmem:[#allocation2 + $0xa20] sm:$0xff]
    %v406 = vld [vmem:[#allocation2 + $0xa28] sm:$0xff]
    %v407 = vld [vmem:[#allocation2 + $0xa30] sm:$0xff]
    %v408 = vld [vmem:[#allocation2 + $0xa38] sm:$0xff]
    %v409 = vld [vmem:[#allocation2 + $0xa40] sm:$0xff]
    %v410 = vld [vmem:[#allocation2 + $0xa48] sm:$0xff]
    %v411 = vld [vmem:[#allocation2 + $0xa50] sm:$0xff]
    %v412 = vld [vmem:[#allocation2 + $0xa58] sm:$0xff]
    %v413 = vld [vmem:[#allocation2 + $0xa60] sm:$0xff]
    %v414 = vld [vmem:[#allocation2 + $0xa68] sm:$0xff]
    %v415 = vld [vmem:[#allocation2 + $0xa70] sm:$0xff]
    %v416 = vld [vmem:[#allocation2 + $0xa78] sm:$0xff]
    %v417 = vld [vmem:[#allocation2 + $0xa80] sm:$0xff]
    %v418 = vld [vmem:[#allocation2 + $0xa88] sm:$0xff]
    %v419 = vld [vmem:[#allocation2 + $0xa90] sm:$0xff]
    %v420 = vld [vmem:[#allocation2 + $0xa98] sm:$0xff]
    %v421 = vld [vmem:[#allocation2 + $0xaa0] sm:$0xff]
    %v422 = vld [vmem:[#allocation2 + $0xaa8] sm:$0xff]
    %v423 = vld [vmem:[#allocation2 + $0xab0] sm:$0xff]
    %v424 = vld [vmem:[#allocation2 + $0xab8] sm:$0xff]
    %v425 = vld [vmem:[#allocation2 + $0xac0] sm:$0xff]
    %v426 = vld [vmem:[#allocation2 + $0xac8] sm:$0xff]
    %v427 = vld [vmem:[#allocation2 + $0xad0] sm:$0xff]
    %v428 = vld [vmem:[#allocation2 + $0xad8] sm:$0xff]
    %v429 = vld [vmem:[#allocation2 + $0xae0] sm:$0xff]
    %v430 = vld [vmem:[#allocation2 + $0xae8] sm:$0xff]
    %v431 = vld [vmem:[#allocation2 + $0xaf0] sm:$0xff]
    %v432 = vld [vmem:[#allocation2 + $0xaf8] sm:$0xff]
    %v433 = vld [vmem:[#allocation2 + $0xb00] sm:$0xff]
    %v434 = vld [vmem:[#allocation2 + $0xb08] sm:$0xff]
    %v435 = vld [vmem:[#allocation2 + $0xb10] sm:$0xff]
    %v436 = vld [vmem:[#allocation2 + $0xb18] sm:$0xff]
    %v437 = vld [vmem:[#allocation2 + $0xb20] sm:$0xff]
    %v438 = vld [vmem:[#allocation2 + $0xb28] sm:$0xff]
    %v439 = vld [vmem:[#allocation2 + $0xb30] sm:$0xff]
    %v440 = vld [vmem:[#allocation2 + $0xb38] sm:$0xff]
    %v441 = vld [vmem:[#allocation2 + $0xb40] sm:$0xff]
    %v442 = vld [vmem:[#allocation2 + $0xb48] sm:$0xff]
    %v443 = vld [vmem:[#allocation2 + $0xb50] sm:$0xff]
    %v444 = vld [vmem:[#allocation2 + $0xb58] sm:$0xff]
    %v445 = vld [vmem:[#allocation2 + $0xb60] sm:$0xff]
    %v446 = vld [vmem:[#allocation2 + $0xb68] sm:$0xff]
    %v447 = vld [vmem:[#allocation2 + $0xb70] sm:$0xff]
    %v448 = vld [vmem:[#allocation2 + $0xb78] sm:$0xff]
    %v449 = vld [vmem:[#allocation2 + $0xb80] sm:$0xff]
    %v450 = vld [vmem:[#allocation2 + $0xb88] sm:$0xff]
    %v451 = vld [vmem:[#allocation2 + $0xb90] sm:$0xff]
    %v452 = vld [vmem:[#allocation2 + $0xb98] sm:$0xff]
    %v453 = vld [vmem:[#allocation2 + $0xba0] sm:$0xff]
    %v454 = vld [vmem:[#allocation2 + $0xba8] sm:$0xff]
    %v455 = vld [vmem:[#allocation2 + $0xbb0] sm:$0xff]
    %v456 = vld [vmem:[#allocation2 + $0xbb8] sm:$0xff]
    %v457 = vld [vmem:[#allocation2 + $0xbc0] sm:$0xff]
    %v458 = vld [vmem:[#allocation2 + $0xbc8] sm:$0xff]
    %v459 = vld [vmem:[#allocation2 + $0xbd0] sm:$0xff]
    %v460 = vld [vmem:[#allocation2 + $0xbd8] sm:$0xff]
    %v461 = vld [vmem:[#allocation2 + $0xbe0] sm:$0xff]
    %v462 = vld [vmem:[#allocation2 + $0xbe8] sm:$0xff]
    %v463 = vld [vmem:[#allocation2 + $0xbf0] sm:$0xff]
    %v464 = vld [vmem:[#allocation2 + $0xbf8] sm:$0xff]
    %v465 = vunpack.c.l.bf16 %v81
    %v466 = vunpack.c.h.bf16 %v81
    %v467 = vunpack.c.l.bf16 %v82
    %v468 = vunpack.c.h.bf16 %v82
    %v469 = vunpack.c.l.bf16 %v83
    %v470 = vunpack.c.h.bf16 %v83
    %v471 = vunpack.c.l.bf16 %v84
    %v472 = vunpack.c.h.bf16 %v84
    %v473 = vunpack.c.l.bf16 %v85
    %v474 = vunpack.c.h.bf16 %v85
    %v475 = vunpack.c.l.bf16 %v86
    %v476 = vunpack.c.h.bf16 %v86
    %v477 = vunpack.c.l.bf16 %v87
    %v478 = vunpack.c.h.bf16 %v87
    %v479 = vunpack.c.l.bf16 %v88
    %v480 = vunpack.c.h.bf16 %v88
    %v481 = vunpack.c.l.bf16 %v89
    %v482 = vunpack.c.h.bf16 %v89
    %v483 = vunpack.c.l.bf16 %v90
    %v484 = vunpack.c.h.bf16 %v90
    %v485 = vunpack.c.l.bf16 %v91
    %v486 = vunpack.c.h.bf16 %v91
    %v487 = vunpack.c.l.bf16 %v92
    %v488 = vunpack.c.h.bf16 %v92
    %v489 = vunpack.c.l.bf16 %v93
    %v490 = vunpack.c.h.bf16 %v93
    %v491 = vunpack.c.l.bf16 %v94
    %v492 = vunpack.c.h.bf16 %v94
    %v493 = vunpack.c.l.bf16 %v95
    %v494 = vunpack.c.h.bf16 %v95
    %v495 = vunpack.c.l.bf16 %v96
    %v496 = vunpack.c.h.bf16 %v96
    %v497 = vunpack.c.l.bf16 %v97
    %v498 = vunpack.c.h.bf16 %v97
    %v499 = vunpack.c.l.bf16 %v98
    %v500 = vunpack.c.h.bf16 %v98
    %v501 = vunpack.c.l.bf16 %v99
    %v502 = vunpack.c.h.bf16 %v99
    %v503 = vunpack.c.l.bf16 %v100
    %v504 = vunpack.c.h.bf16 %v100
    %v505 = vunpack.c.l.bf16 %v101
    %v506 = vunpack.c.h.bf16 %v101
    %v507 = vunpack.c.l.bf16 %v102
    %v508 = vunpack.c.h.bf16 %v102
    %v509 = vunpack.c.l.bf16 %v103
    %v510 = vunpack.c.h.bf16 %v103
    %v511 = vunpack.c.l.bf16 %v104
    %v512 = vunpack.c.h.bf16 %v104
    %v513 = vunpack.c.l.bf16 %v105
    %v514 = vunpack.c.h.bf16 %v105
    %v515 = vunpack.c.l.bf16 %v106
    %v516 = vunpack.c.h.bf16 %v106
    %v517 = vunpack.c.l.bf16 %v107
    %v518 = vunpack.c.h.bf16 %v107
    %v519 = vunpack.c.l.bf16 %v108
    %v520 = vunpack.c.h.bf16 %v108
    %v521 = vunpack.c.l.bf16 %v109
    %v522 = vunpack.c.h.bf16 %v109
    %v523 = vunpack.c.l.bf16 %v110
    %v524 = vunpack.c.h.bf16 %v110
    %v525 = vunpack.c.l.bf16 %v111
    %v526 = vunpack.c.h.bf16 %v111
    %v527 = vunpack.c.l.bf16 %v112
    %v528 = vunpack.c.h.bf16 %v112
    %v529 = vunpack.c.l.bf16 %v113
    %v530 = vunpack.c.h.bf16 %v113
    %v531 = vunpack.c.l.bf16 %v114
    %v532 = vunpack.c.h.bf16 %v114
    %v533 = vunpack.c.l.bf16 %v115
    %v534 = vunpack.c.h.bf16 %v115
    %v535 = vunpack.c.l.bf16 %v116
    %v536 = vunpack.c.h.bf16 %v116
    %v537 = vunpack.c.l.bf16 %v117
    %v538 = vunpack.c.h.bf16 %v117
    %v539 = vunpack.c.l.bf16 %v118
    %v540 = vunpack.c.h.bf16 %v118
    %v541 = vunpack.c.l.bf16 %v119
    %v542 = vunpack.c.h.bf16 %v119
    %v543 = vunpack.c.l.bf16 %v120
    %v544 = vunpack.c.h.bf16 %v120
    %v545 = vunpack.c.l.bf16 %v121
    %v546 = vunpack.c.h.bf16 %v121
    %v547 = vunpack.c.l.bf16 %v122
    %v548 = vunpack.c.h.bf16 %v122
    %v549 = vunpack.c.l.bf16 %v123
    %v550 = vunpack.c.h.bf16 %v123
    %v551 = vunpack.c.l.bf16 %v124
    %v552 = vunpack.c.h.bf16 %v124
    %v553 = vunpack.c.l.bf16 %v125
    %v554 = vunpack.c.h.bf16 %v125
    %v555 = vunpack.c.l.bf16 %v126
    %v556 = vunpack.c.h.bf16 %v126
    %v557 = vunpack.c.l.bf16 %v127
    %v558 = vunpack.c.h.bf16 %v127
    %v559 = vunpack.c.l.bf16 %v128
    %v560 = vunpack.c.h.bf16 %v128
    %v561 = vunpack.c.l.bf16 %v129
    %v562 = vunpack.c.h.bf16 %v129
    %v563 = vunpack.c.l.bf16 %v130
    %v564 = vunpack.c.h.bf16 %v130
    %v565 = vunpack.c.l.bf16 %v131
    %v566 = vunpack.c.h.bf16 %v131
    %v567 = vunpack.c.l.bf16 %v132
    %v568 = vunpack.c.h.bf16 %v132
    %v569 = vunpack.c.l.bf16 %v133
    %v570 = vunpack.c.h.bf16 %v133
    %v571 = vunpack.c.l.bf16 %v134
    %v572 = vunpack.c.h.bf16 %v134
    %v573 = vunpack.c.l.bf16 %v135
    %v574 = vunpack.c.h.bf16 %v135
    %v575 = vunpack.c.l.bf16 %v136
    %v576 = vunpack.c.h.bf16 %v136
    %v577 = vunpack.c.l.bf16 %v137
    %v578 = vunpack.c.h.bf16 %v137
    %v579 = vunpack.c.l.bf16 %v138
    %v580 = vunpack.c.h.bf16 %v138
    %v581 = vunpack.c.l.bf16 %v139
    %v582 = vunpack.c.h.bf16 %v139
    %v583 = vunpack.c.l.bf16 %v140
    %v584 = vunpack.c.h.bf16 %v140
    %v585 = vunpack.c.l.bf16 %v141
    %v586 = vunpack.c.h.bf16 %v141
    %v587 = vunpack.c.l.bf16 %v142
    %v588 = vunpack.c.h.bf16 %v142
    %v589 = vunpack.c.l.bf16 %v143
    %v590 = vunpack.c.h.bf16 %v143
    %v591 = vunpack.c.l.bf16 %v144
    %v592 = vunpack.c.h.bf16 %v144
    %v593 = vunpack.c.l.bf16 %v145
    %v594 = vunpack.c.h.bf16 %v145
    %v595 = vunpack.c.l.bf16 %v146
    %v596 = vunpack.c.h.bf16 %v146
    %v597 = vunpack.c.l.bf16 %v147
    %v598 = vunpack.c.h.bf16 %v147
    %v599 = vunpack.c.l.bf16 %v148
    %v600 = vunpack.c.h.bf16 %v148
    %v601 = vunpack.c.l.bf16 %v149
    %v602 = vunpack.c.h.bf16 %v149
    %v603 = vunpack.c.l.bf16 %v150
    %v604 = vunpack.c.h.bf16 %v150
    %v605 = vunpack.c.l.bf16 %v151
    %v606 = vunpack.c.h.bf16 %v151
    %v607 = vunpack.c.l.bf16 %v152
    %v608 = vunpack.c.h.bf16 %v152
    %v609 = vunpack.c.l.bf16 %v153
    %v610 = vunpack.c.h.bf16 %v153
    %v611 = vunpack.c.l.bf16 %v154
    %v612 = vunpack.c.h.bf16 %v154
    %v613 = vunpack.c.l.bf16 %v155
    %v614 = vunpack.c.h.bf16 %v155
    %v615 = vunpack.c.l.bf16 %v156
    %v616 = vunpack.c.h.bf16 %v156
    %v617 = vunpack.c.l.bf16 %v157
    %v618 = vunpack.c.h.bf16 %v157
    %v619 = vunpack.c.l.bf16 %v158
    %v620 = vunpack.c.h.bf16 %v158
    %v621 = vunpack.c.l.bf16 %v159
    %v622 = vunpack.c.h.bf16 %v159
    %v623 = vunpack.c.l.bf16 %v160
    %v624 = vunpack.c.h.bf16 %v160
    %v625 = vunpack.c.l.bf16 %v161
    %v626 = vunpack.c.h.bf16 %v161
    %v627 = vunpack.c.l.bf16 %v162
    %v628 = vunpack.c.h.bf16 %v162
    %v629 = vunpack.c.l.bf16 %v163
    %v630 = vunpack.c.h.bf16 %v163
    %v631 = vunpack.c.l.bf16 %v164
    %v632 = vunpack.c.h.bf16 %v164
    %v633 = vunpack.c.l.bf16 %v165
    %v634 = vunpack.c.h.bf16 %v165
    %v635 = vunpack.c.l.bf16 %v166
    %v636 = vunpack.c.h.bf16 %v166
    %v637 = vunpack.c.l.bf16 %v167
    %v638 = vunpack.c.h.bf16 %v167
    %v639 = vunpack.c.l.bf16 %v168
    %v640 = vunpack.c.h.bf16 %v168
    %v641 = vunpack.c.l.bf16 %v169
    %v642 = vunpack.c.h.bf16 %v169
    %v643 = vunpack.c.l.bf16 %v170
    %v644 = vunpack.c.h.bf16 %v170
    %v645 = vunpack.c.l.bf16 %v171
    %v646 = vunpack.c.h.bf16 %v171
    %v647 = vunpack.c.l.bf16 %v172
    %v648 = vunpack.c.h.bf16 %v172
    %v649 = vunpack.c.l.bf16 %v173
    %v650 = vunpack.c.h.bf16 %v173
    %v651 = vunpack.c.l.bf16 %v174
    %v652 = vunpack.c.h.bf16 %v174
    %v653 = vunpack.c.l.bf16 %v175
    %v654 = vunpack.c.h.bf16 %v175
    %v655 = vunpack.c.l.bf16 %v176
    %v656 = vunpack.c.h.bf16 %v176
    %v657 = vunpack.c.l.bf16 %v177
    %v658 = vunpack.c.h.bf16 %v177
    %v659 = vunpack.c.l.bf16 %v178
    %v660 = vunpack.c.h.bf16 %v178
    %v661 = vunpack.c.l.bf16 %v179
    %v662 = vunpack.c.h.bf16 %v179
    %v663 = vunpack.c.l.bf16 %v180
    %v664 = vunpack.c.h.bf16 %v180
    %v665 = vunpack.c.l.bf16 %v181
    %v666 = vunpack.c.h.bf16 %v181
    %v667 = vunpack.c.l.bf16 %v182
    %v668 = vunpack.c.h.bf16 %v182
    %v669 = vunpack.c.l.bf16 %v183
    %v670 = vunpack.c.h.bf16 %v183
    %v671 = vunpack.c.l.bf16 %v184
    %v672 = vunpack.c.h.bf16 %v184
    %v673 = vunpack.c.l.bf16 %v185
    %v674 = vunpack.c.h.bf16 %v185
    %v675 = vunpack.c.l.bf16 %v186
    %v676 = vunpack.c.h.bf16 %v186
    %v677 = vunpack.c.l.bf16 %v187
    %v678 = vunpack.c.h.bf16 %v187
    %v679 = vunpack.c.l.bf16 %v188
    %v680 = vunpack.c.h.bf16 %v188
    %v681 = vunpack.c.l.bf16 %v189
    %v682 = vunpack.c.h.bf16 %v189
    %v683 = vunpack.c.l.bf16 %v190
    %v684 = vunpack.c.h.bf16 %v190
    %v685 = vunpack.c.l.bf16 %v191
    %v686 = vunpack.c.h.bf16 %v191
    %v687 = vunpack.c.l.bf16 %v192
    %v688 = vunpack.c.h.bf16 %v192
    %v689 = vunpack.c.l.bf16 %v193
    %v690 = vunpack.c.h.bf16 %v193
    %v691 = vunpack.c.l.bf16 %v194
    %v692 = vunpack.c.h.bf16 %v194
    %v693 = vunpack.c.l.bf16 %v195
    %v694 = vunpack.c.h.bf16 %v195
    %v695 = vunpack.c.l.bf16 %v196
    %v696 = vunpack.c.h.bf16 %v196
    %v697 = vunpack.c.l.bf16 %v197
    %v698 = vunpack.c.h.bf16 %v197
    %v699 = vunpack.c.l.bf16 %v198
    %v700 = vunpack.c.h.bf16 %v198
    %v701 = vunpack.c.l.bf16 %v199
    %v702 = vunpack.c.h.bf16 %v199
    %v703 = vunpack.c.l.bf16 %v200
    %v704 = vunpack.c.h.bf16 %v200
    %v705 = vunpack.c.l.bf16 %v201
    %v706 = vunpack.c.h.bf16 %v201
    %v707 = vunpack.c.l.bf16 %v202
    %v708 = vunpack.c.h.bf16 %v202
    %v709 = vunpack.c.l.bf16 %v203
    %v710 = vunpack.c.h.bf16 %v203
    %v711 = vunpack.c.l.bf16 %v204
    %v712 = vunpack.c.h.bf16 %v204
    %v713 = vunpack.c.l.bf16 %v205
    %v714 = vunpack.c.h.bf16 %v205
    %v715 = vunpack.c.l.bf16 %v206
    %v716 = vunpack.c.h.bf16 %v206
    %v717 = vunpack.c.l.bf16 %v207
    %v718 = vunpack.c.h.bf16 %v207
    %v719 = vunpack.c.l.bf16 %v208
    %v720 = vunpack.c.h.bf16 %v208
    %v721 = vunpack.c.l.bf16 %v209
    %v722 = vunpack.c.h.bf16 %v209
    %v723 = vunpack.c.l.bf16 %v210
    %v724 = vunpack.c.h.bf16 %v210
    %v725 = vunpack.c.l.bf16 %v211
    %v726 = vunpack.c.h.bf16 %v211
    %v727 = vunpack.c.l.bf16 %v212
    %v728 = vunpack.c.h.bf16 %v212
    %v729 = vunpack.c.l.bf16 %v213
    %v730 = vunpack.c.h.bf16 %v213
    %v731 = vunpack.c.l.bf16 %v214
    %v732 = vunpack.c.h.bf16 %v214
    %v733 = vunpack.c.l.bf16 %v215
    %v734 = vunpack.c.h.bf16 %v215
    %v735 = vunpack.c.l.bf16 %v216
    %v736 = vunpack.c.h.bf16 %v216
    %v737 = vunpack.c.l.bf16 %v217
    %v738 = vunpack.c.h.bf16 %v217
    %v739 = vunpack.c.l.bf16 %v218
    %v740 = vunpack.c.h.bf16 %v218
    %v741 = vunpack.c.l.bf16 %v219
    %v742 = vunpack.c.h.bf16 %v219
    %v743 = vunpack.c.l.bf16 %v220
    %v744 = vunpack.c.h.bf16 %v220
    %v745 = vunpack.c.l.bf16 %v221
    %v746 = vunpack.c.h.bf16 %v221
    %v747 = vunpack.c.l.bf16 %v222
    %v748 = vunpack.c.h.bf16 %v222
    %v749 = vunpack.c.l.bf16 %v223
    %v750 = vunpack.c.h.bf16 %v223
    %v751 = vunpack.c.l.bf16 %v224
    %v752 = vunpack.c.h.bf16 %v224
    %v753 = vunpack.c.l.bf16 %v225
    %v754 = vunpack.c.h.bf16 %v225
    %v755 = vunpack.c.l.bf16 %v226
    %v756 = vunpack.c.h.bf16 %v226
    %v757 = vunpack.c.l.bf16 %v227
    %v758 = vunpack.c.h.bf16 %v227
    %v759 = vunpack.c.l.bf16 %v228
    %v760 = vunpack.c.h.bf16 %v228
    %v761 = vunpack.c.l.bf16 %v229
    %v762 = vunpack.c.h.bf16 %v229
    %v763 = vunpack.c.l.bf16 %v230
    %v764 = vunpack.c.h.bf16 %v230
    %v765 = vunpack.c.l.bf16 %v231
    %v766 = vunpack.c.h.bf16 %v231
    %v767 = vunpack.c.l.bf16 %v232
    %v768 = vunpack.c.h.bf16 %v232
    %v769 = vunpack.c.l.bf16 %v233
    %v770 = vunpack.c.h.bf16 %v233
    %v771 = vunpack.c.l.bf16 %v234
    %v772 = vunpack.c.h.bf16 %v234
    %v773 = vunpack.c.l.bf16 %v235
    %v774 = vunpack.c.h.bf16 %v235
    %v775 = vunpack.c.l.bf16 %v236
    %v776 = vunpack.c.h.bf16 %v236
    %v777 = vunpack.c.l.bf16 %v237
    %v778 = vunpack.c.h.bf16 %v237
    %v779 = vunpack.c.l.bf16 %v238
    %v780 = vunpack.c.h.bf16 %v238
    %v781 = vunpack.c.l.bf16 %v239
    %v782 = vunpack.c.h.bf16 %v239
    %v783 = vunpack.c.l.bf16 %v240
    %v784 = vunpack.c.h.bf16 %v240
    %v785 = vunpack.c.l.bf16 %v241
    %v786 = vunpack.c.h.bf16 %v241
    %v787 = vunpack.c.l.bf16 %v242
    %v788 = vunpack.c.h.bf16 %v242
    %v789 = vunpack.c.l.bf16 %v243
    %v790 = vunpack.c.h.bf16 %v243
    %v791 = vunpack.c.l.bf16 %v244
    %v792 = vunpack.c.h.bf16 %v244
    %v793 = vunpack.c.l.bf16 %v245
    %v794 = vunpack.c.h.bf16 %v245
    %v795 = vunpack.c.l.bf16 %v246
    %v796 = vunpack.c.h.bf16 %v246
    %v797 = vunpack.c.l.bf16 %v247
    %v798 = vunpack.c.h.bf16 %v247
    %v799 = vunpack.c.l.bf16 %v248
    %v800 = vunpack.c.h.bf16 %v248
    %v801 = vunpack.c.l.bf16 %v249
    %v802 = vunpack.c.h.bf16 %v249
    %v803 = vunpack.c.l.bf16 %v250
    %v804 = vunpack.c.h.bf16 %v250
    %v805 = vunpack.c.l.bf16 %v251
    %v806 = vunpack.c.h.bf16 %v251
    %v807 = vunpack.c.l.bf16 %v252
    %v808 = vunpack.c.h.bf16 %v252
    %v809 = vunpack.c.l.bf16 %v253
    %v810 = vunpack.c.h.bf16 %v253
    %v811 = vunpack.c.l.bf16 %v254
    %v812 = vunpack.c.h.bf16 %v254
    %v813 = vunpack.c.l.bf16 %v255
    %v814 = vunpack.c.h.bf16 %v255
    %v815 = vunpack.c.l.bf16 %v256
    %v816 = vunpack.c.h.bf16 %v256
    %v817 = vunpack.c.l.bf16 %v257
    %v818 = vunpack.c.h.bf16 %v257
    %v819 = vunpack.c.l.bf16 %v258
    %v820 = vunpack.c.h.bf16 %v258
    %v821 = vunpack.c.l.bf16 %v259
    %v822 = vunpack.c.h.bf16 %v259
    %v823 = vunpack.c.l.bf16 %v260
    %v824 = vunpack.c.h.bf16 %v260
    %v825 = vunpack.c.l.bf16 %v261
    %v826 = vunpack.c.h.bf16 %v261
    %v827 = vunpack.c.l.bf16 %v262
    %v828 = vunpack.c.h.bf16 %v262
    %v829 = vunpack.c.l.bf16 %v263
    %v830 = vunpack.c.h.bf16 %v263
    %v831 = vunpack.c.l.bf16 %v264
    %v832 = vunpack.c.h.bf16 %v264
    %v833 = vunpack.c.l.bf16 %v265
    %v834 = vunpack.c.h.bf16 %v265
    %v835 = vunpack.c.l.bf16 %v266
    %v836 = vunpack.c.h.bf16 %v266
    %v837 = vunpack.c.l.bf16 %v267
    %v838 = vunpack.c.h.bf16 %v267
    %v839 = vunpack.c.l.bf16 %v268
    %v840 = vunpack.c.h.bf16 %v268
    %v841 = vunpack.c.l.bf16 %v269
    %v842 = vunpack.c.h.bf16 %v269
    %v843 = vunpack.c.l.bf16 %v270
    %v844 = vunpack.c.h.bf16 %v270
    %v845 = vunpack.c.l.bf16 %v271
    %v846 = vunpack.c.h.bf16 %v271
    %v847 = vunpack.c.l.bf16 %v272
    %v848 = vunpack.c.h.bf16 %v272
    %v849 = vunpack.c.l.bf16 %v273
    %v850 = vunpack.c.h.bf16 %v273
    %v851 = vunpack.c.l.bf16 %v274
    %v852 = vunpack.c.h.bf16 %v274
    %v853 = vunpack.c.l.bf16 %v275
    %v854 = vunpack.c.h.bf16 %v275
    %v855 = vunpack.c.l.bf16 %v276
    %v856 = vunpack.c.h.bf16 %v276
    %v857 = vunpack.c.l.bf16 %v277
    %v858 = vunpack.c.h.bf16 %v277
    %v859 = vunpack.c.l.bf16 %v278
    %v860 = vunpack.c.h.bf16 %v278
    %v861 = vunpack.c.l.bf16 %v279
    %v862 = vunpack.c.h.bf16 %v279
    %v863 = vunpack.c.l.bf16 %v280
    %v864 = vunpack.c.h.bf16 %v280
    %v865 = vunpack.c.l.bf16 %v281
    %v866 = vunpack.c.h.bf16 %v281
    %v867 = vunpack.c.l.bf16 %v282
    %v868 = vunpack.c.h.bf16 %v282
    %v869 = vunpack.c.l.bf16 %v283
    %v870 = vunpack.c.h.bf16 %v283
    %v871 = vunpack.c.l.bf16 %v284
    %v872 = vunpack.c.h.bf16 %v284
    %v873 = vunpack.c.l.bf16 %v285
    %v874 = vunpack.c.h.bf16 %v285
    %v875 = vunpack.c.l.bf16 %v286
    %v876 = vunpack.c.h.bf16 %v286
    %v877 = vunpack.c.l.bf16 %v287
    %v878 = vunpack.c.h.bf16 %v287
    %v879 = vunpack.c.l.bf16 %v288
    %v880 = vunpack.c.h.bf16 %v288
    %v881 = vunpack.c.l.bf16 %v289
    %v882 = vunpack.c.h.bf16 %v289
    %v883 = vunpack.c.l.bf16 %v290
    %v884 = vunpack.c.h.bf16 %v290
    %v885 = vunpack.c.l.bf16 %v291
    %v886 = vunpack.c.h.bf16 %v291
    %v887 = vunpack.c.l.bf16 %v292
    %v888 = vunpack.c.h.bf16 %v292
    %v889 = vunpack.c.l.bf16 %v293
    %v890 = vunpack.c.h.bf16 %v293
    %v891 = vunpack.c.l.bf16 %v294
    %v892 = vunpack.c.h.bf16 %v294
    %v893 = vunpack.c.l.bf16 %v295
    %v894 = vunpack.c.h.bf16 %v295
    %v895 = vunpack.c.l.bf16 %v296
    %v896 = vunpack.c.h.bf16 %v296
    %v897 = vunpack.c.l.bf16 %v297
    %v898 = vunpack.c.h.bf16 %v297
    %v899 = vunpack.c.l.bf16 %v298
    %v900 = vunpack.c.h.bf16 %v298
    %v901 = vunpack.c.l.bf16 %v299
    %v902 = vunpack.c.h.bf16 %v299
    %v903 = vunpack.c.l.bf16 %v300
    %v904 = vunpack.c.h.bf16 %v300
    %v905 = vunpack.c.l.bf16 %v301
    %v906 = vunpack.c.h.bf16 %v301
    %v907 = vunpack.c.l.bf16 %v302
    %v908 = vunpack.c.h.bf16 %v302
    %v909 = vunpack.c.l.bf16 %v303
    %v910 = vunpack.c.h.bf16 %v303
    %v911 = vunpack.c.l.bf16 %v304
    %v912 = vunpack.c.h.bf16 %v304
    %v913 = vunpack.c.l.bf16 %v305
    %v914 = vunpack.c.h.bf16 %v305
    %v915 = vunpack.c.l.bf16 %v306
    %v916 = vunpack.c.h.bf16 %v306
    %v917 = vunpack.c.l.bf16 %v307
    %v918 = vunpack.c.h.bf16 %v307
    %v919 = vunpack.c.l.bf16 %v308
    %v920 = vunpack.c.h.bf16 %v308
    %v921 = vunpack.c.l.bf16 %v309
    %v922 = vunpack.c.h.bf16 %v309
    %v923 = vunpack.c.l.bf16 %v310
    %v924 = vunpack.c.h.bf16 %v310
    %v925 = vunpack.c.l.bf16 %v311
    %v926 = vunpack.c.h.bf16 %v311
    %v927 = vunpack.c.l.bf16 %v312
    %v928 = vunpack.c.h.bf16 %v312
    %v929 = vunpack.c.l.bf16 %v313
    %v930 = vunpack.c.h.bf16 %v313
    %v931 = vunpack.c.l.bf16 %v314
    %v932 = vunpack.c.h.bf16 %v314
    %v933 = vunpack.c.l.bf16 %v315
    %v934 = vunpack.c.h.bf16 %v315
    %v935 = vunpack.c.l.bf16 %v316
    %v936 = vunpack.c.h.bf16 %v316
    %v937 = vunpack.c.l.bf16 %v317
    %v938 = vunpack.c.h.bf16 %v317
    %v939 = vunpack.c.l.bf16 %v318
    %v940 = vunpack.c.h.bf16 %v318
    %v941 = vunpack.c.l.bf16 %v319
    %v942 = vunpack.c.h.bf16 %v319
    %v943 = vunpack.c.l.bf16 %v320
    %v944 = vunpack.c.h.bf16 %v320
    %v945 = vunpack.c.l.bf16 %v321
    %v946 = vunpack.c.h.bf16 %v321
    %v947 = vunpack.c.l.bf16 %v322
    %v948 = vunpack.c.h.bf16 %v322
    %v949 = vunpack.c.l.bf16 %v323
    %v950 = vunpack.c.h.bf16 %v323
    %v951 = vunpack.c.l.bf16 %v324
    %v952 = vunpack.c.h.bf16 %v324
    %v953 = vunpack.c.l.bf16 %v325
    %v954 = vunpack.c.h.bf16 %v325
    %v955 = vunpack.c.l.bf16 %v326
    %v956 = vunpack.c.h.bf16 %v326
    %v957 = vunpack.c.l.bf16 %v327
    %v958 = vunpack.c.h.bf16 %v327
    %v959 = vunpack.c.l.bf16 %v328
    %v960 = vunpack.c.h.bf16 %v328
    %v961 = vunpack.c.l.bf16 %v329
    %v962 = vunpack.c.h.bf16 %v329
    %v963 = vunpack.c.l.bf16 %v330
    %v964 = vunpack.c.h.bf16 %v330
    %v965 = vunpack.c.l.bf16 %v331
    %v966 = vunpack.c.h.bf16 %v331
    %v967 = vunpack.c.l.bf16 %v332
    %v968 = vunpack.c.h.bf16 %v332
    %v969 = vunpack.c.l.bf16 %v333
    %v970 = vunpack.c.h.bf16 %v333
    %v971 = vunpack.c.l.bf16 %v334
    %v972 = vunpack.c.h.bf16 %v334
    %v973 = vunpack.c.l.bf16 %v335
    %v974 = vunpack.c.h.bf16 %v335
    %v975 = vunpack.c.l.bf16 %v336
    %v976 = vunpack.c.h.bf16 %v336
    %v977 = vunpack.c.l.bf16 %v337
    %v978 = vunpack.c.h.bf16 %v337
    %v979 = vunpack.c.l.bf16 %v338
    %v980 = vunpack.c.h.bf16 %v338
    %v981 = vunpack.c.l.bf16 %v339
    %v982 = vunpack.c.h.bf16 %v339
    %v983 = vunpack.c.l.bf16 %v340
    %v984 = vunpack.c.h.bf16 %v340
    %v985 = vunpack.c.l.bf16 %v341
    %v986 = vunpack.c.h.bf16 %v341
    %v987 = vunpack.c.l.bf16 %v342
    %v988 = vunpack.c.h.bf16 %v342
    %v989 = vunpack.c.l.bf16 %v343
    %v990 = vunpack.c.h.bf16 %v343
    %v991 = vunpack.c.l.bf16 %v344
    %v992 = vunpack.c.h.bf16 %v344
    %v993 = vunpack.c.l.bf16 %v345
    %v994 = vunpack.c.h.bf16 %v345
    %v995 = vunpack.c.l.bf16 %v346
    %v996 = vunpack.c.h.bf16 %v346
    %v997 = vunpack.c.l.bf16 %v347
    %v998 = vunpack.c.h.bf16 %v347
    %v999 = vunpack.c.l.bf16 %v348
    %v1000 = vunpack.c.h.bf16 %v348
    %v1001 = vunpack.c.l.bf16 %v349
    %v1002 = vunpack.c.h.bf16 %v349
    %v1003 = vunpack.c.l.bf16 %v350
    %v1004 = vunpack.c.h.bf16 %v350
    %v1005 = vunpack.c.l.bf16 %v351
    %v1006 = vunpack.c.h.bf16 %v351
    %v1007 = vunpack.c.l.bf16 %v352
    %v1008 = vunpack.c.h.bf16 %v352
    %v1009 = vunpack.c.l.bf16 %v353
    %v1010 = vunpack.c.h.bf16 %v353
    %v1011 = vunpack.c.l.bf16 %v354
    %v1012 = vunpack.c.h.bf16 %v354
    %v1013 = vunpack.c.l.bf16 %v355
    %v1014 = vunpack.c.h.bf16 %v355
    %v1015 = vunpack.c.l.bf16 %v356
    %v1016 = vunpack.c.h.bf16 %v356
    %v1017 = vunpack.c.l.bf16 %v357
    %v1018 = vunpack.c.h.bf16 %v357
    %v1019 = vunpack.c.l.bf16 %v358
    %v1020 = vunpack.c.h.bf16 %v358
    %v1021 = vunpack.c.l.bf16 %v359
    %v1022 = vunpack.c.h.bf16 %v359
    %v1023 = vunpack.c.l.bf16 %v360
    %v1024 = vunpack.c.h.bf16 %v360
    %v1025 = vunpack.c.l.bf16 %v361
    %v1026 = vunpack.c.h.bf16 %v361
    %v1027 = vunpack.c.l.bf16 %v362
    %v1028 = vunpack.c.h.bf16 %v362
    %v1029 = vunpack.c.l.bf16 %v363
    %v1030 = vunpack.c.h.bf16 %v363
    %v1031 = vunpack.c.l.bf16 %v364
    %v1032 = vunpack.c.h.bf16 %v364
    %v1033 = vunpack.c.l.bf16 %v365
    %v1034 = vunpack.c.h.bf16 %v365
    %v1035 = vunpack.c.l.bf16 %v366
    %v1036 = vunpack.c.h.bf16 %v366
    %v1037 = vunpack.c.l.bf16 %v367
    %v1038 = vunpack.c.h.bf16 %v367
    %v1039 = vunpack.c.l.bf16 %v368
    %v1040 = vunpack.c.h.bf16 %v368
    %v1041 = vunpack.c.l.bf16 %v369
    %v1042 = vunpack.c.h.bf16 %v369
    %v1043 = vunpack.c.l.bf16 %v370
    %v1044 = vunpack.c.h.bf16 %v370
    %v1045 = vunpack.c.l.bf16 %v371
    %v1046 = vunpack.c.h.bf16 %v371
    %v1047 = vunpack.c.l.bf16 %v372
    %v1048 = vunpack.c.h.bf16 %v372
    %v1049 = vunpack.c.l.bf16 %v373
    %v1050 = vunpack.c.h.bf16 %v373
    %v1051 = vunpack.c.l.bf16 %v374
    %v1052 = vunpack.c.h.bf16 %v374
    %v1053 = vunpack.c.l.bf16 %v375
    %v1054 = vunpack.c.h.bf16 %v375
    %v1055 = vunpack.c.l.bf16 %v376
    %v1056 = vunpack.c.h.bf16 %v376
    %v1057 = vunpack.c.l.bf16 %v377
    %v1058 = vunpack.c.h.bf16 %v377
    %v1059 = vunpack.c.l.bf16 %v378
    %v1060 = vunpack.c.h.bf16 %v378
    %v1061 = vunpack.c.l.bf16 %v379
    %v1062 = vunpack.c.h.bf16 %v379
    %v1063 = vunpack.c.l.bf16 %v380
    %v1064 = vunpack.c.h.bf16 %v380
    %v1065 = vunpack.c.l.bf16 %v381
    %v1066 = vunpack.c.h.bf16 %v381
    %v1067 = vunpack.c.l.bf16 %v382
    %v1068 = vunpack.c.h.bf16 %v382
    %v1069 = vunpack.c.l.bf16 %v383
    %v1070 = vunpack.c.h.bf16 %v383
    %v1071 = vunpack.c.l.bf16 %v384
    %v1072 = vunpack.c.h.bf16 %v384
    %v1073 = vunpack.c.l.bf16 %v385
    %v1074 = vunpack.c.h.bf16 %v385
    %v1075 = vunpack.c.l.bf16 %v386
    %v1076 = vunpack.c.h.bf16 %v386
    %v1077 = vunpack.c.l.bf16 %v387
    %v1078 = vunpack.c.h.bf16 %v387
    %v1079 = vunpack.c.l.bf16 %v388
    %v1080 = vunpack.c.h.bf16 %v388
    %v1081 = vunpack.c.l.bf16 %v389
    %v1082 = vunpack.c.h.bf16 %v389
    %v1083 = vunpack.c.l.bf16 %v390
    %v1084 = vunpack.c.h.bf16 %v390
    %v1085 = vunpack.c.l.bf16 %v391
    %v1086 = vunpack.c.h.bf16 %v391
    %v1087 = vunpack.c.l.bf16 %v392
    %v1088 = vunpack.c.h.bf16 %v392
    %v1089 = vunpack.c.l.bf16 %v393
    %v1090 = vunpack.c.h.bf16 %v393
    %v1091 = vunpack.c.l.bf16 %v394
    %v1092 = vunpack.c.h.bf16 %v394
    %v1093 = vunpack.c.l.bf16 %v395
    %v1094 = vunpack.c.h.bf16 %v395
    %v1095 = vunpack.c.l.bf16 %v396
    %v1096 = vunpack.c.h.bf16 %v396
    %v1097 = vunpack.c.l.bf16 %v397
    %v1098 = vunpack.c.h.bf16 %v397
    %v1099 = vunpack.c.l.bf16 %v398
    %v1100 = vunpack.c.h.bf16 %v398
    %v1101 = vunpack.c.l.bf16 %v399
    %v1102 = vunpack.c.h.bf16 %v399
    %v1103 = vunpack.c.l.bf16 %v400
    %v1104 = vunpack.c.h.bf16 %v400
    %v1105 = vunpack.c.l.bf16 %v401
    %v1106 = vunpack.c.h.bf16 %v401
    %v1107 = vunpack.c.l.bf16 %v402
    %v1108 = vunpack.c.h.bf16 %v402
    %v1109 = vunpack.c.l.bf16 %v403
    %v1110 = vunpack.c.h.bf16 %v403
    %v1111 = vunpack.c.l.bf16 %v404
    %v1112 = vunpack.c.h.bf16 %v404
    %v1113 = vunpack.c.l.bf16 %v405
    %v1114 = vunpack.c.h.bf16 %v405
    %v1115 = vunpack.c.l.bf16 %v406
    %v1116 = vunpack.c.h.bf16 %v406
    %v1117 = vunpack.c.l.bf16 %v407
    %v1118 = vunpack.c.h.bf16 %v407
    %v1119 = vunpack.c.l.bf16 %v408
    %v1120 = vunpack.c.h.bf16 %v408
    %v1121 = vunpack.c.l.bf16 %v409
    %v1122 = vunpack.c.h.bf16 %v409
    %v1123 = vunpack.c.l.bf16 %v410
    %v1124 = vunpack.c.h.bf16 %v410
    %v1125 = vunpack.c.l.bf16 %v411
    %v1126 = vunpack.c.h.bf16 %v411
    %v1127 = vunpack.c.l.bf16 %v412
    %v1128 = vunpack.c.h.bf16 %v412
    %v1129 = vunpack.c.l.bf16 %v413
    %v1130 = vunpack.c.h.bf16 %v413
    %v1131 = vunpack.c.l.bf16 %v414
    %v1132 = vunpack.c.h.bf16 %v414
    %v1133 = vunpack.c.l.bf16 %v415
    %v1134 = vunpack.c.h.bf16 %v415
    %v1135 = vunpack.c.l.bf16 %v416
    %v1136 = vunpack.c.h.bf16 %v416
    %v1137 = vunpack.c.l.bf16 %v417
    %v1138 = vunpack.c.h.bf16 %v417
    %v1139 = vunpack.c.l.bf16 %v418
    %v1140 = vunpack.c.h.bf16 %v418
    %v1141 = vunpack.c.l.bf16 %v419
    %v1142 = vunpack.c.h.bf16 %v419
    %v1143 = vunpack.c.l.bf16 %v420
    %v1144 = vunpack.c.h.bf16 %v420
    %v1145 = vunpack.c.l.bf16 %v421
    %v1146 = vunpack.c.h.bf16 %v421
    %v1147 = vunpack.c.l.bf16 %v422
    %v1148 = vunpack.c.h.bf16 %v422
    %v1149 = vunpack.c.l.bf16 %v423
    %v1150 = vunpack.c.h.bf16 %v423
    %v1151 = vunpack.c.l.bf16 %v424
    %v1152 = vunpack.c.h.bf16 %v424
    %v1153 = vunpack.c.l.bf16 %v425
    %v1154 = vunpack.c.h.bf16 %v425
    %v1155 = vunpack.c.l.bf16 %v426
    %v1156 = vunpack.c.h.bf16 %v426
    %v1157 = vunpack.c.l.bf16 %v427
    %v1158 = vunpack.c.h.bf16 %v427
    %v1159 = vunpack.c.l.bf16 %v428
    %v1160 = vunpack.c.h.bf16 %v428
    %v1161 = vunpack.c.l.bf16 %v429
    %v1162 = vunpack.c.h.bf16 %v429
    %v1163 = vunpack.c.l.bf16 %v430
    %v1164 = vunpack.c.h.bf16 %v430
    %v1165 = vunpack.c.l.bf16 %v431
    %v1166 = vunpack.c.h.bf16 %v431
    %v1167 = vunpack.c.l.bf16 %v432
    %v1168 = vunpack.c.h.bf16 %v432
    %v1169 = vunpack.c.l.bf16 %v433
    %v1170 = vunpack.c.h.bf16 %v433
    %v1171 = vunpack.c.l.bf16 %v434
    %v1172 = vunpack.c.h.bf16 %v434
    %v1173 = vunpack.c.l.bf16 %v435
    %v1174 = vunpack.c.h.bf16 %v435
    %v1175 = vunpack.c.l.bf16 %v436
    %v1176 = vunpack.c.h.bf16 %v436
    %v1177 = vunpack.c.l.bf16 %v437
    %v1178 = vunpack.c.h.bf16 %v437
    %v1179 = vunpack.c.l.bf16 %v438
    %v1180 = vunpack.c.h.bf16 %v438
    %v1181 = vunpack.c.l.bf16 %v439
    %v1182 = vunpack.c.h.bf16 %v439
    %v1183 = vunpack.c.l.bf16 %v440
    %v1184 = vunpack.c.h.bf16 %v440
    %v1185 = vunpack.c.l.bf16 %v441
    %v1186 = vunpack.c.h.bf16 %v441
    %v1187 = vunpack.c.l.bf16 %v442
    %v1188 = vunpack.c.h.bf16 %v442
    %v1189 = vunpack.c.l.bf16 %v443
    %v1190 = vunpack.c.h.bf16 %v443
    %v1191 = vunpack.c.l.bf16 %v444
    %v1192 = vunpack.c.h.bf16 %v444
    %v1193 = vunpack.c.l.bf16 %v445
    %v1194 = vunpack.c.h.bf16 %v445
    %v1195 = vunpack.c.l.bf16 %v446
    %v1196 = vunpack.c.h.bf16 %v446
    %v1197 = vunpack.c.l.bf16 %v447
    %v1198 = vunpack.c.h.bf16 %v447
    %v1199 = vunpack.c.l.bf16 %v448
    %v1200 = vunpack.c.h.bf16 %v448
    %v1201 = vunpack.c.l.bf16 %v449
    %v1202 = vunpack.c.h.bf16 %v449
    %v1203 = vunpack.c.l.bf16 %v450
    %v1204 = vunpack.c.h.bf16 %v450
    %v1205 = vunpack.c.l.bf16 %v451
    %v1206 = vunpack.c.h.bf16 %v451
    %v1207 = vunpack.c.l.bf16 %v452
    %v1208 = vunpack.c.h.bf16 %v452
    %v1209 = vunpack.c.l.bf16 %v453
    %v1210 = vunpack.c.h.bf16 %v453
    %v1211 = vunpack.c.l.bf16 %v454
    %v1212 = vunpack.c.h.bf16 %v454
    %v1213 = vunpack.c.l.bf16 %v455
    %v1214 = vunpack.c.h.bf16 %v455
    %v1215 = vunpack.c.l.bf16 %v456
    %v1216 = vunpack.c.h.bf16 %v456
    %v1217 = vunpack.c.l.bf16 %v457
    %v1218 = vunpack.c.h.bf16 %v457
    %v1219 = vunpack.c.l.bf16 %v458
    %v1220 = vunpack.c.h.bf16 %v458
    %v1221 = vunpack.c.l.bf16 %v459
    %v1222 = vunpack.c.h.bf16 %v459
    %v1223 = vunpack.c.l.bf16 %v460
    %v1224 = vunpack.c.h.bf16 %v460
    %v1225 = vunpack.c.l.bf16 %v461
    %v1226 = vunpack.c.h.bf16 %v461
    %v1227 = vunpack.c.l.bf16 %v462
    %v1228 = vunpack.c.h.bf16 %v462
    %v1229 = vunpack.c.l.bf16 %v463
    %v1230 = vunpack.c.h.bf16 %v463
    %v1231 = vunpack.c.l.bf16 %v464
    %v1232 = vunpack.c.h.bf16 %v464
    %v1237 = vcombine.high %v77, %v77
    %v1238 = vcombine.high %v78, %v78
    %v1239 = vcombine.high %v79, %v79
    %v1240 = vcombine.high %v80, %v80
    %1245 = vmatprep.subr.mxu0 %v466
    %1246 = vmatpush1.msra.mxu0 %v465
    %1247 = vmatprep.subr.mxu0 %v472
    %1248 = vmatpush1.msra.mxu0 %v471
    %1249 = vmatprep.subr.mxu0 %v478
    %1250 = vmatpush1.msra.mxu0 %v477
    %1251 = vmatprep.subr.mxu0 %v484
    %1252 = vmatpush1.msra.mxu0 %v483
    %1253 = vmatprep.subr.mxu0 %v490
    %1254 = vmatpush1.msra.mxu0 %v489
    %1255 = vmatprep.subr.mxu0 %v496
    %1256 = vmatpush1.msra.mxu0 %v495
    %1257 = vmatprep.subr.mxu0 %v502
    %1258 = vmatpush1.msra.mxu0 %v501
    %1259 = vmatprep.subr.mxu0 %v508
    %1260 = vmatpush1.msra.mxu0 %v507
    %1261 = vmatprep.subr.mxu0 %v514
    %1262 = vmatpush1.msra.mxu0 %v513
    %1263 = vmatprep.subr.mxu0 %v520
    %1264 = vmatpush1.msra.mxu0 %v519
    %1265 = vmatprep.subr.mxu0 %v526
    %1266 = vmatpush1.msra.mxu0 %v525
    %1267 = vmatprep.subr.mxu0 %v532
    %1268 = vmatpush1.msra.mxu0 %v531
    %1269 = vmatprep.subr.mxu0 %v538
    %1270 = vmatpush1.msra.mxu0 %v537
    %1271 = vmatprep.subr.mxu0 %v544
    %1272 = vmatpush1.msra.mxu0 %v543
    %1273 = vmatprep.subr.mxu0 %v550
    %1274 = vmatpush1.msra.mxu0 %v549
    %1275 = vmatprep.subr.mxu0 %v556
    %1276 = vmatpush1.msra.mxu0 %v555
    %1277 = vmatprep.subr.mxu0 %v562
    %1278 = vmatpush1.msra.mxu0 %v561
    %1279 = vmatprep.subr.mxu0 %v568
    %1280 = vmatpush1.msra.mxu0 %v567
    %1281 = vmatprep.subr.mxu0 %v574
    %1282 = vmatpush1.msra.mxu0 %v573
    %1283 = vmatprep.subr.mxu0 %v580
    %1284 = vmatpush1.msra.mxu0 %v579
    %1285 = vmatprep.subr.mxu0 %v586
    %1286 = vmatpush1.msra.mxu0 %v585
    %1287 = vmatprep.subr.mxu0 %v592
    %1288 = vmatpush1.msra.mxu0 %v591
    %1289 = vmatprep.subr.mxu0 %v598
    %1290 = vmatpush1.msra.mxu0 %v597
    %1291 = vmatprep.subr.mxu0 %v604
    %1292 = vmatpush1.msra.mxu0 %v603
    %1293 = vmatprep.subr.mxu0 %v610
    %1294 = vmatpush1.msra.mxu0 %v609
    %1295 = vmatprep.subr.mxu0 %v616
    %1296 = vmatpush1.msra.mxu0 %v615
    %1297 = vmatprep.subr.mxu0 %v622
    %1298 = vmatpush1.msra.mxu0 %v621
    %1299 = vmatprep.subr.mxu0 %v628
    %1300 = vmatpush1.msra.mxu0 %v627
    %1301 = vmatprep.subr.mxu0 %v634
    %1302 = vmatpush1.msra.mxu0 %v633
    %1303 = vmatprep.subr.mxu0 %v640
    %1304 = vmatpush1.msra.mxu0 %v639
    %1305 = vmatprep.subr.mxu0 %v646
    %1306 = vmatpush1.msra.mxu0 %v645
    %1307 = vmatprep.subr.mxu0 %v652
    %1308 = vmatpush1.msra.mxu0 %v651
    %1309 = vmatprep.mubr.f32.mxu0 %v1237
    %1310 = vmatmul.mubr.f32.gmra.mrb[0].mxu0 %v77
    %v1311 = vpop.f32.mrb[0].mxu0
    %v1312 = vadd.f32 0.0, %v1311
    %v1313 = vpop.f32.mrb[0].mxu0
    %v1314 = vadd.f32 0.0, %v1313
    %1315 = vdwg.mxu0
    %1316 = vmatprep.subr.mxu0 %v658
    %1317 = vmatpush1.msra.mxu0 %v657
    %1318 = vmatprep.subr.mxu0 %v664
    %1319 = vmatpush1.msra.mxu0 %v663
    %1320 = vmatprep.subr.mxu0 %v670
    %1321 = vmatpush1.msra.mxu0 %v669
    %1322 = vmatprep.subr.mxu0 %v676
    %1323 = vmatpush1.msra.mxu0 %v675
    %1324 = vmatprep.subr.mxu0 %v682
    %1325 = vmatpush1.msra.mxu0 %v681
    %1326 = vmatprep.subr.mxu0 %v688
    %1327 = vmatpush1.msra.mxu0 %v687
    %1328 = vmatprep.subr.mxu0 %v694
    %1329 = vmatpush1.msra.mxu0 %v693
    %1330 = vmatprep.subr.mxu0 %v700
    %1331 = vmatpush1.msra.mxu0 %v699
    %1332 = vmatprep.subr.mxu0 %v706
    %1333 = vmatpush1.msra.mxu0 %v705
    %1334 = vmatprep.subr.mxu0 %v712
    %1335 = vmatpush1.msra.mxu0 %v711
    %1336 = vmatprep.subr.mxu0 %v718
    %1337 = vmatpush1.msra.mxu0 %v717
    %1338 = vmatprep.subr.mxu0 %v724
    %1339 = vmatpush1.msra.mxu0 %v723
    %1340 = vmatprep.subr.mxu0 %v730
    %1341 = vmatpush1.msra.mxu0 %v729
    %1342 = vmatprep.subr.mxu0 %v736
    %1343 = vmatpush1.msra.mxu0 %v735
    %1344 = vmatprep.subr.mxu0 %v742
    %1345 = vmatpush1.msra.mxu0 %v741
    %1346 = vmatprep.subr.mxu0 %v748
    %1347 = vmatpush1.msra.mxu0 %v747
    %1348 = vmatprep.subr.mxu0 %v754
    %1349 = vmatpush1.msra.mxu0 %v753
    %1350 = vmatprep.subr.mxu0 %v760
    %1351 = vmatpush1.msra.mxu0 %v759
    %1352 = vmatprep.subr.mxu0 %v766
    %1353 = vmatpush1.msra.mxu0 %v765
    %1354 = vmatprep.subr.mxu0 %v772
    %1355 = vmatpush1.msra.mxu0 %v771
    %1356 = vmatprep.subr.mxu0 %v778
    %1357 = vmatpush1.msra.mxu0 %v777
    %1358 = vmatprep.subr.mxu0 %v784
    %1359 = vmatpush1.msra.mxu0 %v783
    %1360 = vmatprep.subr.mxu0 %v790
    %1361 = vmatpush1.msra.mxu0 %v789
    %1362 = vmatprep.subr.mxu0 %v796
    %1363 = vmatpush1.msra.mxu0 %v795
    %1364 = vmatprep.subr.mxu0 %v802
    %1365 = vmatpush1.msra.mxu0 %v801
    %1366 = vmatprep.subr.mxu0 %v808
    %1367 = vmatpush1.msra.mxu0 %v807
    %1368 = vmatprep.subr.mxu0 %v814
    %1369 = vmatpush1.msra.mxu0 %v813
    %1370 = vmatprep.subr.mxu0 %v820
    %1371 = vmatpush1.msra.mxu0 %v819
    %1372 = vmatprep.subr.mxu0 %v826
    %1373 = vmatpush1.msra.mxu0 %v825
    %1374 = vmatprep.subr.mxu0 %v832
    %1375 = vmatpush1.msra.mxu0 %v831
    %1376 = vmatprep.subr.mxu0 %v838
    %1377 = vmatpush1.msra.mxu0 %v837
    %1378 = vmatprep.subr.mxu0 %v844
    %1379 = vmatpush1.msra.mxu0 %v843
    %1380 = vmatprep.mubr.f32.mxu0 %v1238
    %1381 = vmatmul.mubr.f32.gmra.mrb[0].mxu0 %v78
    %v1382 = vpop.f32.mrb[0].mxu0
    %v1383 = vadd.f32 %v1312, %v1382
    %v1384 = vpop.f32.mrb[0].mxu0
    %v1385 = vadd.f32 %v1314, %v1384
    %1386 = vdwg.mxu0
    %1387 = vmatprep.subr.mxu0 %v850
    %1388 = vmatpush1.msra.mxu0 %v849
    %1389 = vmatprep.subr.mxu0 %v856
    %1390 = vmatpush1.msra.mxu0 %v855
    %1391 = vmatprep.subr.mxu0 %v862
    %1392 = vmatpush1.msra.mxu0 %v861
    %1393 = vmatprep.subr.mxu0 %v868
    %1394 = vmatpush1.msra.mxu0 %v867
    %1395 = vmatprep.subr.mxu0 %v874
    %1396 = vmatpush1.msra.mxu0 %v873
    %1397 = vmatprep.subr.mxu0 %v880
    %1398 = vmatpush1.msra.mxu0 %v879
    %1399 = vmatprep.subr.mxu0 %v886
    %1400 = vmatpush1.msra.mxu0 %v885
    %1401 = vmatprep.subr.mxu0 %v892
    %1402 = vmatpush1.msra.mxu0 %v891
    %1403 = vmatprep.subr.mxu0 %v898
    %1404 = vmatpush1.msra.mxu0 %v897
    %1405 = vmatprep.subr.mxu0 %v904
    %1406 = vmatpush1.msra.mxu0 %v903
    %1407 = vmatprep.subr.mxu0 %v910
    %1408 = vmatpush1.msra.mxu0 %v909
    %1409 = vmatprep.subr.mxu0 %v916
    %1410 = vmatpush1.msra.mxu0 %v915
    %1411 = vmatprep.subr.mxu0 %v922
    %1412 = vmatpush1.msra.mxu0 %v921
    %1413 = vmatprep.subr.mxu0 %v928
    %1414 = vmatpush1.msra.mxu0 %v927
    %1415 = vmatprep.subr.mxu0 %v934
    %1416 = vmatpush1.msra.mxu0 %v933
    %1417 = vmatprep.subr.mxu0 %v940
    %1418 = vmatpush1.msra.mxu0 %v939
    %1419 = vmatprep.subr.mxu0 %v946
    %1420 = vmatpush1.msra.mxu0 %v945
    %1421 = vmatprep.subr.mxu0 %v952
    %1422 = vmatpush1.msra.mxu0 %v951
    %1423 = vmatprep.subr.mxu0 %v958
    %1424 = vmatpush1.msra.mxu0 %v957
    %1425 = vmatprep.subr.mxu0 %v964
    %1426 = vmatpush1.msra.mxu0 %v963
    %1427 = vmatprep.subr.mxu0 %v970
    %1428 = vmatpush1.msra.mxu0 %v969
    %1429 = vmatprep.subr.mxu0 %v976
    %1430 = vmatpush1.msra.mxu0 %v975
    %1431 = vmatprep.subr.mxu0 %v982
    %1432 = vmatpush1.msra.mxu0 %v981
    %1433 = vmatprep.subr.mxu0 %v988
    %1434 = vmatpush1.msra.mxu0 %v987
    %1435 = vmatprep.subr.mxu0 %v994
    %1436 = vmatpush1.msra.mxu0 %v993
    %1437 = vmatprep.subr.mxu0 %v1000
    %1438 = vmatpush1.msra.mxu0 %v999
    %1439 = vmatprep.subr.mxu0 %v1006
    %1440 = vmatpush1.msra.mxu0 %v1005
    %1441 = vmatprep.subr.mxu0 %v1012
    %1442 = vmatpush1.msra.mxu0 %v1011
    %1443 = vmatprep.subr.mxu0 %v1018
    %1444 = vmatpush1.msra.mxu0 %v1017
    %1445 = vmatprep.subr.mxu0 %v1024
    %1446 = vmatpush1.msra.mxu0 %v1023
    %1447 = vmatprep.subr.mxu0 %v1030
    %1448 = vmatpush1.msra.mxu0 %v1029
    %1449 = vmatprep.subr.mxu0 %v1036
    %1450 = vmatpush1.msra.mxu0 %v1035
    %1451 = vmatprep.mubr.f32.mxu0 %v1239
    %1452 = vmatmul.mubr.f32.gmra.mrb[0].mxu0 %v79
    %v1453 = vpop.f32.mrb[0].mxu0
    %v1454 = vadd.f32 %v1383, %v1453
    %v1455 = vpop.f32.mrb[0].mxu0
    %v1456 = vadd.f32 %v1385, %v1455
    %1457 = vdwg.mxu0
    %1458 = vmatprep.subr.mxu0 %v1042
    %1459 = vmatpush1.msra.mxu0 %v1041
    %1460 = vmatprep.subr.mxu0 %v1048
    %1461 = vmatpush1.msra.mxu0 %v1047
    %1462 = vmatprep.subr.mxu0 %v1054
    %1463 = vmatpush1.msra.mxu0 %v1053
    %1464 = vmatprep.subr.mxu0 %v1060
    %1465 = vmatpush1.msra.mxu0 %v1059
    %1466 = vmatprep.subr.mxu0 %v1066
    %1467 = vmatpush1.msra.mxu0 %v1065
    %1468 = vmatprep.subr.mxu0 %v1072
    %1469 = vmatpush1.msra.mxu0 %v1071
    %1470 = vmatprep.subr.mxu0 %v1078
    %1471 = vmatpush1.msra.mxu0 %v1077
    %1472 = vmatprep.subr.mxu0 %v1084
    %1473 = vmatpush1.msra.mxu0 %v1083
    %1474 = vmatprep.subr.mxu0 %v1090
    %1475 = vmatpush1.msra.mxu0 %v1089
    %1476 = vmatprep.subr.mxu0 %v1096
    %1477 = vmatpush1.msra.mxu0 %v1095
    %1478 = vmatprep.subr.mxu0 %v1102
    %1479 = vmatpush1.msra.mxu0 %v1101
    %1480 = vmatprep.subr.mxu0 %v1108
    %1481 = vmatpush1.msra.mxu0 %v1107
    %1482 = vmatprep.subr.mxu0 %v1114
    %1483 = vmatpush1.msra.mxu0 %v1113
    %1484 = vmatprep.subr.mxu0 %v1120
    %1485 = vmatpush1.msra.mxu0 %v1119
    %1486 = vmatprep.subr.mxu0 %v1126
    %1487 = vmatpush1.msra.mxu0 %v1125
    %1488 = vmatprep.subr.mxu0 %v1132
    %1489 = vmatpush1.msra.mxu0 %v1131
    %1490 = vmatprep.subr.mxu0 %v1138
    %1491 = vmatpush1.msra.mxu0 %v1137
    %1492 = vmatprep.subr.mxu0 %v1144
    %1493 = vmatpush1.msra.mxu0 %v1143
    %1494 = vmatprep.subr.mxu0 %v1150
    %1495 = vmatpush1.msra.mxu0 %v1149
    %1496 = vmatprep.subr.mxu0 %v1156
    %1497 = vmatpush1.msra.mxu0 %v1155
    %1498 = vmatprep.subr.mxu0 %v1162
    %1499 = vmatpush1.msra.mxu0 %v1161
    %1500 = vmatprep.subr.mxu0 %v1168
    %1501 = vmatpush1.msra.mxu0 %v1167
    %1502 = vmatprep.subr.mxu0 %v1174
    %1503 = vmatpush1.msra.mxu0 %v1173
    %1504 = vmatprep.subr.mxu0 %v1180
    %1505 = vmatpush1.msra.mxu0 %v1179
    %1506 = vmatprep.subr.mxu0 %v1186
    %1507 = vmatpush1.msra.mxu0 %v1185
    %1508 = vmatprep.subr.mxu0 %v1192
    %1509 = vmatpush1.msra.mxu0 %v1191
    %1510 = vmatprep.subr.mxu0 %v1198
    %1511 = vmatpush1.msra.mxu0 %v1197
    %1512 = vmatprep.subr.mxu0 %v1204
    %1513 = vmatpush1.msra.mxu0 %v1203
    %1514 = vmatprep.subr.mxu0 %v1210
    %1515 = vmatpush1.msra.mxu0 %v1209
    %1516 = vmatprep.subr.mxu0 %v1216
    %1517 = vmatpush1.msra.mxu0 %v1215
    %1518 = vmatprep.subr.mxu0 %v1222
    %1519 = vmatpush1.msra.mxu0 %v1221
    %1520 = vmatprep.subr.mxu0 %v1228
    %1521 = vmatpush1.msra.mxu0 %v1227
    %1522 = vmatprep.mubr.f32.mxu0 %v1240
    %1523 = vmatmul.mubr.f32.gmra.mrb[0].mxu0 %v80
    %v1524 = vpop.f32.mrb[0].mxu0
    %v1525 = vadd.f32 %v1454, %v1524
    %v1526 = vpop.f32.mrb[0].mxu0
    %v1527 = vadd.f32 %v1456, %v1526
    %1528 = vdwg.mxu0
    %1529 = vmatprep.subr.mxu0 %v468
    %1530 = vmatpush1.msra.mxu0 %v467
    %1531 = vmatprep.subr.mxu0 %v474
    %1532 = vmatpush1.msra.mxu0 %v473
    %1533 = vmatprep.subr.mxu0 %v480
    %1534 = vmatpush1.msra.mxu0 %v479
    %1535 = vmatprep.subr.mxu0 %v486
    %1536 = vmatpush1.msra.mxu0 %v485
    %1537 = vmatprep.subr.mxu0 %v492
    %1538 = vmatpush1.msra.mxu0 %v491
    %1539 = vmatprep.subr.mxu0 %v498
    %1540 = vmatpush1.msra.mxu0 %v497
    %1541 = vmatprep.subr.mxu0 %v504
    %1542 = vmatpush1.msra.mxu0 %v503
    %1543 = vmatprep.subr.mxu0 %v510
    %1544 = vmatpush1.msra.mxu0 %v509
    %1545 = vmatprep.subr.mxu0 %v516
    %1546 = vmatpush1.msra.mxu0 %v515
    %1547 = vmatprep.subr.mxu0 %v522
    %1548 = vmatpush1.msra.mxu0 %v521
    %1549 = vmatprep.subr.mxu0 %v528
    %1550 = vmatpush1.msra.mxu0 %v527
    %1551 = vmatprep.subr.mxu0 %v534
    %1552 = vmatpush1.msra.mxu0 %v533
    %1553 = vmatprep.subr.mxu0 %v540
    %1554 = vmatpush1.msra.mxu0 %v539
    %1555 = vmatprep.subr.mxu0 %v546
    %1556 = vmatpush1.msra.mxu0 %v545
    %1557 = vmatprep.subr.mxu0 %v552
    %1558 = vmatpush1.msra.mxu0 %v551
    %1559 = vmatprep.subr.mxu0 %v558
    %1560 = vmatpush1.msra.mxu0 %v557
    %1561 = vmatprep.subr.mxu0 %v564
    %1562 = vmatpush1.msra.mxu0 %v563
    %1563 = vmatprep.subr.mxu0 %v570
    %1564 = vmatpush1.msra.mxu0 %v569
    %1565 = vmatprep.subr.mxu0 %v576
    %1566 = vmatpush1.msra.mxu0 %v575
    %1567 = vmatprep.subr.mxu0 %v582
    %1568 = vmatpush1.msra.mxu0 %v581
    %1569 = vmatprep.subr.mxu0 %v588
    %1570 = vmatpush1.msra.mxu0 %v587
    %1571 = vmatprep.subr.mxu0 %v594
    %1572 = vmatpush1.msra.mxu0 %v593
    %1573 = vmatprep.subr.mxu0 %v600
    %1574 = vmatpush1.msra.mxu0 %v599
    %1575 = vmatprep.subr.mxu0 %v606
    %1576 = vmatpush1.msra.mxu0 %v605
    %1577 = vmatprep.subr.mxu0 %v612
    %1578 = vmatpush1.msra.mxu0 %v611
    %1579 = vmatprep.subr.mxu0 %v618
    %1580 = vmatpush1.msra.mxu0 %v617
    %1581 = vmatprep.subr.mxu0 %v624
    %1582 = vmatpush1.msra.mxu0 %v623
    %1583 = vmatprep.subr.mxu0 %v630
    %1584 = vmatpush1.msra.mxu0 %v629
    %1585 = vmatprep.subr.mxu0 %v636
    %1586 = vmatpush1.msra.mxu0 %v635
    %1587 = vmatprep.subr.mxu0 %v642
    %1588 = vmatpush1.msra.mxu0 %v641
    %1589 = vmatprep.subr.mxu0 %v648
    %1590 = vmatpush1.msra.mxu0 %v647
    %1591 = vmatprep.subr.mxu0 %v654
    %1592 = vmatpush1.msra.mxu0 %v653
    %1593 = vmatprep.mubr.f32.mxu0 %v1237
    %1594 = vmatmul.mubr.f32.gmra.mrb[0].mxu0 %v77
    %v1595 = vpop.f32.mrb[0].mxu0
    %v1596 = vadd.f32 0.0, %v1595
    %v1597 = vpop.f32.mrb[0].mxu0
    %v1598 = vadd.f32 0.0, %v1597
    %1599 = vdwg.mxu0
    %1600 = vmatprep.subr.mxu0 %v660
    %1601 = vmatpush1.msra.mxu0 %v659
    %1602 = vmatprep.subr.mxu0 %v666
    %1603 = vmatpush1.msra.mxu0 %v665
    %1604 = vmatprep.subr.mxu0 %v672
    %1605 = vmatpush1.msra.mxu0 %v671
    %1606 = vmatprep.subr.mxu0 %v678
    %1607 = vmatpush1.msra.mxu0 %v677
    %1608 = vmatprep.subr.mxu0 %v684
    %1609 = vmatpush1.msra.mxu0 %v683
    %1610 = vmatprep.subr.mxu0 %v690
    %1611 = vmatpush1.msra.mxu0 %v689
    %1612 = vmatprep.subr.mxu0 %v696
    %1613 = vmatpush1.msra.mxu0 %v695
    %1614 = vmatprep.subr.mxu0 %v702
    %1615 = vmatpush1.msra.mxu0 %v701
    %1616 = vmatprep.subr.mxu0 %v708
    %1617 = vmatpush1.msra.mxu0 %v707
    %1618 = vmatprep.subr.mxu0 %v714
    %1619 = vmatpush1.msra.mxu0 %v713
    %1620 = vmatprep.subr.mxu0 %v720
    %1621 = vmatpush1.msra.mxu0 %v719
    %1622 = vmatprep.subr.mxu0 %v726
    %1623 = vmatpush1.msra.mxu0 %v725
    %1624 = vmatprep.subr.mxu0 %v732
    %1625 = vmatpush1.msra.mxu0 %v731
    %1626 = vmatprep.subr.mxu0 %v738
    %1627 = vmatpush1.msra.mxu0 %v737
    %1628 = vmatprep.subr.mxu0 %v744
    %1629 = vmatpush1.msra.mxu0 %v743
    %1630 = vmatprep.subr.mxu0 %v750
    %1631 = vmatpush1.msra.mxu0 %v749
    %1632 = vmatprep.subr.mxu0 %v756
    %1633 = vmatpush1.msra.mxu0 %v755
    %1634 = vmatprep.subr.mxu0 %v762
    %1635 = vmatpush1.msra.mxu0 %v761
    %1636 = vmatprep.subr.mxu0 %v768
    %1637 = vmatpush1.msra.mxu0 %v767
    %1638 = vmatprep.subr.mxu0 %v774
    %1639 = vmatpush1.msra.mxu0 %v773
    %1640 = vmatprep.subr.mxu0 %v780
    %1641 = vmatpush1.msra.mxu0 %v779
    %1642 = vmatprep.subr.mxu0 %v786
    %1643 = vmatpush1.msra.mxu0 %v785
    %1644 = vmatprep.subr.mxu0 %v792
    %1645 = vmatpush1.msra.mxu0 %v791
    %1646 = vmatprep.subr.mxu0 %v798
    %1647 = vmatpush1.msra.mxu0 %v797
    %1648 = vmatprep.subr.mxu0 %v804
    %1649 = vmatpush1.msra.mxu0 %v803
    %1650 = vmatprep.subr.mxu0 %v810
    %1651 = vmatpush1.msra.mxu0 %v809
    %1652 = vmatprep.subr.mxu0 %v816
    %1653 = vmatpush1.msra.mxu0 %v815
    %1654 = vmatprep.subr.mxu0 %v822
    %1655 = vmatpush1.msra.mxu0 %v821
    %1656 = vmatprep.subr.mxu0 %v828
    %1657 = vmatpush1.msra.mxu0 %v827
    %1658 = vmatprep.subr.mxu0 %v834
    %1659 = vmatpush1.msra.mxu0 %v833
    %1660 = vmatprep.subr.mxu0 %v840
    %1661 = vmatpush1.msra.mxu0 %v839
    %1662 = vmatprep.subr.mxu0 %v846
    %1663 = vmatpush1.msra.mxu0 %v845
    %1664 = vmatprep.mubr.f32.mxu0 %v1238
    %1665 = vmatmul.mubr.f32.gmra.mrb[0].mxu0 %v78
    %v1666 = vpop.f32.mrb[0].mxu0
    %v1667 = vadd.f32 %v1596, %v1666
    %v1668 = vpop.f32.mrb[0].mxu0
    %v1669 = vadd.f32 %v1598, %v1668
    %1670 = vdwg.mxu0
    %1671 = vmatprep.subr.mxu0 %v852
    %1672 = vmatpush1.msra.mxu0 %v851
    %1673 = vmatprep.subr.mxu0 %v858
    %1674 = vmatpush1.msra.mxu0 %v857
    %1675 = vmatprep.subr.mxu0 %v864
    %1676 = vmatpush1.msra.mxu0 %v863
    %1677 = vmatprep.subr.mxu0 %v870
    %1678 = vmatpush1.msra.mxu0 %v869
    %1679 = vmatprep.subr.mxu0 %v876
    %1680 = vmatpush1.msra.mxu0 %v875
    %1681 = vmatprep.subr.mxu0 %v882
    %1682 = vmatpush1.msra.mxu0 %v881
    %1683 = vmatprep.subr.mxu0 %v888
    %1684 = vmatpush1.msra.mxu0 %v887
    %1685 = vmatprep.subr.mxu0 %v894
    %1686 = vmatpush1.msra.mxu0 %v893
    %1687 = vmatprep.subr.mxu0 %v900
    %1688 = vmatpush1.msra.mxu0 %v899
    %1689 = vmatprep.subr.mxu0 %v906
    %1690 = vmatpush1.msra.mxu0 %v905
    %1691 = vmatprep.subr.mxu0 %v912
    %1692 = vmatpush1.msra.mxu0 %v911
    %1693 = vmatprep.subr.mxu0 %v918
    %1694 = vmatpush1.msra.mxu0 %v917
    %1695 = vmatprep.subr.mxu0 %v924
    %1696 = vmatpush1.msra.mxu0 %v923
    %1697 = vmatprep.subr.mxu0 %v930
    %1698 = vmatpush1.msra.mxu0 %v929
    %1699 = vmatprep.subr.mxu0 %v936
    %1700 = vmatpush1.msra.mxu0 %v935
    %1701 = vmatprep.subr.mxu0 %v942
    %1702 = vmatpush1.msra.mxu0 %v941
    %1703 = vmatprep.subr.mxu0 %v948
    %1704 = vmatpush1.msra.mxu0 %v947
    %1705 = vmatprep.subr.mxu0 %v954
    %1706 = vmatpush1.msra.mxu0 %v953
    %1707 = vmatprep.subr.mxu0 %v960
    %1708 = vmatpush1.msra.mxu0 %v959
    %1709 = vmatprep.subr.mxu0 %v966
    %1710 = vmatpush1.msra.mxu0 %v965
    %1711 = vmatprep.subr.mxu0 %v972
    %1712 = vmatpush1.msra.mxu0 %v971
    %1713 = vmatprep.subr.mxu0 %v978
    %1714 = vmatpush1.msra.mxu0 %v977
    %1715 = vmatprep.subr.mxu0 %v984
    %1716 = vmatpush1.msra.mxu0 %v983
    %1717 = vmatprep.subr.mxu0 %v990
    %1718 = vmatpush1.msra.mxu0 %v989
    %1719 = vmatprep.subr.mxu0 %v996
    %1720 = vmatpush1.msra.mxu0 %v995
    %1721 = vmatprep.subr.mxu0 %v1002
    %1722 = vmatpush1.msra.mxu0 %v1001
    %1723 = vmatprep.subr.mxu0 %v1008
    %1724 = vmatpush1.msra.mxu0 %v1007
    %1725 = vmatprep.subr.mxu0 %v1014
    %1726 = vmatpush1.msra.mxu0 %v1013
    %1727 = vmatprep.subr.mxu0 %v1020
    %1728 = vmatpush1.msra.mxu0 %v1019
    %1729 = vmatprep.subr.mxu0 %v1026
    %1730 = vmatpush1.msra.mxu0 %v1025
    %1731 = vmatprep.subr.mxu0 %v1032
    %1732 = vmatpush1.msra.mxu0 %v1031
    %1733 = vmatprep.subr.mxu0 %v1038
    %1734 = vmatpush1.msra.mxu0 %v1037
    %1735 = vmatprep.mubr.f32.mxu0 %v1239
    %1736 = vmatmul.mubr.f32.gmra.mrb[0].mxu0 %v79
    %v1737 = vpop.f32.mrb[0].mxu0
    %v1738 = vadd.f32 %v1667, %v1737
    %v1739 = vpop.f32.mrb[0].mxu0
    %v1740 = vadd.f32 %v1669, %v1739
    %1741 = vdwg.mxu0
    %1742 = vmatprep.subr.mxu0 %v1044
    %1743 = vmatpush1.msra.mxu0 %v1043
    %1744 = vmatprep.subr.mxu0 %v1050
    %1745 = vmatpush1.msra.mxu0 %v1049
    %1746 = vmatprep.subr.mxu0 %v1056
    %1747 = vmatpush1.msra.mxu0 %v1055
    %1748 = vmatprep.subr.mxu0 %v1062
    %1749 = vmatpush1.msra.mxu0 %v1061
    %1750 = vmatprep.subr.mxu0 %v1068
    %1751 = vmatpush1.msra.mxu0 %v1067
    %1752 = vmatprep.subr.mxu0 %v1074
    %1753 = vmatpush1.msra.mxu0 %v1073
    %1754 = vmatprep.subr.mxu0 %v1080
    %1755 = vmatpush1.msra.mxu0 %v1079
    %1756 = vmatprep.subr.mxu0 %v1086
    %1757 = vmatpush1.msra.mxu0 %v1085
    %1758 = vmatprep.subr.mxu0 %v1092
    %1759 = vmatpush1.msra.mxu0 %v1091
    %1760 = vmatprep.subr.mxu0 %v1098
    %1761 = vmatpush1.msra.mxu0 %v1097
    %1762 = vmatprep.subr.mxu0 %v1104
    %1763 = vmatpush1.msra.mxu0 %v1103
    %1764 = vmatprep.subr.mxu0 %v1110
    %1765 = vmatpush1.msra.mxu0 %v1109
    %1766 = vmatprep.subr.mxu0 %v1116
    %1767 = vmatpush1.msra.mxu0 %v1115
    %1768 = vmatprep.subr.mxu0 %v1122
    %1769 = vmatpush1.msra.mxu0 %v1121
    %1770 = vmatprep.subr.mxu0 %v1128
    %1771 = vmatpush1.msra.mxu0 %v1127
    %1772 = vmatprep.subr.mxu0 %v1134
    %1773 = vmatpush1.msra.mxu0 %v1133
    %1774 = vmatprep.subr.mxu0 %v1140
    %1775 = vmatpush1.msra.mxu0 %v1139
    %1776 = vmatprep.subr.mxu0 %v1146
    %1777 = vmatpush1.msra.mxu0 %v1145
    %1778 = vmatprep.subr.mxu0 %v1152
    %1779 = vmatpush1.msra.mxu0 %v1151
    %1780 = vmatprep.subr.mxu0 %v1158
    %1781 = vmatpush1.msra.mxu0 %v1157
    %1782 = vmatprep.subr.mxu0 %v1164
    %1783 = vmatpush1.msra.mxu0 %v1163
    %1784 = vmatprep.subr.mxu0 %v1170
    %1785 = vmatpush1.msra.mxu0 %v1169
    %1786 = vmatprep.subr.mxu0 %v1176
    %1787 = vmatpush1.msra.mxu0 %v1175
    %1788 = vmatprep.subr.mxu0 %v1182
    %1789 = vmatpush1.msra.mxu0 %v1181
    %1790 = vmatprep.subr.mxu0 %v1188
    %1791 = vmatpush1.msra.mxu0 %v1187
    %1792 = vmatprep.subr.mxu0 %v1194
    %1793 = vmatpush1.msra.mxu0 %v1193
    %1794 = vmatprep.subr.mxu0 %v1200
    %1795 = vmatpush1.msra.mxu0 %v1199
    %1796 = vmatprep.subr.mxu0 %v1206
    %1797 = vmatpush1.msra.mxu0 %v1205
    %1798 = vmatprep.subr.mxu0 %v1212
    %1799 = vmatpush1.msra.mxu0 %v1211
    %1800 = vmatprep.subr.mxu0 %v1218
    %1801 = vmatpush1.msra.mxu0 %v1217
    %1802 = vmatprep.subr.mxu0 %v1224
    %1803 = vmatpush1.msra.mxu0 %v1223
    %1804 = vmatprep.subr.mxu0 %v1230
    %1805 = vmatpush1.msra.mxu0 %v1229
    %1806 = vmatprep.mubr.f32.mxu0 %v1240
    %1807 = vmatmul.mubr.f32.gmra.mrb[0].mxu0 %v80
    %v1808 = vpop.f32.mrb[0].mxu0
    %v1809 = vadd.f32 %v1738, %v1808
    %v1810 = vpop.f32.mrb[0].mxu0
    %v1811 = vadd.f32 %v1740, %v1810
    %1812 = vdwg.mxu0
    %1813 = vmatprep.subr.mxu0 %v470
    %1814 = vmatpush1.msra.mxu0 %v469
    %1815 = vmatprep.subr.mxu0 %v476
    %1816 = vmatpush1.msra.mxu0 %v475
    %1817 = vmatprep.subr.mxu0 %v482
    %1818 = vmatpush1.msra.mxu0 %v481
    %1819 = vmatprep.subr.mxu0 %v488
    %1820 = vmatpush1.msra.mxu0 %v487
    %1821 = vmatprep.subr.mxu0 %v494
    %1822 = vmatpush1.msra.mxu0 %v493
    %1823 = vmatprep.subr.mxu0 %v500
    %1824 = vmatpush1.msra.mxu0 %v499
    %1825 = vmatprep.subr.mxu0 %v506
    %1826 = vmatpush1.msra.mxu0 %v505
    %1827 = vmatprep.subr.mxu0 %v512
    %1828 = vmatpush1.msra.mxu0 %v511
    %1829 = vmatprep.subr.mxu0 %v518
    %1830 = vmatpush1.msra.mxu0 %v517
    %1831 = vmatprep.subr.mxu0 %v524
    %1832 = vmatpush1.msra.mxu0 %v523
    %1833 = vmatprep.subr.mxu0 %v530
    %1834 = vmatpush1.msra.mxu0 %v529
    %1835 = vmatprep.subr.mxu0 %v536
    %1836 = vmatpush1.msra.mxu0 %v535
    %1837 = vmatprep.subr.mxu0 %v542
    %1838 = vmatpush1.msra.mxu0 %v541
    %1839 = vmatprep.subr.mxu0 %v548
    %1840 = vmatpush1.msra.mxu0 %v547
    %1841 = vmatprep.subr.mxu0 %v554
    %1842 = vmatpush1.msra.mxu0 %v553
    %1843 = vmatprep.subr.mxu0 %v560
    %1844 = vmatpush1.msra.mxu0 %v559
    %1845 = vmatprep.subr.mxu0 %v566
    %1846 = vmatpush1.msra.mxu0 %v565
    %1847 = vmatprep.subr.mxu0 %v572
    %1848 = vmatpush1.msra.mxu0 %v571
    %1849 = vmatprep.subr.mxu0 %v578
    %1850 = vmatpush1.msra.mxu0 %v577
    %1851 = vmatprep.subr.mxu0 %v584
    %1852 = vmatpush1.msra.mxu0 %v583
    %1853 = vmatprep.subr.mxu0 %v590
    %1854 = vmatpush1.msra.mxu0 %v589
    %1855 = vmatprep.subr.mxu0 %v596
    %1856 = vmatpush1.msra.mxu0 %v595
    %1857 = vmatprep.subr.mxu0 %v602
    %1858 = vmatpush1.msra.mxu0 %v601
    %1859 = vmatprep.subr.mxu0 %v608
    %1860 = vmatpush1.msra.mxu0 %v607
    %1861 = vmatprep.subr.mxu0 %v614
    %1862 = vmatpush1.msra.mxu0 %v613
    %1863 = vmatprep.subr.mxu0 %v620
    %1864 = vmatpush1.msra.mxu0 %v619
    %1865 = vmatprep.subr.mxu0 %v626
    %1866 = vmatpush1.msra.mxu0 %v625
    %1867 = vmatprep.subr.mxu0 %v632
    %1868 = vmatpush1.msra.mxu0 %v631
    %1869 = vmatprep.subr.mxu0 %v638
    %1870 = vmatpush1.msra.mxu0 %v637
    %1871 = vmatprep.subr.mxu0 %v644
    %1872 = vmatpush1.msra.mxu0 %v643
    %1873 = vmatprep.subr.mxu0 %v650
    %1874 = vmatpush1.msra.mxu0 %v649
    %1875 = vmatprep.subr.mxu0 %v656
    %1876 = vmatpush1.msra.mxu0 %v655
    %1877 = vmatprep.mubr.f32.mxu0 %v1237
    %1878 = vmatmul.mubr.f32.gmra.mrb[0].mxu0 %v77
    %v1879 = vpop.f32.mrb[0].mxu0
    %v1880 = vadd.f32 0.0, %v1879
    %v1881 = vpop.f32.mrb[0].mxu0
    %v1882 = vadd.f32 0.0, %v1881
    %1883 = vdwg.mxu0
    %1884 = vmatprep.subr.mxu0 %v662
    %1885 = vmatpush1.msra.mxu0 %v661
    %1886 = vmatprep.subr.mxu0 %v668
    %1887 = vmatpush1.msra.mxu0 %v667
    %1888 = vmatprep.subr.mxu0 %v674
    %1889 = vmatpush1.msra.mxu0 %v673
    %1890 = vmatprep.subr.mxu0 %v680
    %1891 = vmatpush1.msra.mxu0 %v679
    %1892 = vmatprep.subr.mxu0 %v686
    %1893 = vmatpush1.msra.mxu0 %v685
    %1894 = vmatprep.subr.mxu0 %v692
    %1895 = vmatpush1.msra.mxu0 %v691
    %1896 = vmatprep.subr.mxu0 %v698
    %1897 = vmatpush1.msra.mxu0 %v697
    %1898 = vmatprep.subr.mxu0 %v704
    %1899 = vmatpush1.msra.mxu0 %v703
    %1900 = vmatprep.subr.mxu0 %v710
    %1901 = vmatpush1.msra.mxu0 %v709
    %1902 = vmatprep.subr.mxu0 %v716
    %1903 = vmatpush1.msra.mxu0 %v715
    %1904 = vmatprep.subr.mxu0 %v722
    %1905 = vmatpush1.msra.mxu0 %v721
    %1906 = vmatprep.subr.mxu0 %v728
    %1907 = vmatpush1.msra.mxu0 %v727
    %1908 = vmatprep.subr.mxu0 %v734
    %1909 = vmatpush1.msra.mxu0 %v733
    %1910 = vmatprep.subr.mxu0 %v740
    %1911 = vmatpush1.msra.mxu0 %v739
    %1912 = vmatprep.subr.mxu0 %v746
    %1913 = vmatpush1.msra.mxu0 %v745
    %1914 = vmatprep.subr.mxu0 %v752
    %1915 = vmatpush1.msra.mxu0 %v751
    %1916 = vmatprep.subr.mxu0 %v758
    %1917 = vmatpush1.msra.mxu0 %v757
    %1918 = vmatprep.subr.mxu0 %v764
    %1919 = vmatpush1.msra.mxu0 %v763
    %1920 = vmatprep.subr.mxu0 %v770
    %1921 = vmatpush1.msra.mxu0 %v769
    %1922 = vmatprep.subr.mxu0 %v776
    %1923 = vmatpush1.msra.mxu0 %v775
    %1924 = vmatprep.subr.mxu0 %v782
    %1925 = vmatpush1.msra.mxu0 %v781
    %1926 = vmatprep.subr.mxu0 %v788
    %1927 = vmatpush1.msra.mxu0 %v787
    %1928 = vmatprep.subr.mxu0 %v794
    %1929 = vmatpush1.msra.mxu0 %v793
    %1930 = vmatprep.subr.mxu0 %v800
    %1931 = vmatpush1.msra.mxu0 %v799
    %1932 = vmatprep.subr.mxu0 %v806
    %1933 = vmatpush1.msra.mxu0 %v805
    %1934 = vmatprep.subr.mxu0 %v812
    %1935 = vmatpush1.msra.mxu0 %v811
    %1936 = vmatprep.subr.mxu0 %v818
    %1937 = vmatpush1.msra.mxu0 %v817
    %1938 = vmatprep.subr.mxu0 %v824
    %1939 = vmatpush1.msra.mxu0 %v823
    %1940 = vmatprep.subr.mxu0 %v830
    %1941 = vmatpush1.msra.mxu0 %v829
    %1942 = vmatprep.subr.mxu0 %v836
    %1943 = vmatpush1.msra.mxu0 %v835
    %1944 = vmatprep.subr.mxu0 %v842
    %1945 = vmatpush1.msra.mxu0 %v841
    %1946 = vmatprep.subr.mxu0 %v848
    %1947 = vmatpush1.msra.mxu0 %v847
    %1948 = vmatprep.mubr.f32.mxu0 %v1238
    %1949 = vmatmul.mubr.f32.gmra.mrb[0].mxu0 %v78
    %v1950 = vpop.f32.mrb[0].mxu0
    %v1951 = vadd.f32 %v1880, %v1950
    %v1952 = vpop.f32.mrb[0].mxu0
    %v1953 = vadd.f32 %v1882, %v1952
    %1954 = vdwg.mxu0
    %1955 = vmatprep.subr.mxu0 %v854
    %1956 = vmatpush1.msra.mxu0 %v853
    %1957 = vmatprep.subr.mxu0 %v860
    %1958 = vmatpush1.msra.mxu0 %v859
    %1959 = vmatprep.subr.mxu0 %v866
    %1960 = vmatpush1.msra.mxu0 %v865
    %1961 = vmatprep.subr.mxu0 %v872
    %1962 = vmatpush1.msra.mxu0 %v871
    %1963 = vmatprep.subr.mxu0 %v878
    %1964 = vmatpush1.msra.mxu0 %v877
    %1965 = vmatprep.subr.mxu0 %v884
    %1966 = vmatpush1.msra.mxu0 %v883
    %1967 = vmatprep.subr.mxu0 %v890
    %1968 = vmatpush1.msra.mxu0 %v889
    %1969 = vmatprep.subr.mxu0 %v896
    %1970 = vmatpush1.msra.mxu0 %v895
    %1971 = vmatprep.subr.mxu0 %v902
    %1972 = vmatpush1.msra.mxu0 %v901
    %1973 = vmatprep.subr.mxu0 %v908
    %1974 = vmatpush1.msra.mxu0 %v907
    %1975 = vmatprep.subr.mxu0 %v914
    %1976 = vmatpush1.msra.mxu0 %v913
    %1977 = vmatprep.subr.mxu0 %v920
    %1978 = vmatpush1.msra.mxu0 %v919
    %1979 = vmatprep.subr.mxu0 %v926
    %1980 = vmatpush1.msra.mxu0 %v925
    %1981 = vmatprep.subr.mxu0 %v932
    %1982 = vmatpush1.msra.mxu0 %v931
    %1983 = vmatprep.subr.mxu0 %v938
    %1984 = vmatpush1.msra.mxu0 %v937
    %1985 = vmatprep.subr.mxu0 %v944
    %1986 = vmatpush1.msra.mxu0 %v943
    %1987 = vmatprep.subr.mxu0 %v950
    %1988 = vmatpush1.msra.mxu0 %v949
    %1989 = vmatprep.subr.mxu0 %v956
    %1990 = vmatpush1.msra.mxu0 %v955
    %1991 = vmatprep.subr.mxu0 %v962
    %1992 = vmatpush1.msra.mxu0 %v961
    %1993 = vmatprep.subr.mxu0 %v968
    %1994 = vmatpush1.msra.mxu0 %v967
    %1995 = vmatprep.subr.mxu0 %v974
    %1996 = vmatpush1.msra.mxu0 %v973
    %1997 = vmatprep.subr.mxu0 %v980
    %1998 = vmatpush1.msra.mxu0 %v979
    %1999 = vmatprep.subr.mxu0 %v986
    %2000 = vmatpush1.msra.mxu0 %v985
    %2001 = vmatprep.subr.mxu0 %v992
    %2002 = vmatpush1.msra.mxu0 %v991
    %2003 = vmatprep.subr.mxu0 %v998
    %2004 = vmatpush1.msra.mxu0 %v997
    %2005 = vmatprep.subr.mxu0 %v1004
    %2006 = vmatpush1.msra.mxu0 %v1003
    %2007 = vmatprep.subr.mxu0 %v1010
    %2008 = vmatpush1.msra.mxu0 %v1009
    %2009 = vmatprep.subr.mxu0 %v1016
    %2010 = vmatpush1.msra.mxu0 %v1015
    %2011 = vmatprep.subr.mxu0 %v1022
    %2012 = vmatpush1.msra.mxu0 %v1021
    %2013 = vmatprep.subr.mxu0 %v1028
    %2014 = vmatpush1.msra.mxu0 %v1027
    %2015 = vmatprep.subr.mxu0 %v1034
    %2016 = vmatpush1.msra.mxu0 %v1033
    %2017 = vmatprep.subr.mxu0 %v1040
    %2018 = vmatpush1.msra.mxu0 %v1039
    %2019 = vmatprep.mubr.f32.mxu0 %v1239
    %2020 = vmatmul.mubr.f32.gmra.mrb[0].mxu0 %v79
    %v2021 = vpop.f32.mrb[0].mxu0
    %v2022 = vadd.f32 %v1951, %v2021
    %v2023 = vpop.f32.mrb[0].mxu0
    %v2024 = vadd.f32 %v1953, %v2023
    %2025 = vdwg.mxu0
    %2026 = vmatprep.subr.mxu0 %v1046
    %2027 = vmatpush1.msra.mxu0 %v1045
    %2028 = vmatprep.subr.mxu0 %v1052
    %2029 = vmatpush1.msra.mxu0 %v1051
    %2030 = vmatprep.subr.mxu0 %v1058
    %2031 = vmatpush1.msra.mxu0 %v1057
    %2032 = vmatprep.subr.mxu0 %v1064
    %2033 = vmatpush1.msra.mxu0 %v1063
    %2034 = vmatprep.subr.mxu0 %v1070
    %2035 = vmatpush1.msra.mxu0 %v1069
    %2036 = vmatprep.subr.mxu0 %v1076
    %2037 = vmatpush1.msra.mxu0 %v1075
    %2038 = vmatprep.subr.mxu0 %v1082
    %2039 = vmatpush1.msra.mxu0 %v1081
    %2040 = vmatprep.subr.mxu0 %v1088
    %2041 = vmatpush1.msra.mxu0 %v1087
    %2042 = vmatprep.subr.mxu0 %v1094
    %2043 = vmatpush1.msra.mxu0 %v1093
    %2044 = vmatprep.subr.mxu0 %v1100
    %2045 = vmatpush1.msra.mxu0 %v1099
    %2046 = vmatprep.subr.mxu0 %v1106
    %2047 = vmatpush1.msra.mxu0 %v1105
    %2048 = vmatprep.subr.mxu0 %v1112
    %2049 = vmatpush1.msra.mxu0 %v1111
    %2050 = vmatprep.subr.mxu0 %v1118
    %2051 = vmatpush1.msra.mxu0 %v1117
    %2052 = vmatprep.subr.mxu0 %v1124
    %2053 = vmatpush1.msra.mxu0 %v1123
    %2054 = vmatprep.subr.mxu0 %v1130
    %2055 = vmatpush1.msra.mxu0 %v1129
    %2056 = vmatprep.subr.mxu0 %v1136
    %2057 = vmatpush1.msra.mxu0 %v1135
    %2058 = vmatprep.subr.mxu0 %v1142
    %2059 = vmatpush1.msra.mxu0 %v1141
    %2060 = vmatprep.subr.mxu0 %v1148
    %2061 = vmatpush1.msra.mxu0 %v1147
    %2062 = vmatprep.subr.mxu0 %v1154
    %2063 = vmatpush1.msra.mxu0 %v1153
    %2064 = vmatprep.subr.mxu0 %v1160
    %2065 = vmatpush1.msra.mxu0 %v1159
    %2066 = vmatprep.subr.mxu0 %v1166
    %2067 = vmatpush1.msra.mxu0 %v1165
    %2068 = vmatprep.subr.mxu0 %v1172
    %2069 = vmatpush1.msra.mxu0 %v1171
    %2070 = vmatprep.subr.mxu0 %v1178
    %2071 = vmatpush1.msra.mxu0 %v1177
    %2072 = vmatprep.subr.mxu0 %v1184
    %2073 = vmatpush1.msra.mxu0 %v1183
    %2074 = vmatprep.subr.mxu0 %v1190
    %2075 = vmatpush1.msra.mxu0 %v1189
    %2076 = vmatprep.subr.mxu0 %v1196
    %2077 = vmatpush1.msra.mxu0 %v1195
    %2078 = vmatprep.subr.mxu0 %v1202
    %2079 = vmatpush1.msra.mxu0 %v1201
    %2080 = vmatprep.subr.mxu0 %v1208
    %2081 = vmatpush1.msra.mxu0 %v1207
    %2082 = vmatprep.subr.mxu0 %v1214
    %2083 = vmatpush1.msra.mxu0 %v1213
    %2084 = vmatprep.subr.mxu0 %v1220
    %2085 = vmatpush1.msra.mxu0 %v1219
    %2086 = vmatprep.subr.mxu0 %v1226
    %2087 = vmatpush1.msra.mxu0 %v1225
    %2088 = vmatprep.subr.mxu0 %v1232
    %2089 = vmatpush1.msra.mxu0 %v1231
    %2090 = vmatprep.mubr.f32.mxu0 %v1240
    %2091 = vmatmul.mubr.f32.gmra.mrb[0].mxu0 %v80
    %v2092 = vpop.f32.mrb[0].mxu0
    %v2093 = vadd.f32 %v2022, %v2092
    %v2094 = vpop.f32.mrb[0].mxu0
    %v2095 = vadd.f32 %v2024, %v2094
    %2096 = vdwg.mxu0
    %v2097 = vld [vmem:[#allocation4 + $0x8] sm:$0xf]
    %v2098 = vld [vmem:[#allocation4 + $0x14] sm:$0xf]
    %v2099 = vld [vmem:[#allocation4 + $0x20] sm:$0xf]
    %v2100 = vld [vmem:[#allocation4 + $0x2c] sm:$0xf]
    %v2101 = vld [vmem:[#allocation4 + $0x38] sm:$0xf]
    %v2102 = vld [vmem:[#allocation4 + $0x44] sm:$0xf]
    %v2103 = vld [vmem:[#allocation4 + $0x50] sm:$0xf]
    %v2104 = vld [vmem:[#allocation4 + $0x5c] sm:$0xf]
    %v2105 = vld [vmem:[#allocation4 + $0x68] sm:$0xf]
    %v2106 = vld [vmem:[#allocation4 + $0x74] sm:$0xf]
    %v2107 = vld [vmem:[#allocation4 + $0x80] sm:$0xf]
    %v2108 = vld [vmem:[#allocation4 + $0x8c] sm:$0xf]
    %v2109 = vld [vmem:[#allocation4 + $0x98] sm:$0xf]
    %v2110 = vld [vmem:[#allocation4 + $0xa4] sm:$0xf]
    %v2111 = vld [vmem:[#allocation4 + $0xb0] sm:$0xf]
    %v2112 = vld [vmem:[#allocation4 + $0xbc] sm:$0xf]
    %v2113 = vld [vmem:[#allocation4 + $0xc8] sm:$0xf]
    %v2114 = vld [vmem:[#allocation4 + $0xd4] sm:$0xf]
    %v2115 = vld [vmem:[#allocation4 + $0xe0] sm:$0xf]
    %v2116 = vld [vmem:[#allocation4 + $0xec] sm:$0xf]
    %v2117 = vld [vmem:[#allocation4 + $0xf8] sm:$0xf]
    %v2118 = vld [vmem:[#allocation4 + $0x104] sm:$0xf]
    %v2119 = vld [vmem:[#allocation4 + $0x110] sm:$0xf]
    %v2120 = vld [vmem:[#allocation4 + $0x11c] sm:$0xf]
    %v2121 = vld [vmem:[#allocation4 + $0x128] sm:$0xf]
    %v2122 = vld [vmem:[#allocation4 + $0x134] sm:$0xf]
    %v2123 = vld [vmem:[#allocation4 + $0x140] sm:$0xf]
    %v2124 = vld [vmem:[#allocation4 + $0x14c] sm:$0xf]
    %v2125 = vld [vmem:[#allocation4 + $0x158] sm:$0xf]
    %v2126 = vld [vmem:[#allocation4 + $0x164] sm:$0xf]
    %v2127 = vld [vmem:[#allocation4 + $0x170] sm:$0xf]
    %v2128 = vld [vmem:[#allocation4 + $0x17c] sm:$0xf]
    %v2129 = vld [vmem:[#allocation4 + $0x188] sm:$0xf]
    %v2130 = vld [vmem:[#allocation4 + $0x194] sm:$0xf]
    %v2131 = vld [vmem:[#allocation4 + $0x1a0] sm:$0xf]
    %v2132 = vld [vmem:[#allocation4 + $0x1ac] sm:$0xf]
    %v2133 = vld [vmem:[#allocation4 + $0x1b8] sm:$0xf]
    %v2134 = vld [vmem:[#allocation4 + $0x1c4] sm:$0xf]
    %v2135 = vld [vmem:[#allocation4 + $0x1d0] sm:$0xf]
    %v2136 = vld [vmem:[#allocation4 + $0x1dc] sm:$0xf]
    %v2137 = vld [vmem:[#allocation4 + $0x1e8] sm:$0xf]
    %v2138 = vld [vmem:[#allocation4 + $0x1f4] sm:$0xf]
    %v2139 = vld [vmem:[#allocation4 + $0x200] sm:$0xf]
    %v2140 = vld [vmem:[#allocation4 + $0x20c] sm:$0xf]
    %v2141 = vld [vmem:[#allocation4 + $0x218] sm:$0xf]
    %v2142 = vld [vmem:[#allocation4 + $0x224] sm:$0xf]
    %v2143 = vld [vmem:[#allocation4 + $0x230] sm:$0xf]
    %v2144 = vld [vmem:[#allocation4 + $0x23c] sm:$0xf]
    %v2145 = vld [vmem:[#allocation4 + $0x248] sm:$0xf]
    %v2146 = vld [vmem:[#allocation4 + $0x254] sm:$0xf]
    %v2147 = vld [vmem:[#allocation4 + $0x260] sm:$0xf]
    %v2148 = vld [vmem:[#allocation4 + $0x26c] sm:$0xf]
    %v2149 = vld [vmem:[#allocation4 + $0x278] sm:$0xf]
    %v2150 = vld [vmem:[#allocation4 + $0x284] sm:$0xf]
    %v2151 = vld [vmem:[#allocation4 + $0x290] sm:$0xf]
    %v2152 = vld [vmem:[#allocation4 + $0x29c] sm:$0xf]
    %v2153 = vld [vmem:[#allocation4 + $0x2a8] sm:$0xf]
    %v2154 = vld [vmem:[#allocation4 + $0x2b4] sm:$0xf]
    %v2155 = vld [vmem:[#allocation4 + $0x2c0] sm:$0xf]
    %v2156 = vld [vmem:[#allocation4 + $0x2cc] sm:$0xf]
    %v2157 = vld [vmem:[#allocation4 + $0x2d8] sm:$0xf]
    %v2158 = vld [vmem:[#allocation4 + $0x2e4] sm:$0xf]
    %v2159 = vld [vmem:[#allocation4 + $0x2f0] sm:$0xf]
    %v2160 = vld [vmem:[#allocation4 + $0x2fc] sm:$0xf]
    %v2161 = vld [vmem:[#allocation4 + $0x308] sm:$0xf]
    %v2162 = vld [vmem:[#allocation4 + $0x314] sm:$0xf]
    %v2163 = vld [vmem:[#allocation4 + $0x320] sm:$0xf]
    %v2164 = vld [vmem:[#allocation4 + $0x32c] sm:$0xf]
    %v2165 = vld [vmem:[#allocation4 + $0x338] sm:$0xf]
    %v2166 = vld [vmem:[#allocation4 + $0x344] sm:$0xf]
    %v2167 = vld [vmem:[#allocation4 + $0x350] sm:$0xf]
    %v2168 = vld [vmem:[#allocation4 + $0x35c] sm:$0xf]
    %v2169 = vld [vmem:[#allocation4 + $0x368] sm:$0xf]
    %v2170 = vld [vmem:[#allocation4 + $0x374] sm:$0xf]
    %v2171 = vld [vmem:[#allocation4 + $0x380] sm:$0xf]
    %v2172 = vld [vmem:[#allocation4 + $0x38c] sm:$0xf]
    %v2173 = vld [vmem:[#allocation4 + $0x398] sm:$0xf]
    %v2174 = vld [vmem:[#allocation4 + $0x3a4] sm:$0xf]
    %v2175 = vld [vmem:[#allocation4 + $0x3b0] sm:$0xf]
    %v2176 = vld [vmem:[#allocation4 + $0x3bc] sm:$0xf]
    %v2177 = vld [vmem:[#allocation4 + $0x3c8] sm:$0xf]
    %v2178 = vld [vmem:[#allocation4 + $0x3d4] sm:$0xf]
    %v2179 = vld [vmem:[#allocation4 + $0x3e0] sm:$0xf]
    %v2180 = vld [vmem:[#allocation4 + $0x3ec] sm:$0xf]
    %v2181 = vld [vmem:[#allocation4 + $0x3f8] sm:$0xf]
    %v2182 = vld [vmem:[#allocation4 + $0x404] sm:$0xf]
    %v2183 = vld [vmem:[#allocation4 + $0x410] sm:$0xf]
    %v2184 = vld [vmem:[#allocation4 + $0x41c] sm:$0xf]
    %v2185 = vld [vmem:[#allocation4 + $0x428] sm:$0xf]
    %v2186 = vld [vmem:[#allocation4 + $0x434] sm:$0xf]
    %v2187 = vld [vmem:[#allocation4 + $0x440] sm:$0xf]
    %v2188 = vld [vmem:[#allocation4 + $0x44c] sm:$0xf]
    %v2189 = vld [vmem:[#allocation4 + $0x458] sm:$0xf]
    %v2190 = vld [vmem:[#allocation4 + $0x464] sm:$0xf]
    %v2191 = vld [vmem:[#allocation4 + $0x470] sm:$0xf]
    %v2192 = vld [vmem:[#allocation4 + $0x47c] sm:$0xf]
    %v2193 = vunpack.c.l.bf16 %v2097
    %v2194 = vunpack.c.l.bf16 %v2098
    %v2195 = vunpack.c.l.bf16 %v2099
    %v2196 = vunpack.c.l.bf16 %v2100
    %v2197 = vunpack.c.l.bf16 %v2101
    %v2198 = vunpack.c.l.bf16 %v2102
    %v2199 = vunpack.c.l.bf16 %v2103
    %v2200 = vunpack.c.l.bf16 %v2104
    %v2201 = vunpack.c.l.bf16 %v2105
    %v2202 = vunpack.c.l.bf16 %v2106
    %v2203 = vunpack.c.l.bf16 %v2107
    %v2204 = vunpack.c.l.bf16 %v2108
    %v2205 = vunpack.c.l.bf16 %v2109
    %v2206 = vunpack.c.l.bf16 %v2110
    %v2207 = vunpack.c.l.bf16 %v2111
    %v2208 = vunpack.c.l.bf16 %v2112
    %v2209 = vunpack.c.l.bf16 %v2113
    %v2210 = vunpack.c.l.bf16 %v2114
    %v2211 = vunpack.c.l.bf16 %v2115
    %v2212 = vunpack.c.l.bf16 %v2116
    %v2213 = vunpack.c.l.bf16 %v2117
    %v2214 = vunpack.c.l.bf16 %v2118
    %v2215 = vunpack.c.l.bf16 %v2119
    %v2216 = vunpack.c.l.bf16 %v2120
    %v2217 = vunpack.c.l.bf16 %v2121
    %v2218 = vunpack.c.l.bf16 %v2122
    %v2219 = vunpack.c.l.bf16 %v2123
    %v2220 = vunpack.c.l.bf16 %v2124
    %v2221 = vunpack.c.l.bf16 %v2125
    %v2222 = vunpack.c.l.bf16 %v2126
    %v2223 = vunpack.c.l.bf16 %v2127
    %v2224 = vunpack.c.l.bf16 %v2128
    %v2225 = vunpack.c.l.bf16 %v2129
    %v2226 = vunpack.c.l.bf16 %v2130
    %v2227 = vunpack.c.l.bf16 %v2131
    %v2228 = vunpack.c.l.bf16 %v2132
    %v2229 = vunpack.c.l.bf16 %v2133
    %v2230 = vunpack.c.l.bf16 %v2134
    %v2231 = vunpack.c.l.bf16 %v2135
    %v2232 = vunpack.c.l.bf16 %v2136
    %v2233 = vunpack.c.l.bf16 %v2137
    %v2234 = vunpack.c.l.bf16 %v2138
    %v2235 = vunpack.c.l.bf16 %v2139
    %v2236 = vunpack.c.l.bf16 %v2140
    %v2237 = vunpack.c.l.bf16 %v2141
    %v2238 = vunpack.c.l.bf16 %v2142
    %v2239 = vunpack.c.l.bf16 %v2143
    %v2240 = vunpack.c.l.bf16 %v2144
    %v2241 = vunpack.c.l.bf16 %v2145
    %v2242 = vunpack.c.l.bf16 %v2146
    %v2243 = vunpack.c.l.bf16 %v2147
    %v2244 = vunpack.c.l.bf16 %v2148
    %v2245 = vunpack.c.l.bf16 %v2149
    %v2246 = vunpack.c.l.bf16 %v2150
    %v2247 = vunpack.c.l.bf16 %v2151
    %v2248 = vunpack.c.l.bf16 %v2152
    %v2249 = vunpack.c.l.bf16 %v2153
    %v2250 = vunpack.c.l.bf16 %v2154
    %v2251 = vunpack.c.l.bf16 %v2155
    %v2252 = vunpack.c.l.bf16 %v2156
    %v2253 = vunpack.c.l.bf16 %v2157
    %v2254 = vunpack.c.l.bf16 %v2158
    %v2255 = vunpack.c.l.bf16 %v2159
    %v2256 = vunpack.c.l.bf16 %v2160
    %v2257 = vunpack.c.l.bf16 %v2161
    %v2258 = vunpack.c.l.bf16 %v2162
    %v2259 = vunpack.c.l.bf16 %v2163
    %v2260 = vunpack.c.l.bf16 %v2164
    %v2261 = vunpack.c.l.bf16 %v2165
    %v2262 = vunpack.c.l.bf16 %v2166
    %v2263 = vunpack.c.l.bf16 %v2167
    %v2264 = vunpack.c.l.bf16 %v2168
    %v2265 = vunpack.c.l.bf16 %v2169
    %v2266 = vunpack.c.l.bf16 %v2170
    %v2267 = vunpack.c.l.bf16 %v2171
    %v2268 = vunpack.c.l.bf16 %v2172
    %v2269 = vunpack.c.l.bf16 %v2173
    %v2270 = vunpack.c.l.bf16 %v2174
    %v2271 = vunpack.c.l.bf16 %v2175
    %v2272 = vunpack.c.l.bf16 %v2176
    %v2273 = vunpack.c.l.bf16 %v2177
    %v2274 = vunpack.c.l.bf16 %v2178
    %v2275 = vunpack.c.l.bf16 %v2179
    %v2276 = vunpack.c.l.bf16 %v2180
    %v2277 = vunpack.c.l.bf16 %v2181
    %v2278 = vunpack.c.l.bf16 %v2182
    %v2279 = vunpack.c.l.bf16 %v2183
    %v2280 = vunpack.c.l.bf16 %v2184
    %v2281 = vunpack.c.l.bf16 %v2185
    %v2282 = vunpack.c.l.bf16 %v2186
    %v2283 = vunpack.c.l.bf16 %v2187
    %v2284 = vunpack.c.l.bf16 %v2188
    %v2285 = vunpack.c.l.bf16 %v2189
    %v2286 = vunpack.c.l.bf16 %v2190
    %v2287 = vunpack.c.l.bf16 %v2191
    %v2288 = vunpack.c.l.bf16 %v2192
    %v2289 = vld [vmem:[#allocation7] sm:$0xff]
    %v2290 = vld [vmem:[#allocation7 + $0x8] sm:$0xff]
    %v2291 = vld [vmem:[#allocation7 + $0x10] sm:$0xff]
    %v2292 = vld [vmem:[#allocation7 + $0x18] sm:$0xff]
    %v2293 = vld [vmem:[#allocation7 + $0x20] sm:$0xff]
    %v2294 = vld [vmem:[#allocation7 + $0x28] sm:$0xff]
    %v2295 = vld [vmem:[#allocation7 + $0x30] sm:$0xff]
    %v2296 = vld [vmem:[#allocation7 + $0x38] sm:$0xff]
    %v2297 = vld [vmem:[#allocation7 + $0x40] sm:$0xff]
    %v2298 = vld [vmem:[#allocation7 + $0x48] sm:$0xff]
    %v2299 = vld [vmem:[#allocation7 + $0x50] sm:$0xff]
    %v2300 = vld [vmem:[#allocation7 + $0x58] sm:$0xff]
    %v2301 = vld [vmem:[#allocation7 + $0x60] sm:$0xff]
    %v2302 = vld [vmem:[#allocation7 + $0x68] sm:$0xff]
    %v2303 = vld [vmem:[#allocation7 + $0x70] sm:$0xff]
    %v2304 = vld [vmem:[#allocation7 + $0x78] sm:$0xff]
    %v2305 = vld [vmem:[#allocation7 + $0x80] sm:$0xff]
    %v2306 = vld [vmem:[#allocation7 + $0x88] sm:$0xff]
    %v2307 = vld [vmem:[#allocation7 + $0x90] sm:$0xff]
    %v2308 = vld [vmem:[#allocation7 + $0x98] sm:$0xff]
    %v2309 = vld [vmem:[#allocation7 + $0xa0] sm:$0xff]
    %v2310 = vld [vmem:[#allocation7 + $0xa8] sm:$0xff]
    %v2311 = vld [vmem:[#allocation7 + $0xb0] sm:$0xff]
    %v2312 = vld [vmem:[#allocation7 + $0xb8] sm:$0xff]
    %v2313 = vld [vmem:[#allocation7 + $0xc0] sm:$0xff]
    %v2314 = vld [vmem:[#allocation7 + $0xc8] sm:$0xff]
    %v2315 = vld [vmem:[#allocation7 + $0xd0] sm:$0xff]
    %v2316 = vld [vmem:[#allocation7 + $0xd8] sm:$0xff]
    %v2317 = vld [vmem:[#allocation7 + $0xe0] sm:$0xff]
    %v2318 = vld [vmem:[#allocation7 + $0xe8] sm:$0xff]
    %v2319 = vld [vmem:[#allocation7 + $0xf0] sm:$0xff]
    %v2320 = vld [vmem:[#allocation7 + $0xf8] sm:$0xff]
    %v2321 = vld [vmem:[#allocation7 + $0x100] sm:$0xff]
    %v2322 = vld [vmem:[#allocation7 + $0x108] sm:$0xff]
    %v2323 = vld [vmem:[#allocation7 + $0x110] sm:$0xff]
    %v2324 = vld [vmem:[#allocation7 + $0x118] sm:$0xff]
    %v2325 = vld [vmem:[#allocation7 + $0x120] sm:$0xff]
    %v2326 = vld [vmem:[#allocation7 + $0x128] sm:$0xff]
    %v2327 = vld [vmem:[#allocation7 + $0x130] sm:$0xff]
    %v2328 = vld [vmem:[#allocation7 + $0x138] sm:$0xff]
    %v2329 = vld [vmem:[#allocation7 + $0x140] sm:$0xff]
    %v2330 = vld [vmem:[#allocation7 + $0x148] sm:$0xff]
    %v2331 = vld [vmem:[#allocation7 + $0x150] sm:$0xff]
    %v2332 = vld [vmem:[#allocation7 + $0x158] sm:$0xff]
    %v2333 = vld [vmem:[#allocation7 + $0x160] sm:$0xff]
    %v2334 = vld [vmem:[#allocation7 + $0x168] sm:$0xff]
    %v2335 = vld [vmem:[#allocation7 + $0x170] sm:$0xff]
    %v2336 = vld [vmem:[#allocation7 + $0x178] sm:$0xff]
    %v2337 = vunpack.c.l.bf16 %v2289
    %v2338 = vunpack.c.h.bf16 %v2289
    %v2339 = vunpack.c.l.bf16 %v2290
    %v2340 = vunpack.c.h.bf16 %v2290
    %v2341 = vunpack.c.l.bf16 %v2291
    %v2342 = vunpack.c.h.bf16 %v2291
    %v2343 = vunpack.c.l.bf16 %v2292
    %v2344 = vunpack.c.h.bf16 %v2292
    %v2345 = vunpack.c.l.bf16 %v2293
    %v2346 = vunpack.c.h.bf16 %v2293
    %v2347 = vunpack.c.l.bf16 %v2294
    %v2348 = vunpack.c.h.bf16 %v2294
    %v2349 = vunpack.c.l.bf16 %v2295
    %v2350 = vunpack.c.h.bf16 %v2295
    %v2351 = vunpack.c.l.bf16 %v2296
    %v2352 = vunpack.c.h.bf16 %v2296
    %v2353 = vunpack.c.l.bf16 %v2297
    %v2354 = vunpack.c.h.bf16 %v2297
    %v2355 = vunpack.c.l.bf16 %v2298
    %v2356 = vunpack.c.h.bf16 %v2298
    %v2357 = vunpack.c.l.bf16 %v2299
    %v2358 = vunpack.c.h.bf16 %v2299
    %v2359 = vunpack.c.l.bf16 %v2300
    %v2360 = vunpack.c.h.bf16 %v2300
    %v2361 = vunpack.c.l.bf16 %v2301
    %v2362 = vunpack.c.h.bf16 %v2301
    %v2363 = vunpack.c.l.bf16 %v2302
    %v2364 = vunpack.c.h.bf16 %v2302
    %v2365 = vunpack.c.l.bf16 %v2303
    %v2366 = vunpack.c.h.bf16 %v2303
    %v2367 = vunpack.c.l.bf16 %v2304
    %v2368 = vunpack.c.h.bf16 %v2304
    %v2369 = vunpack.c.l.bf16 %v2305
    %v2370 = vunpack.c.h.bf16 %v2305
    %v2371 = vunpack.c.l.bf16 %v2306
    %v2372 = vunpack.c.h.bf16 %v2306
    %v2373 = vunpack.c.l.bf16 %v2307
    %v2374 = vunpack.c.h.bf16 %v2307
    %v2375 = vunpack.c.l.bf16 %v2308
    %v2376 = vunpack.c.h.bf16 %v2308
    %v2377 = vunpack.c.l.bf16 %v2309
    %v2378 = vunpack.c.h.bf16 %v2309
    %v2379 = vunpack.c.l.bf16 %v2310
    %v2380 = vunpack.c.h.bf16 %v2310
    %v2381 = vunpack.c.l.bf16 %v2311
    %v2382 = vunpack.c.h.bf16 %v2311
    %v2383 = vunpack.c.l.bf16 %v2312
    %v2384 = vunpack.c.h.bf16 %v2312
    %v2385 = vunpack.c.l.bf16 %v2313
    %v2386 = vunpack.c.h.bf16 %v2313
    %v2387 = vunpack.c.l.bf16 %v2314
    %v2388 = vunpack.c.h.bf16 %v2314
    %v2389 = vunpack.c.l.bf16 %v2315
    %v2390 = vunpack.c.h.bf16 %v2315
    %v2391 = vunpack.c.l.bf16 %v2316
    %v2392 = vunpack.c.h.bf16 %v2316
    %v2393 = vunpack.c.l.bf16 %v2317
    %v2394 = vunpack.c.h.bf16 %v2317
    %v2395 = vunpack.c.l.bf16 %v2318
    %v2396 = vunpack.c.h.bf16 %v2318
    %v2397 = vunpack.c.l.bf16 %v2319
    %v2398 = vunpack.c.h.bf16 %v2319
    %v2399 = vunpack.c.l.bf16 %v2320
    %v2400 = vunpack.c.h.bf16 %v2320
    %v2401 = vunpack.c.l.bf16 %v2321
    %v2402 = vunpack.c.h.bf16 %v2321
    %v2403 = vunpack.c.l.bf16 %v2322
    %v2404 = vunpack.c.h.bf16 %v2322
    %v2405 = vunpack.c.l.bf16 %v2323
    %v2406 = vunpack.c.h.bf16 %v2323
    %v2407 = vunpack.c.l.bf16 %v2324
    %v2408 = vunpack.c.h.bf16 %v2324
    %v2409 = vunpack.c.l.bf16 %v2325
    %v2410 = vunpack.c.h.bf16 %v2325
    %v2411 = vunpack.c.l.bf16 %v2326
    %v2412 = vunpack.c.h.bf16 %v2326
    %v2413 = vunpack.c.l.bf16 %v2327
    %v2414 = vunpack.c.h.bf16 %v2327
    %v2415 = vunpack.c.l.bf16 %v2328
    %v2416 = vunpack.c.h.bf16 %v2328
    %v2417 = vunpack.c.l.bf16 %v2329
    %v2418 = vunpack.c.h.bf16 %v2329
    %v2419 = vunpack.c.l.bf16 %v2330
    %v2420 = vunpack.c.h.bf16 %v2330
    %v2421 = vunpack.c.l.bf16 %v2331
    %v2422 = vunpack.c.h.bf16 %v2331
    %v2423 = vunpack.c.l.bf16 %v2332
    %v2424 = vunpack.c.h.bf16 %v2332
    %v2425 = vunpack.c.l.bf16 %v2333
    %v2426 = vunpack.c.h.bf16 %v2333
    %v2427 = vunpack.c.l.bf16 %v2334
    %v2428 = vunpack.c.h.bf16 %v2334
    %v2429 = vunpack.c.l.bf16 %v2335
    %v2430 = vunpack.c.h.bf16 %v2335
    %v2431 = vunpack.c.l.bf16 %v2336
    %v2432 = vunpack.c.h.bf16 %v2336
    %v2433 = vmul.f32 %v1525, %v1525
    %v2434 = vmul.f32 %v1527, %v1527
    %v2435 = vmul.f32 %v1809, %v1809
    %v2436 = vmul.f32 %v1811, %v1811
    %v2437 = vmul.f32 %v2093, %v2093
    %v2438 = vmul.f32 %v2095, %v2095
    %v2445 = vrot.slane %v2433, 4
    %v2446 = vrot.slane %v2434, 4
    %v2447 = vrot.slane %v2435, 4
    %v2448 = vrot.slane %v2436, 4
    %v2449 = vrot.slane %v2437, 4
    %v2450 = vrot.slane %v2438, 4
    %vm2457 = vcmask 1043456
    %v2458 = vsel %vm2457, %v1525, %v2445
    %v2459 = vsel %vm2457, %v1527, %v2446
    %v2460 = vsel %vm2457, %v1809, %v2447
    %v2461 = vsel %vm2457, %v1811, %v2448
    %v2462 = vsel %vm2457, %v2093, %v2449
    %v2463 = vsel %vm2457, %v2095, %v2450
    %2464 = vmatprep.subr.mxu0 0.0
    %2465 = vmatpush1.msra.mxu0 %v2193
    %2466 = vmatprep.subr.mxu0 0.0
    %2467 = vmatpush1.msra.mxu0 %v2194
    %2468 = vmatprep.subr.mxu0 0.0
    %2469 = vmatpush1.msra.mxu0 %v2195
    %2470 = vmatprep.subr.mxu0 0.0
    %2471 = vmatpush1.msra.mxu0 %v2196
    %2472 = vmatprep.subr.mxu0 0.0
    %2473 = vmatpush1.msra.mxu0 %v2197
    %2474 = vmatprep.subr.mxu0 0.0
    %2475 = vmatpush1.msra.mxu0 %v2198
    %2476 = vmatprep.subr.mxu0 0.0
    %2477 = vmatpush1.msra.mxu0 %v2199
    %2478 = vmatprep.subr.mxu0 0.0
    %2479 = vmatpush1.msra.mxu0 %v2200
    %2480 = vmatprep.subr.mxu0 0.0
    %2481 = vmatpush1.msra.mxu0 %v2201
    %2482 = vmatprep.subr.mxu0 0.0
    %2483 = vmatpush1.msra.mxu0 %v2202
    %2484 = vmatprep.subr.mxu0 0.0
    %2485 = vmatpush1.msra.mxu0 %v2203
    %2486 = vmatprep.subr.mxu0 0.0
    %2487 = vmatpush1.msra.mxu0 %v2204
    %2488 = vmatprep.subr.mxu0 0.0
    %2489 = vmatpush1.msra.mxu0 %v2205
    %2490 = vmatprep.subr.mxu0 0.0
    %2491 = vmatpush1.msra.mxu0 %v2206
    %2492 = vmatprep.subr.mxu0 0.0
    %2493 = vmatpush1.msra.mxu0 %v2207
    %2494 = vmatprep.subr.mxu0 0.0
    %2495 = vmatpush1.msra.mxu0 %v2208
    %2496 = vmatprep.subr.mxu0 0.0
    %2497 = vmatpush1.msra.mxu0 %v2209
    %2498 = vmatprep.subr.mxu0 0.0
    %2499 = vmatpush1.msra.mxu0 %v2210
    %2500 = vmatprep.subr.mxu0 0.0
    %2501 = vmatpush1.msra.mxu0 %v2211
    %2502 = vmatprep.subr.mxu0 0.0
    %2503 = vmatpush1.msra.mxu0 %v2212
    %2504 = vmatprep.subr.mxu0 0.0
    %2505 = vmatpush1.msra.mxu0 %v2213
    %2506 = vmatprep.subr.mxu0 0.0
    %2507 = vmatpush1.msra.mxu0 %v2214
    %2508 = vmatprep.subr.mxu0 0.0
    %2509 = vmatpush1.msra.mxu0 %v2215
    %2510 = vmatprep.subr.mxu0 0.0
    %2511 = vmatpush1.msra.mxu0 %v2216
    %2512 = vmatprep.subr.mxu0 0.0
    %2513 = vmatpush1.msra.mxu0 %v2217
    %2514 = vmatprep.subr.mxu0 0.0
    %2515 = vmatpush1.msra.mxu0 %v2218
    %2516 = vmatprep.subr.mxu0 0.0
    %2517 = vmatpush1.msra.mxu0 %v2219
    %2518 = vmatprep.subr.mxu0 0.0
    %2519 = vmatpush1.msra.mxu0 %v2220
    %2520 = vmatprep.subr.mxu0 0.0
    %2521 = vmatpush1.msra.mxu0 %v2221
    %2522 = vmatprep.subr.mxu0 0.0
    %2523 = vmatpush1.msra.mxu0 %v2222
    %2524 = vmatprep.subr.mxu0 0.0
    %2525 = vmatpush1.msra.mxu0 %v2223
    %2526 = vmatprep.subr.mxu0 0.0
    %2527 = vmatpush1.msra.mxu0 %v2224
    %2528 = vmatprep.mubr.f32.mxu0 %v2459
    %2529 = vmatmul.mubr.f32.gmra.mrb[0].mxu0 %v2458
    %v2530 = vpop.f32.mrb[0].mxu0
    %v2531 = vadd.f32 0.0, %v2530
    %v2532 = vpop.f32.mrb[0].mxu0
    %2533 = vdwg.mxu0
    %2534 = vmatprep.subr.mxu0 0.0
    %2535 = vmatpush1.msra.mxu0 %v2225
    %2536 = vmatprep.subr.mxu0 0.0
    %2537 = vmatpush1.msra.mxu0 %v2226
    %2538 = vmatprep.subr.mxu0 0.0
    %2539 = vmatpush1.msra.mxu0 %v2227
    %2540 = vmatprep.subr.mxu0 0.0
    %2541 = vmatpush1.msra.mxu0 %v2228
    %2542 = vmatprep.subr.mxu0 0.0
    %2543 = vmatpush1.msra.mxu0 %v2229
    %2544 = vmatprep.subr.mxu0 0.0
    %2545 = vmatpush1.msra.mxu0 %v2230
    %2546 = vmatprep.subr.mxu0 0.0
    %2547 = vmatpush1.msra.mxu0 %v2231
    %2548 = vmatprep.subr.mxu0 0.0
    %2549 = vmatpush1.msra.mxu0 %v2232
    %2550 = vmatprep.subr.mxu0 0.0
    %2551 = vmatpush1.msra.mxu0 %v2233
    %2552 = vmatprep.subr.mxu0 0.0
    %2553 = vmatpush1.msra.mxu0 %v2234
    %2554 = vmatprep.subr.mxu0 0.0
    %2555 = vmatpush1.msra.mxu0 %v2235
    %2556 = vmatprep.subr.mxu0 0.0
    %2557 = vmatpush1.msra.mxu0 %v2236
    %2558 = vmatprep.subr.mxu0 0.0
    %2559 = vmatpush1.msra.mxu0 %v2237
    %2560 = vmatprep.subr.mxu0 0.0
    %2561 = vmatpush1.msra.mxu0 %v2238
    %2562 = vmatprep.subr.mxu0 0.0
    %2563 = vmatpush1.msra.mxu0 %v2239
    %2564 = vmatprep.subr.mxu0 0.0
    %2565 = vmatpush1.msra.mxu0 %v2240
    %2566 = vmatprep.subr.mxu0 0.0
    %2567 = vmatpush1.msra.mxu0 %v2241
    %2568 = vmatprep.subr.mxu0 0.0
    %2569 = vmatpush1.msra.mxu0 %v2242
    %2570 = vmatprep.subr.mxu0 0.0
    %2571 = vmatpush1.msra.mxu0 %v2243
    %2572 = vmatprep.subr.mxu0 0.0
    %2573 = vmatpush1.msra.mxu0 %v2244
    %2574 = vmatprep.subr.mxu0 0.0
    %2575 = vmatpush1.msra.mxu0 %v2245
    %2576 = vmatprep.subr.mxu0 0.0
    %2577 = vmatpush1.msra.mxu0 %v2246
    %2578 = vmatprep.subr.mxu0 0.0
    %2579 = vmatpush1.msra.mxu0 %v2247
    %2580 = vmatprep.subr.mxu0 0.0
    %2581 = vmatpush1.msra.mxu0 %v2248
    %2582 = vmatprep.subr.mxu0 0.0
    %2583 = vmatpush1.msra.mxu0 %v2249
    %2584 = vmatprep.subr.mxu0 0.0
    %2585 = vmatpush1.msra.mxu0 %v2250
    %2586 = vmatprep.subr.mxu0 0.0
    %2587 = vmatpush1.msra.mxu0 %v2251
    %2588 = vmatprep.subr.mxu0 0.0
    %2589 = vmatpush1.msra.mxu0 %v2252
    %2590 = vmatprep.subr.mxu0 0.0
    %2591 = vmatpush1.msra.mxu0 %v2253
    %2592 = vmatprep.subr.mxu0 0.0
    %2593 = vmatpush1.msra.mxu0 %v2254
    %2594 = vmatprep.subr.mxu0 0.0
    %2595 = vmatpush1.msra.mxu0 %v2255
    %2596 = vmatprep.subr.mxu0 0.0
    %2597 = vmatpush1.msra.mxu0 %v2256
    %2598 = vmatprep.mubr.f32.mxu0 %v2461
    %2599 = vmatmul.mubr.f32.gmra.mrb[0].mxu0 %v2460
    %v2600 = vpop.f32.mrb[0].mxu0
    %v2601 = vadd.f32 %v2531, %v2600
    %v2602 = vpop.f32.mrb[0].mxu0
    %2603 = vdwg.mxu0
    %2604 = vmatprep.subr.mxu0 0.0
    %2605 = vmatpush1.msra.mxu0 %v2257
    %2606 = vmatprep.subr.mxu0 0.0
    %2607 = vmatpush1.msra.mxu0 %v2258
    %2608 = vmatprep.subr.mxu0 0.0
    %2609 = vmatpush1.msra.mxu0 %v2259
    %2610 = vmatprep.subr.mxu0 0.0
    %2611 = vmatpush1.msra.mxu0 %v2260
    %2612 = vmatprep.subr.mxu0 0.0
    %2613 = vmatpush1.msra.mxu0 %v2261
    %2614 = vmatprep.subr.mxu0 0.0
    %2615 = vmatpush1.msra.mxu0 %v2262
    %2616 = vmatprep.subr.mxu0 0.0
    %2617 = vmatpush1.msra.mxu0 %v2263
    %2618 = vmatprep.subr.mxu0 0.0
    %2619 = vmatpush1.msra.mxu0 %v2264
    %2620 = vmatprep.subr.mxu0 0.0
    %2621 = vmatpush1.msra.mxu0 %v2265
    %2622 = vmatprep.subr.mxu0 0.0
    %2623 = vmatpush1.msra.mxu0 %v2266
    %2624 = vmatprep.subr.mxu0 0.0
    %2625 = vmatpush1.msra.mxu0 %v2267
    %2626 = vmatprep.subr.mxu0 0.0
    %2627 = vmatpush1.msra.mxu0 %v2268
    %2628 = vmatprep.subr.mxu0 0.0
    %2629 = vmatpush1.msra.mxu0 %v2269
    %2630 = vmatprep.subr.mxu0 0.0
    %2631 = vmatpush1.msra.mxu0 %v2270
    %2632 = vmatprep.subr.mxu0 0.0
    %2633 = vmatpush1.msra.mxu0 %v2271
    %2634 = vmatprep.subr.mxu0 0.0
    %2635 = vmatpush1.msra.mxu0 %v2272
    %2636 = vmatprep.subr.mxu0 0.0
    %2637 = vmatpush1.msra.mxu0 %v2273
    %2638 = vmatprep.subr.mxu0 0.0
    %2639 = vmatpush1.msra.mxu0 %v2274
    %2640 = vmatprep.subr.mxu0 0.0
    %2641 = vmatpush1.msra.mxu0 %v2275
    %2642 = vmatprep.subr.mxu0 0.0
    %2643 = vmatpush1.msra.mxu0 %v2276
    %2644 = vmatprep.subr.mxu0 0.0
    %2645 = vmatpush1.msra.mxu0 %v2277
    %2646 = vmatprep.subr.mxu0 0.0
    %2647 = vmatpush1.msra.mxu0 %v2278
    %2648 = vmatprep.subr.mxu0 0.0
    %2649 = vmatpush1.msra.mxu0 %v2279
    %2650 = vmatprep.subr.mxu0 0.0
    %2651 = vmatpush1.msra.mxu0 %v2280
    %2652 = vmatprep.subr.mxu0 0.0
    %2653 = vmatpush1.msra.mxu0 %v2281
    %2654 = vmatprep.subr.mxu0 0.0
    %2655 = vmatpush1.msra.mxu0 %v2282
    %2656 = vmatprep.subr.mxu0 0.0
    %2657 = vmatpush1.msra.mxu0 %v2283
    %2658 = vmatprep.subr.mxu0 0.0
    %2659 = vmatpush1.msra.mxu0 %v2284
    %2660 = vmatprep.subr.mxu0 0.0
    %2661 = vmatpush1.msra.mxu0 %v2285
    %2662 = vmatprep.subr.mxu0 0.0
    %2663 = vmatpush1.msra.mxu0 %v2286
    %2664 = vmatprep.subr.mxu0 0.0
    %2665 = vmatpush1.msra.mxu0 %v2287
    %2666 = vmatprep.subr.mxu0 0.0
    %2667 = vmatpush1.msra.mxu0 %v2288
    %2668 = vmatprep.mubr.f32.mxu0 %v2463
    %2669 = vmatmul.mubr.f32.gmra.mrb[0].mxu0 %v2462
    %v2670 = vpop.f32.mrb[0].mxu0
    %v2671 = vadd.f32 %v2601, %v2670
    %v2672 = vpop.f32.mrb[0].mxu0
    %2673 = vdwg.mxu0
    %vm2674 = vcmask 1041408
    %v2675 = vsel %vm2674, %v2671, 0.0
    %v2676 = vrot.slane %v2675, 4
    %v2677 = vadd.f32 %v2675, %v2676
    %v2678 = vrot.slane %v2677, 2
    %v2679 = vadd.f32 %v2677, %v2678
    %v2680 = vrot.slane %v2679, 1
    %v2681 = vadd.f32 %v2679, %v2680
    %v2682 = vmul.f32 %v2681, 0.0078125
    %v2684 = vrot.slane %v2671, 2
    %v2686 = vsel %vm2674, %v2684, 0.0
    %v2687 = vrot.slane %v2686, 4
    %v2688 = vadd.f32 %v2686, %v2687
    %v2689 = vrot.slane %v2688, 2
    %v2690 = vadd.f32 %v2688, %v2689
    %v2691 = vrot.slane %v2690, 1
    %v2692 = vadd.f32 %v2690, %v2691
    %v2693 = vmul.f32 %v2692, 0.0078125
    %v2694 = vrot.slane %v2671, 4
    %v2696 = vsel %vm2674, %v2694, 0.0
    %v2697 = vrot.slane %v2696, 4
    %v2698 = vadd.f32 %v2696, %v2697
    %v2699 = vrot.slane %v2698, 2
    %v2700 = vadd.f32 %v2698, %v2699
    %v2701 = vrot.slane %v2700, 1
    %v2702 = vadd.f32 %v2700, %v2701
    %v2703 = vmul.f32 %v2702, 0.0078125
    %v2704 = vrot.slane %v2671, 6
    %v2706 = vsel %vm2674, %v2704, 0.0
    %v2707 = vrot.slane %v2706, 4
    %v2708 = vadd.f32 %v2706, %v2707
    %v2709 = vrot.slane %v2708, 2
    %v2710 = vadd.f32 %v2708, %v2709
    %v2711 = vrot.slane %v2710, 1
    %v2712 = vadd.f32 %v2710, %v2711
    %v2713 = vmul.f32 %v2712, 0.0078125
    %v2714 = vmul.f32 %v2682, %v2682
    %v2715 = vsub.f32 %v2703, %v2714
    %v2716 = vadd.f32 %v2715, 1e-05
    %v2717 = vrsqrt.pop %v2716
    %v2718 = vmul.f32 %v2693, %v2693
    %v2719 = vsub.f32 %v2713, %v2718
    %v2720 = vadd.f32 %v2719, 1e-05
    %v2721 = vrsqrt.pop %v2720
    %v2722 = vsub.f32 0.0, %v2682
    %v2723 = vmul.f32 %v2722, %v2717
    %v2724 = vsub.f32 0.0, %v2693
    %v2725 = vmul.f32 %v2724, %v2721
    %v2726 = vsel %vm2674, %v2717, %v2721
    %vm2727 = vcmask 1042432
    %v2728 = vsel %vm2727, %v2726, %v2721
    %v2729 = vsel %vm2457, %v2728, %v2723
    %vm2730 = vcmask 1044480
    %v2731 = vsel %vm2730, %v2729, %v2723
    %vm2732 = vcmask 1045504
    %v2733 = vsel %vm2732, %v2731, %v2725
    %vm2734 = vcmask 1046528
    %v2735 = vsel %vm2734, %v2733, %v2725
    %2736 = vmatprep.subr.mxu0 %v2338
    %2737 = vmatpush1.msra.mxu0 %v2337
    %2738 = vmatprep.subr.mxu0 %v2344
    %2739 = vmatpush1.msra.mxu0 %v2343
    %2740 = vmatprep.subr.mxu0 %v2350
    %2741 = vmatpush1.msra.mxu0 %v2349
    %2742 = vmatprep.subr.mxu0 %v2356
    %2743 = vmatpush1.msra.mxu0 %v2355
    %2744 = vmatprep.subr.mxu0 %v2362
    %2745 = vmatpush1.msra.mxu0 %v2361
    %2746 = vmatprep.subr.mxu0 %v2368
    %2747 = vmatpush1.msra.mxu0 %v2367
    %2748 = vmatprep.subr.mxu0 %v2374
    %2749 = vmatpush1.msra.mxu0 %v2373
    %2750 = vmatprep.subr.mxu0 %v2380
    %2751 = vmatpush1.msra.mxu0 %v2379
    %2752 = vmatprep.subr.mxu0 %v2386
    %2753 = vmatpush1.msra.mxu0 %v2385
    %2754 = vmatprep.subr.mxu0 %v2392
    %2755 = vmatpush1.msra.mxu0 %v2391
    %2756 = vmatprep.subr.mxu0 %v2398
    %2757 = vmatpush1.msra.mxu0 %v2397
    %2758 = vmatprep.subr.mxu0 %v2404
    %2759 = vmatpush1.msra.mxu0 %v2403
    %2760 = vmatprep.subr.mxu0 %v2410
    %2761 = vmatpush1.msra.mxu0 %v2409
    %2762 = vmatprep.subr.mxu0 %v2416
    %2763 = vmatpush1.msra.mxu0 %v2415
    %2764 = vmatprep.subr.mxu0 %v2422
    %2765 = vmatpush1.msra.mxu0 %v2421
    %2766 = vmatprep.subr.mxu0 %v2428
    %2767 = vmatpush1.msra.mxu0 %v2427
    %2768 = vmatprep.subr.mxu0 0.0
    %2769 = vmatpush1.msra.mxu0 0.0
    %2770 = vmatprep.subr.mxu0 0.0
    %2771 = vmatpush1.msra.mxu0 0.0
    %2772 = vmatprep.subr.mxu0 0.0
    %2773 = vmatpush1.msra.mxu0 0.0
    %2774 = vmatprep.subr.mxu0 0.0
    %2775 = vmatpush1.msra.mxu0 0.0
    %2776 = vmatprep.subr.mxu0 0.0
    %2777 = vmatpush1.msra.mxu0 0.0
    %2778 = vmatprep.subr.mxu0 0.0
    %2779 = vmatpush1.msra.mxu0 0.0
    %2780 = vmatprep.subr.mxu0 0.0
    %2781 = vmatpush1.msra.mxu0 0.0
    %2782 = vmatprep.subr.mxu0 0.0
    %2783 = vmatpush1.msra.mxu0 0.0
    %2784 = vmatprep.subr.mxu0 0.0
    %2785 = vmatpush1.msra.mxu0 0.0
    %2786 = vmatprep.subr.mxu0 0.0
    %2787 = vmatpush1.msra.mxu0 0.0
    %2788 = vmatprep.subr.mxu0 0.0
    %2789 = vmatpush1.msra.mxu0 0.0
    %2790 = vmatprep.subr.mxu0 0.0
    %2791 = vmatpush1.msra.mxu0 0.0
    %2792 = vmatprep.subr.mxu0 0.0
    %2793 = vmatpush1.msra.mxu0 0.0
    %2794 = vmatprep.subr.mxu0 0.0
    %2795 = vmatpush1.msra.mxu0 0.0
    %2796 = vmatprep.subr.mxu0 0.0
    %2797 = vmatpush1.msra.mxu0 0.0
    %2798 = vmatprep.subr.mxu0 0.0
    %2799 = vmatpush1.msra.mxu0 0.0
    %2800 = vmatprep.mubr.f32.mxu0 0.0
    %2801 = vmatmul.mubr.f32.gmra.mrb[0].mxu0 %v2735
    %v2802 = vpop.f32.mrb[0].mxu0
    %v2803 = vadd.f32 0.0, %v2802
    %v2804 = vpop.f32.mrb[0].mxu0
    %v2805 = vadd.f32 0.0, %v2804
    %2806 = vdwg.mxu0
    %2807 = vmatprep.subr.mxu0 %v2340
    %2808 = vmatpush1.msra.mxu0 %v2339
    %2809 = vmatprep.subr.mxu0 %v2346
    %2810 = vmatpush1.msra.mxu0 %v2345
    %2811 = vmatprep.subr.mxu0 %v2352
    %2812 = vmatpush1.msra.mxu0 %v2351
    %2813 = vmatprep.subr.mxu0 %v2358
    %2814 = vmatpush1.msra.mxu0 %v2357
    %2815 = vmatprep.subr.mxu0 %v2364
    %2816 = vmatpush1.msra.mxu0 %v2363
    %2817 = vmatprep.subr.mxu0 %v2370
    %2818 = vmatpush1.msra.mxu0 %v2369
    %2819 = vmatprep.subr.mxu0 %v2376
    %2820 = vmatpush1.msra.mxu0 %v2375
    %2821 = vmatprep.subr.mxu0 %v2382
    %2822 = vmatpush1.msra.mxu0 %v2381
    %2823 = vmatprep.subr.mxu0 %v2388
    %2824 = vmatpush1.msra.mxu0 %v2387
    %2825 = vmatprep.subr.mxu0 %v2394
    %2826 = vmatpush1.msra.mxu0 %v2393
    %2827 = vmatprep.subr.mxu0 %v2400
    %2828 = vmatpush1.msra.mxu0 %v2399
    %2829 = vmatprep.subr.mxu0 %v2406
    %2830 = vmatpush1.msra.mxu0 %v2405
    %2831 = vmatprep.subr.mxu0 %v2412
    %2832 = vmatpush1.msra.mxu0 %v2411
    %2833 = vmatprep.subr.mxu0 %v2418
    %2834 = vmatpush1.msra.mxu0 %v2417
    %2835 = vmatprep.subr.mxu0 %v2424
    %2836 = vmatpush1.msra.mxu0 %v2423
    %2837 = vmatprep.subr.mxu0 %v2430
    %2838 = vmatpush1.msra.mxu0 %v2429
    %2839 = vmatprep.subr.mxu0 0.0
    %2840 = vmatpush1.msra.mxu0 0.0
    %2841 = vmatprep.subr.mxu0 0.0
    %2842 = vmatpush1.msra.mxu0 0.0
    %2843 = vmatprep.subr.mxu0 0.0
    %2844 = vmatpush1.msra.mxu0 0.0
    %2845 = vmatprep.subr.mxu0 0.0
    %2846 = vmatpush1.msra.mxu0 0.0
    %2847 = vmatprep.subr.mxu0 0.0
    %2848 = vmatpush1.msra.mxu0 0.0
    %2849 = vmatprep.subr.mxu0 0.0
    %2850 = vmatpush1.msra.mxu0 0.0
    %2851 = vmatprep.subr.mxu0 0.0
    %2852 = vmatpush1.msra.mxu0 0.0
    %2853 = vmatprep.subr.mxu0 0.0
    %2854 = vmatpush1.msra.mxu0 0.0
    %2855 = vmatprep.subr.mxu0 0.0
    %2856 = vmatpush1.msra.mxu0 0.0
    %2857 = vmatprep.subr.mxu0 0.0
    %2858 = vmatpush1.msra.mxu0 0.0
    %2859 = vmatprep.subr.mxu0 0.0
    %2860 = vmatpush1.msra.mxu0 0.0
    %2861 = vmatprep.subr.mxu0 0.0
    %2862 = vmatpush1.msra.mxu0 0.0
    %2863 = vmatprep.subr.mxu0 0.0
    %2864 = vmatpush1.msra.mxu0 0.0
    %2865 = vmatprep.subr.mxu0 0.0
    %2866 = vmatpush1.msra.mxu0 0.0
    %2867 = vmatprep.subr.mxu0 0.0
    %2868 = vmatpush1.msra.mxu0 0.0
    %2869 = vmatprep.subr.mxu0 0.0
    %2870 = vmatpush1.msra.mxu0 0.0
    %2871 = vmatprep.mubr.f32.mxu0 0.0
    %2872 = vmatmul.mubr.f32.gmra.mrb[0].mxu0 %v2735
    %v2873 = vpop.f32.mrb[0].mxu0
    %v2874 = vadd.f32 0.0, %v2873
    %v2875 = vpop.f32.mrb[0].mxu0
    %v2876 = vadd.f32 0.0, %v2875
    %2877 = vdwg.mxu0
    %2878 = vmatprep.subr.mxu0 %v2342
    %2879 = vmatpush1.msra.mxu0 %v2341
    %2880 = vmatprep.subr.mxu0 %v2348
    %2881 = vmatpush1.msra.mxu0 %v2347
    %2882 = vmatprep.subr.mxu0 %v2354
    %2883 = vmatpush1.msra.mxu0 %v2353
    %2884 = vmatprep.subr.mxu0 %v2360
    %2885 = vmatpush1.msra.mxu0 %v2359
    %2886 = vmatprep.subr.mxu0 %v2366
    %2887 = vmatpush1.msra.mxu0 %v2365
    %2888 = vmatprep.subr.mxu0 %v2372
    %2889 = vmatpush1.msra.mxu0 %v2371
    %2890 = vmatprep.subr.mxu0 %v2378
    %2891 = vmatpush1.msra.mxu0 %v2377
    %2892 = vmatprep.subr.mxu0 %v2384
    %2893 = vmatpush1.msra.mxu0 %v2383
    %2894 = vmatprep.subr.mxu0 %v2390
    %2895 = vmatpush1.msra.mxu0 %v2389
    %2896 = vmatprep.subr.mxu0 %v2396
    %2897 = vmatpush1.msra.mxu0 %v2395
    %2898 = vmatprep.subr.mxu0 %v2402
    %2899 = vmatpush1.msra.mxu0 %v2401
    %2900 = vmatprep.subr.mxu0 %v2408
    %2901 = vmatpush1.msra.mxu0 %v2407
    %2902 = vmatprep.subr.mxu0 %v2414
    %2903 = vmatpush1.msra.mxu0 %v2413
    %2904 = vmatprep.subr.mxu0 %v2420
    %2905 = vmatpush1.msra.mxu0 %v2419
    %2906 = vmatprep.subr.mxu0 %v2426
    %2907 = vmatpush1.msra.mxu0 %v2425
    %2908 = vmatprep.subr.mxu0 %v2432
    %2909 = vmatpush1.msra.mxu0 %v2431
    %2910 = vmatprep.subr.mxu0 0.0
    %2911 = vmatpush1.msra.mxu0 0.0
    %2912 = vmatprep.subr.mxu0 0.0
    %2913 = vmatpush1.msra.mxu0 0.0
    %2914 = vmatprep.subr.mxu0 0.0
    %2915 = vmatpush1.msra.mxu0 0.0
    %2916 = vmatprep.subr.mxu0 0.0
    %2917 = vmatpush1.msra.mxu0 0.0
    %2918 = vmatprep.subr.mxu0 0.0
    %2919 = vmatpush1.msra.mxu0 0.0
    %2920 = vmatprep.subr.mxu0 0.0
    %2921 = vmatpush1.msra.mxu0 0.0
    %2922 = vmatprep.subr.mxu0 0.0
    %2923 = vmatpush1.msra.mxu0 0.0
    %2924 = vmatprep.subr.mxu0 0.0
    %2925 = vmatpush1.msra.mxu0 0.0
    %2926 = vmatprep.subr.mxu0 0.0
    %2927 = vmatpush1.msra.mxu0 0.0
    %2928 = vmatprep.subr.mxu0 0.0
    %2929 = vmatpush1.msra.mxu0 0.0
    %2930 = vmatprep.subr.mxu0 0.0
    %2931 = vmatpush1.msra.mxu0 0.0
    %2932 = vmatprep.subr.mxu0 0.0
    %2933 = vmatpush1.msra.mxu0 0.0
    %2934 = vmatprep.subr.mxu0 0.0
    %2935 = vmatpush1.msra.mxu0 0.0
    %2936 = vmatprep.subr.mxu0 0.0
    %2937 = vmatpush1.msra.mxu0 0.0
    %2938 = vmatprep.subr.mxu0 0.0
    %2939 = vmatpush1.msra.mxu0 0.0
    %2940 = vmatprep.subr.mxu0 0.0
    %2941 = vmatpush1.msra.mxu0 0.0
    %2942 = vmatprep.mubr.f32.mxu0 0.0
    %2943 = vmatmul.mubr.f32.gmra.mrb[0].mxu0 %v2735
    %v2944 = vpop.f32.mrb[0].mxu0
    %v2945 = vadd.f32 0.0, %v2944
    %v2946 = vpop.f32.mrb[0].mxu0
    %v2947 = vadd.f32 0.0, %v2946
    %2948 = vdwg.mxu0
    %v2949 = vmul.f32 %v1525, %v2803
    %v2950 = vmul.f32 %v1527, %v2805
    %v2951 = vmul.f32 %v1809, %v2874
    %v2952 = vmul.f32 %v1811, %v2876
    %v2953 = vmul.f32 %v2093, %v2945
    %v2954 = vmul.f32 %v2095, %v2947
    %v2961 = vrot.slane %v2803, 4
    %v2962 = vrot.slane %v2805, 4
    %v2963 = vrot.slane %v2874, 4
    %v2964 = vrot.slane %v2876, 4
    %v2965 = vrot.slane %v2945, 4
    %v2966 = vrot.slane %v2947, 4
    %v2973 = vadd.f32 %v2949, %v2961
    %v2974 = vadd.f32 %v2950, %v2962
    %v2975 = vadd.f32 %v2951, %v2963
    %v2976 = vadd.f32 %v2952, %v2964
    %v2977 = vadd.f32 %v2953, %v2965
    %v2978 = vadd.f32 %v2954, %v2966
    %v2979 = vmax.f32 %v2973, 0.0
    %v2980 = vmax.f32 %v2974, 0.0
    %v2981 = vmax.f32 %v2975, 0.0
    %v2982 = vmax.f32 %v2976, 0.0
    %v2983 = vmax.f32 %v2977, 0.0
    %v2984 = vmax.f32 %v2978, 0.0
    %v2985 = vld [vmem:[#allocation4] sm:$0xff]
    %v2986 = vld [vmem:[#allocation4 + $0xc] sm:$0xff]
    %v2987 = vld [vmem:[#allocation4 + $0x18] sm:$0xff]
    %v2988 = vld [vmem:[#allocation4 + $0x24] sm:$0xff]
    %v2989 = vld [vmem:[#allocation4 + $0x30] sm:$0xff]
    %v2990 = vld [vmem:[#allocation4 + $0x3c] sm:$0xff]
    %v2991 = vld [vmem:[#allocation4 + $0x48] sm:$0xff]
    %v2992 = vld [vmem:[#allocation4 + $0x54] sm:$0xff]
    %v2993 = vld [vmem:[#allocation4 + $0x60] sm:$0xff]
    %v2994 = vld [vmem:[#allocation4 + $0x6c] sm:$0xff]
    %v2995 = vld [vmem:[#allocation4 + $0x78] sm:$0xff]
    %v2996 = vld [vmem:[#allocation4 + $0x84] sm:$0xff]
    %v2997 = vld [vmem:[#allocation4 + $0x90] sm:$0xff]
    %v2998 = vld [vmem:[#allocation4 + $0x9c] sm:$0xff]
    %v2999 = vld [vmem:[#allocation4 + $0xa8] sm:$0xff]
    %v3000 = vld [vmem:[#allocation4 + $0xb4] sm:$0xff]
    %v3001 = vld [vmem:[#allocation4 + $0xc0] sm:$0xff]
    %v3002 = vld [vmem:[#allocation4 + $0xcc] sm:$0xff]
    %v3003 = vld [vmem:[#allocation4 + $0xd8] sm:$0xff]
    %v3004 = vld [vmem:[#allocation4 + $0xe4] sm:$0xff]
    %v3005 = vld [vmem:[#allocation4 + $0xf0] sm:$0xff]
    %v3006 = vld [vmem:[#allocation4 + $0xfc] sm:$0xff]
    %v3007 = vld [vmem:[#allocation4 + $0x108] sm:$0xff]
    %v3008 = vld [vmem:[#allocation4 + $0x114] sm:$0xff]
    %v3009 = vld [vmem:[#allocation4 + $0x120] sm:$0xff]
    %v3010 = vld [vmem:[#allocation4 + $0x12c] sm:$0xff]
    %v3011 = vld [vmem:[#allocation4 + $0x138] sm:$0xff]
    %v3012 = vld [vmem:[#allocation4 + $0x144] sm:$0xff]
    %v3013 = vld [vmem:[#allocation4 + $0x150] sm:$0xff]
    %v3014 = vld [vmem:[#allocation4 + $0x15c] sm:$0xff]
    %v3015 = vld [vmem:[#allocation4 + $0x168] sm:$0xff]
    %v3016 = vld [vmem:[#allocation4 + $0x174] sm:$0xff]
    %v3017 = vld [vmem:[#allocation4 + $0x180] sm:$0xff]
    %v3018 = vld [vmem:[#allocation4 + $0x18c] sm:$0xff]
    %v3019 = vld [vmem:[#allocation4 + $0x198] sm:$0xff]
    %v3020 = vld [vmem:[#allocation4 + $0x1a4] sm:$0xff]
    %v3021 = vld [vmem:[#allocation4 + $0x1b0] sm:$0xff]
    %v3022 = vld [vmem:[#allocation4 + $0x1bc] sm:$0xff]
    %v3023 = vld [vmem:[#allocation4 + $0x1c8] sm:$0xff]
    %v3024 = vld [vmem:[#allocation4 + $0x1d4] sm:$0xff]
    %v3025 = vld [vmem:[#allocation4 + $0x1e0] sm:$0xff]
    %v3026 = vld [vmem:[#allocation4 + $0x1ec] sm:$0xff]
    %v3027 = vld [vmem:[#allocation4 + $0x1f8] sm:$0xff]
    %v3028 = vld [vmem:[#allocation4 + $0x204] sm:$0xff]
    %v3029 = vld [vmem:[#allocation4 + $0x210] sm:$0xff]
    %v3030 = vld [vmem:[#allocation4 + $0x21c] sm:$0xff]
    %v3031 = vld [vmem:[#allocation4 + $0x228] sm:$0xff]
    %v3032 = vld [vmem:[#allocation4 + $0x234] sm:$0xff]
    %v3033 = vld [vmem:[#allocation4 + $0x240] sm:$0xff]
    %v3034 = vld [vmem:[#allocation4 + $0x24c] sm:$0xff]
    %v3035 = vld [vmem:[#allocation4 + $0x258] sm:$0xff]
    %v3036 = vld [vmem:[#allocation4 + $0x264] sm:$0xff]
    %v3037 = vld [vmem:[#allocation4 + $0x270] sm:$0xff]
    %v3038 = vld [vmem:[#allocation4 + $0x27c] sm:$0xff]
    %v3039 = vld [vmem:[#allocation4 + $0x288] sm:$0xff]
    %v3040 = vld [vmem:[#allocation4 + $0x294] sm:$0xff]
    %v3041 = vld [vmem:[#allocation4 + $0x2a0] sm:$0xff]
    %v3042 = vld [vmem:[#allocation4 + $0x2ac] sm:$0xff]
    %v3043 = vld [vmem:[#allocation4 + $0x2b8] sm:$0xff]
    %v3044 = vld [vmem:[#allocation4 + $0x2c4] sm:$0xff]
    %v3045 = vld [vmem:[#allocation4 + $0x2d0] sm:$0xff]
    %v3046 = vld [vmem:[#allocation4 + $0x2dc] sm:$0xff]
    %v3047 = vld [vmem:[#allocation4 + $0x2e8] sm:$0xff]
    %v3048 = vld [vmem:[#allocation4 + $0x2f4] sm:$0xff]
    %v3049 = vld [vmem:[#allocation4 + $0x300] sm:$0xff]
    %v3050 = vld [vmem:[#allocation4 + $0x30c] sm:$0xff]
    %v3051 = vld [vmem:[#allocation4 + $0x318] sm:$0xff]
    %v3052 = vld [vmem:[#allocation4 + $0x324] sm:$0xff]
    %v3053 = vld [vmem:[#allocation4 + $0x330] sm:$0xff]
    %v3054 = vld [vmem:[#allocation4 + $0x33c] sm:$0xff]
    %v3055 = vld [vmem:[#allocation4 + $0x348] sm:$0xff]
    %v3056 = vld [vmem:[#allocation4 + $0x354] sm:$0xff]
    %v3057 = vld [vmem:[#allocation4 + $0x360] sm:$0xff]
    %v3058 = vld [vmem:[#allocation4 + $0x36c] sm:$0xff]
    %v3059 = vld [vmem:[#allocation4 + $0x378] sm:$0xff]
    %v3060 = vld [vmem:[#allocation4 + $0x384] sm:$0xff]
    %v3061 = vld [vmem:[#allocation4 + $0x390] sm:$0xff]
    %v3062 = vld [vmem:[#allocation4 + $0x39c] sm:$0xff]
    %v3063 = vld [vmem:[#allocation4 + $0x3a8] sm:$0xff]
    %v3064 = vld [vmem:[#allocation4 + $0x3b4] sm:$0xff]
    %v3065 = vld [vmem:[#allocation4 + $0x3c0] sm:$0xff]
    %v3066 = vld [vmem:[#allocation4 + $0x3cc] sm:$0xff]
    %v3067 = vld [vmem:[#allocation4 + $0x3d8] sm:$0xff]
    %v3068 = vld [vmem:[#allocation4 + $0x3e4] sm:$0xff]
    %v3069 = vld [vmem:[#allocation4 + $0x3f0] sm:$0xff]
    %v3070 = vld [vmem:[#allocation4 + $0x3fc] sm:$0xff]
    %v3071 = vld [vmem:[#allocation4 + $0x408] sm:$0xff]
    %v3072 = vld [vmem:[#allocation4 + $0x414] sm:$0xff]
    %v3073 = vld [vmem:[#allocation4 + $0x420] sm:$0xff]
    %v3074 = vld [vmem:[#allocation4 + $0x42c] sm:$0xff]
    %v3075 = vld [vmem:[#allocation4 + $0x438] sm:$0xff]
    %v3076 = vld [vmem:[#allocation4 + $0x444] sm:$0xff]
    %v3077 = vld [vmem:[#allocation4 + $0x450] sm:$0xff]
    %v3078 = vld [vmem:[#allocation4 + $0x45c] sm:$0xff]
    %v3079 = vld [vmem:[#allocation4 + $0x468] sm:$0xff]
    %v3080 = vld [vmem:[#allocation4 + $0x474] sm:$0xff]
    %v3081 = vunpack.c.l.bf16 %v2985
    %v3082 = vunpack.c.h.bf16 %v2985
    %v3083 = vunpack.c.l.bf16 %v2986
    %v3084 = vunpack.c.h.bf16 %v2986
    %v3085 = vunpack.c.l.bf16 %v2987
    %v3086 = vunpack.c.h.bf16 %v2987
    %v3087 = vunpack.c.l.bf16 %v2988
    %v3088 = vunpack.c.h.bf16 %v2988
    %v3089 = vunpack.c.l.bf16 %v2989
    %v3090 = vunpack.c.h.bf16 %v2989
    %v3091 = vunpack.c.l.bf16 %v2990
    %v3092 = vunpack.c.h.bf16 %v2990
    %v3093 = vunpack.c.l.bf16 %v2991
    %v3094 = vunpack.c.h.bf16 %v2991
    %v3095 = vunpack.c.l.bf16 %v2992
    %v3096 = vunpack.c.h.bf16 %v2992
    %v3097 = vunpack.c.l.bf16 %v2993
    %v3098 = vunpack.c.h.bf16 %v2993
    %v3099 = vunpack.c.l.bf16 %v2994
    %v3100 = vunpack.c.h.bf16 %v2994
    %v3101 = vunpack.c.l.bf16 %v2995
    %v3102 = vunpack.c.h.bf16 %v2995
    %v3103 = vunpack.c.l.bf16 %v2996
    %v3104 = vunpack.c.h.bf16 %v2996
    %v3105 = vunpack.c.l.bf16 %v2997
    %v3106 = vunpack.c.h.bf16 %v2997
    %v3107 = vunpack.c.l.bf16 %v2998
    %v3108 = vunpack.c.h.bf16 %v2998
    %v3109 = vunpack.c.l.bf16 %v2999
    %v3110 = vunpack.c.h.bf16 %v2999
    %v3111 = vunpack.c.l.bf16 %v3000
    %v3112 = vunpack.c.h.bf16 %v3000
    %v3113 = vunpack.c.l.bf16 %v3001
    %v3114 = vunpack.c.h.bf16 %v3001
    %v3115 = vunpack.c.l.bf16 %v3002
    %v3116 = vunpack.c.h.bf16 %v3002
    %v3117 = vunpack.c.l.bf16 %v3003
    %v3118 = vunpack.c.h.bf16 %v3003
    %v3119 = vunpack.c.l.bf16 %v3004
    %v3120 = vunpack.c.h.bf16 %v3004
    %v3121 = vunpack.c.l.bf16 %v3005
    %v3122 = vunpack.c.h.bf16 %v3005
    %v3123 = vunpack.c.l.bf16 %v3006
    %v3124 = vunpack.c.h.bf16 %v3006
    %v3125 = vunpack.c.l.bf16 %v3007
    %v3126 = vunpack.c.h.bf16 %v3007
    %v3127 = vunpack.c.l.bf16 %v3008
    %v3128 = vunpack.c.h.bf16 %v3008
    %v3129 = vunpack.c.l.bf16 %v3009
    %v3130 = vunpack.c.h.bf16 %v3009
    %v3131 = vunpack.c.l.bf16 %v3010
    %v3132 = vunpack.c.h.bf16 %v3010
    %v3133 = vunpack.c.l.bf16 %v3011
    %v3134 = vunpack.c.h.bf16 %v3011
    %v3135 = vunpack.c.l.bf16 %v3012
    %v3136 = vunpack.c.h.bf16 %v3012
    %v3137 = vunpack.c.l.bf16 %v3013
    %v3138 = vunpack.c.h.bf16 %v3013
    %v3139 = vunpack.c.l.bf16 %v3014
    %v3140 = vunpack.c.h.bf16 %v3014
    %v3141 = vunpack.c.l.bf16 %v3015
    %v3142 = vunpack.c.h.bf16 %v3015
    %v3143 = vunpack.c.l.bf16 %v3016
    %v3144 = vunpack.c.h.bf16 %v3016
    %v3145 = vunpack.c.l.bf16 %v3017
    %v3146 = vunpack.c.h.bf16 %v3017
    %v3147 = vunpack.c.l.bf16 %v3018
    %v3148 = vunpack.c.h.bf16 %v3018
    %v3149 = vunpack.c.l.bf16 %v3019
    %v3150 = vunpack.c.h.bf16 %v3019
    %v3151 = vunpack.c.l.bf16 %v3020
    %v3152 = vunpack.c.h.bf16 %v3020
    %v3153 = vunpack.c.l.bf16 %v3021
    %v3154 = vunpack.c.h.bf16 %v3021
    %v3155 = vunpack.c.l.bf16 %v3022
    %v3156 = vunpack.c.h.bf16 %v3022
    %v3157 = vunpack.c.l.bf16 %v3023
    %v3158 = vunpack.c.h.bf16 %v3023
    %v3159 = vunpack.c.l.bf16 %v3024
    %v3160 = vunpack.c.h.bf16 %v3024
    %v3161 = vunpack.c.l.bf16 %v3025
    %v3162 = vunpack.c.h.bf16 %v3025
    %v3163 = vunpack.c.l.bf16 %v3026
    %v3164 = vunpack.c.h.bf16 %v3026
    %v3165 = vunpack.c.l.bf16 %v3027
    %v3166 = vunpack.c.h.bf16 %v3027
    %v3167 = vunpack.c.l.bf16 %v3028
    %v3168 = vunpack.c.h.bf16 %v3028
    %v3169 = vunpack.c.l.bf16 %v3029
    %v3170 = vunpack.c.h.bf16 %v3029
    %v3171 = vunpack.c.l.bf16 %v3030
    %v3172 = vunpack.c.h.bf16 %v3030
    %v3173 = vunpack.c.l.bf16 %v3031
    %v3174 = vunpack.c.h.bf16 %v3031
    %v3175 = vunpack.c.l.bf16 %v3032
    %v3176 = vunpack.c.h.bf16 %v3032
    %v3177 = vunpack.c.l.bf16 %v3033
    %v3178 = vunpack.c.h.bf16 %v3033
    %v3179 = vunpack.c.l.bf16 %v3034
    %v3180 = vunpack.c.h.bf16 %v3034
    %v3181 = vunpack.c.l.bf16 %v3035
    %v3182 = vunpack.c.h.bf16 %v3035
    %v3183 = vunpack.c.l.bf16 %v3036
    %v3184 = vunpack.c.h.bf16 %v3036
    %v3185 = vunpack.c.l.bf16 %v3037
    %v3186 = vunpack.c.h.bf16 %v3037
    %v3187 = vunpack.c.l.bf16 %v3038
    %v3188 = vunpack.c.h.bf16 %v3038
    %v3189 = vunpack.c.l.bf16 %v3039
    %v3190 = vunpack.c.h.bf16 %v3039
    %v3191 = vunpack.c.l.bf16 %v3040
    %v3192 = vunpack.c.h.bf16 %v3040
    %v3193 = vunpack.c.l.bf16 %v3041
    %v3194 = vunpack.c.h.bf16 %v3041
    %v3195 = vunpack.c.l.bf16 %v3042
    %v3196 = vunpack.c.h.bf16 %v3042
    %v3197 = vunpack.c.l.bf16 %v3043
    %v3198 = vunpack.c.h.bf16 %v3043
    %v3199 = vunpack.c.l.bf16 %v3044
    %v3200 = vunpack.c.h.bf16 %v3044
    %v3201 = vunpack.c.l.bf16 %v3045
    %v3202 = vunpack.c.h.bf16 %v3045
    %v3203 = vunpack.c.l.bf16 %v3046
    %v3204 = vunpack.c.h.bf16 %v3046
    %v3205 = vunpack.c.l.bf16 %v3047
    %v3206 = vunpack.c.h.bf16 %v3047
    %v3207 = vunpack.c.l.bf16 %v3048
    %v3208 = vunpack.c.h.bf16 %v3048
    %v3209 = vunpack.c.l.bf16 %v3049
    %v3210 = vunpack.c.h.bf16 %v3049
    %v3211 = vunpack.c.l.bf16 %v3050
    %v3212 = vunpack.c.h.bf16 %v3050
    %v3213 = vunpack.c.l.bf16 %v3051
    %v3214 = vunpack.c.h.bf16 %v3051
    %v3215 = vunpack.c.l.bf16 %v3052
    %v3216 = vunpack.c.h.bf16 %v3052
    %v3217 = vunpack.c.l.bf16 %v3053
    %v3218 = vunpack.c.h.bf16 %v3053
    %v3219 = vunpack.c.l.bf16 %v3054
    %v3220 = vunpack.c.h.bf16 %v3054
    %v3221 = vunpack.c.l.bf16 %v3055
    %v3222 = vunpack.c.h.bf16 %v3055
    %v3223 = vunpack.c.l.bf16 %v3056
    %v3224 = vunpack.c.h.bf16 %v3056
    %v3225 = vunpack.c.l.bf16 %v3057
    %v3226 = vunpack.c.h.bf16 %v3057
    %v3227 = vunpack.c.l.bf16 %v3058
    %v3228 = vunpack.c.h.bf16 %v3058
    %v3229 = vunpack.c.l.bf16 %v3059
    %v3230 = vunpack.c.h.bf16 %v3059
    %v3231 = vunpack.c.l.bf16 %v3060
    %v3232 = vunpack.c.h.bf16 %v3060
    %v3233 = vunpack.c.l.bf16 %v3061
    %v3234 = vunpack.c.h.bf16 %v3061
    %v3235 = vunpack.c.l.bf16 %v3062
    %v3236 = vunpack.c.h.bf16 %v3062
    %v3237 = vunpack.c.l.bf16 %v3063
    %v3238 = vunpack.c.h.bf16 %v3063
    %v3239 = vunpack.c.l.bf16 %v3064
    %v3240 = vunpack.c.h.bf16 %v3064
    %v3241 = vunpack.c.l.bf16 %v3065
    %v3242 = vunpack.c.h.bf16 %v3065
    %v3243 = vunpack.c.l.bf16 %v3066
    %v3244 = vunpack.c.h.bf16 %v3066
    %v3245 = vunpack.c.l.bf16 %v3067
    %v3246 = vunpack.c.h.bf16 %v3067
    %v3247 = vunpack.c.l.bf16 %v3068
    %v3248 = vunpack.c.h.bf16 %v3068
    %v3249 = vunpack.c.l.bf16 %v3069
    %v3250 = vunpack.c.h.bf16 %v3069
    %v3251 = vunpack.c.l.bf16 %v3070
    %v3252 = vunpack.c.h.bf16 %v3070
    %v3253 = vunpack.c.l.bf16 %v3071
    %v3254 = vunpack.c.h.bf16 %v3071
    %v3255 = vunpack.c.l.bf16 %v3072
    %v3256 = vunpack.c.h.bf16 %v3072
    %v3257 = vunpack.c.l.bf16 %v3073
    %v3258 = vunpack.c.h.bf16 %v3073
    %v3259 = vunpack.c.l.bf16 %v3074
    %v3260 = vunpack.c.h.bf16 %v3074
    %v3261 = vunpack.c.l.bf16 %v3075
    %v3262 = vunpack.c.h.bf16 %v3075
    %v3263 = vunpack.c.l.bf16 %v3076
    %v3264 = vunpack.c.h.bf16 %v3076
    %v3265 = vunpack.c.l.bf16 %v3077
    %v3266 = vunpack.c.h.bf16 %v3077
    %v3267 = vunpack.c.l.bf16 %v3078
    %v3268 = vunpack.c.h.bf16 %v3078
    %v3269 = vunpack.c.l.bf16 %v3079
    %v3270 = vunpack.c.h.bf16 %v3079
    %v3271 = vunpack.c.l.bf16 %v3080
    %v3272 = vunpack.c.h.bf16 %v3080
    %3273 = vmatprep.subr.mxu0 %v3082
    %3274 = vmatpush1.msra.mxu0 %v3081
    %3275 = vmatprep.subr.mxu0 %v3084
    %3276 = vmatpush1.msra.mxu0 %v3083
    %3277 = vmatprep.subr.mxu0 %v3086
    %3278 = vmatpush1.msra.mxu0 %v3085
    %3279 = vmatprep.subr.mxu0 %v3088
    %3280 = vmatpush1.msra.mxu0 %v3087
    %3281 = vmatprep.subr.mxu0 %v3090
    %3282 = vmatpush1.msra.mxu0 %v3089
    %3283 = vmatprep.subr.mxu0 %v3092
    %3284 = vmatpush1.msra.mxu0 %v3091
    %3285 = vmatprep.subr.mxu0 %v3094
    %3286 = vmatpush1.msra.mxu0 %v3093
    %3287 = vmatprep.subr.mxu0 %v3096
    %3288 = vmatpush1.msra.mxu0 %v3095
    %3289 = vmatprep.subr.mxu0 %v3098
    %3290 = vmatpush1.msra.mxu0 %v3097
    %3291 = vmatprep.subr.mxu0 %v3100
    %3292 = vmatpush1.msra.mxu0 %v3099
    %3293 = vmatprep.subr.mxu0 %v3102
    %3294 = vmatpush1.msra.mxu0 %v3101
    %3295 = vmatprep.subr.mxu0 %v3104
    %3296 = vmatpush1.msra.mxu0 %v3103
    %3297 = vmatprep.subr.mxu0 %v3106
    %3298 = vmatpush1.msra.mxu0 %v3105
    %3299 = vmatprep.subr.mxu0 %v3108
    %3300 = vmatpush1.msra.mxu0 %v3107
    %3301 = vmatprep.subr.mxu0 %v3110
    %3302 = vmatpush1.msra.mxu0 %v3109
    %3303 = vmatprep.subr.mxu0 %v3112
    %3304 = vmatpush1.msra.mxu0 %v3111
    %3305 = vmatprep.subr.mxu0 %v3114
    %3306 = vmatpush1.msra.mxu0 %v3113
    %3307 = vmatprep.subr.mxu0 %v3116
    %3308 = vmatpush1.msra.mxu0 %v3115
    %3309 = vmatprep.subr.mxu0 %v3118
    %3310 = vmatpush1.msra.mxu0 %v3117
    %3311 = vmatprep.subr.mxu0 %v3120
    %3312 = vmatpush1.msra.mxu0 %v3119
    %3313 = vmatprep.subr.mxu0 %v3122
    %3314 = vmatpush1.msra.mxu0 %v3121
    %3315 = vmatprep.subr.mxu0 %v3124
    %3316 = vmatpush1.msra.mxu0 %v3123
    %3317 = vmatprep.subr.mxu0 %v3126
    %3318 = vmatpush1.msra.mxu0 %v3125
    %3319 = vmatprep.subr.mxu0 %v3128
    %3320 = vmatpush1.msra.mxu0 %v3127
    %3321 = vmatprep.subr.mxu0 %v3130
    %3322 = vmatpush1.msra.mxu0 %v3129
    %3323 = vmatprep.subr.mxu0 %v3132
    %3324 = vmatpush1.msra.mxu0 %v3131
    %3325 = vmatprep.subr.mxu0 %v3134
    %3326 = vmatpush1.msra.mxu0 %v3133
    %3327 = vmatprep.subr.mxu0 %v3136
    %3328 = vmatpush1.msra.mxu0 %v3135
    %3329 = vmatprep.subr.mxu0 %v3138
    %3330 = vmatpush1.msra.mxu0 %v3137
    %3331 = vmatprep.subr.mxu0 %v3140
    %3332 = vmatpush1.msra.mxu0 %v3139
    %3333 = vmatprep.subr.mxu0 %v3142
    %3334 = vmatpush1.msra.mxu0 %v3141
    %3335 = vmatprep.subr.mxu0 %v3144
    %3336 = vmatpush1.msra.mxu0 %v3143
    %3337 = vmatprep.mubr.f32.mxu0 %v2980
    %3338 = vmatmul.mubr.f32.gmra.mrb[0].mxu0 %v2979
    %v3339 = vpop.f32.mrb[0].mxu0
    %v3340 = vadd.f32 0.0, %v3339
    %v3341 = vpop.f32.mrb[0].mxu0
    %v3342 = vadd.f32 0.0, %v3341
    %3343 = vdwg.mxu0
    %3344 = vmatprep.subr.mxu0 %v3146
    %3345 = vmatpush1.msra.mxu0 %v3145
    %3346 = vmatprep.subr.mxu0 %v3148
    %3347 = vmatpush1.msra.mxu0 %v3147
    %3348 = vmatprep.subr.mxu0 %v3150
    %3349 = vmatpush1.msra.mxu0 %v3149
    %3350 = vmatprep.subr.mxu0 %v3152
    %3351 = vmatpush1.msra.mxu0 %v3151
    %3352 = vmatprep.subr.mxu0 %v3154
    %3353 = vmatpush1.msra.mxu0 %v3153
    %3354 = vmatprep.subr.mxu0 %v3156
    %3355 = vmatpush1.msra.mxu0 %v3155
    %3356 = vmatprep.subr.mxu0 %v3158
    %3357 = vmatpush1.msra.mxu0 %v3157
    %3358 = vmatprep.subr.mxu0 %v3160
    %3359 = vmatpush1.msra.mxu0 %v3159
    %3360 = vmatprep.subr.mxu0 %v3162
    %3361 = vmatpush1.msra.mxu0 %v3161
    %3362 = vmatprep.subr.mxu0 %v3164
    %3363 = vmatpush1.msra.mxu0 %v3163
    %3364 = vmatprep.subr.mxu0 %v3166
    %3365 = vmatpush1.msra.mxu0 %v3165
    %3366 = vmatprep.subr.mxu0 %v3168
    %3367 = vmatpush1.msra.mxu0 %v3167
    %3368 = vmatprep.subr.mxu0 %v3170
    %3369 = vmatpush1.msra.mxu0 %v3169
    %3370 = vmatprep.subr.mxu0 %v3172
    %3371 = vmatpush1.msra.mxu0 %v3171
    %3372 = vmatprep.subr.mxu0 %v3174
    %3373 = vmatpush1.msra.mxu0 %v3173
    %3374 = vmatprep.subr.mxu0 %v3176
    %3375 = vmatpush1.msra.mxu0 %v3175
    %3376 = vmatprep.subr.mxu0 %v3178
    %3377 = vmatpush1.msra.mxu0 %v3177
    %3378 = vmatprep.subr.mxu0 %v3180
    %3379 = vmatpush1.msra.mxu0 %v3179
    %3380 = vmatprep.subr.mxu0 %v3182
    %3381 = vmatpush1.msra.mxu0 %v3181
    %3382 = vmatprep.subr.mxu0 %v3184
    %3383 = vmatpush1.msra.mxu0 %v3183
    %3384 = vmatprep.subr.mxu0 %v3186
    %3385 = vmatpush1.msra.mxu0 %v3185
    %3386 = vmatprep.subr.mxu0 %v3188
    %3387 = vmatpush1.msra.mxu0 %v3187
    %3388 = vmatprep.subr.mxu0 %v3190
    %3389 = vmatpush1.msra.mxu0 %v3189
    %3390 = vmatprep.subr.mxu0 %v3192
    %3391 = vmatpush1.msra.mxu0 %v3191
    %3392 = vmatprep.subr.mxu0 %v3194
    %3393 = vmatpush1.msra.mxu0 %v3193
    %3394 = vmatprep.subr.mxu0 %v3196
    %3395 = vmatpush1.msra.mxu0 %v3195
    %3396 = vmatprep.subr.mxu0 %v3198
    %3397 = vmatpush1.msra.mxu0 %v3197
    %3398 = vmatprep.subr.mxu0 %v3200
    %3399 = vmatpush1.msra.mxu0 %v3199
    %3400 = vmatprep.subr.mxu0 %v3202
    %3401 = vmatpush1.msra.mxu0 %v3201
    %3402 = vmatprep.subr.mxu0 %v3204
    %3403 = vmatpush1.msra.mxu0 %v3203
    %3404 = vmatprep.subr.mxu0 %v3206
    %3405 = vmatpush1.msra.mxu0 %v3205
    %3406 = vmatprep.subr.mxu0 %v3208
    %3407 = vmatpush1.msra.mxu0 %v3207
    %3408 = vmatprep.mubr.f32.mxu0 %v2982
    %3409 = vmatmul.mubr.f32.gmra.mrb[0].mxu0 %v2981
    %v3410 = vpop.f32.mrb[0].mxu0
    %v3411 = vadd.f32 %v3340, %v3410
    %v3412 = vpop.f32.mrb[0].mxu0
    %v3413 = vadd.f32 %v3342, %v3412
    %3414 = vdwg.mxu0
    %3415 = vmatprep.subr.mxu0 %v3210
    %3416 = vmatpush1.msra.mxu0 %v3209
    %3417 = vmatprep.subr.mxu0 %v3212
    %3418 = vmatpush1.msra.mxu0 %v3211
    %3419 = vmatprep.subr.mxu0 %v3214
    %3420 = vmatpush1.msra.mxu0 %v3213
    %3421 = vmatprep.subr.mxu0 %v3216
    %3422 = vmatpush1.msra.mxu0 %v3215
    %3423 = vmatprep.subr.mxu0 %v3218
    %3424 = vmatpush1.msra.mxu0 %v3217
    %3425 = vmatprep.subr.mxu0 %v3220
    %3426 = vmatpush1.msra.mxu0 %v3219
    %3427 = vmatprep.subr.mxu0 %v3222
    %3428 = vmatpush1.msra.mxu0 %v3221
    %3429 = vmatprep.subr.mxu0 %v3224
    %3430 = vmatpush1.msra.mxu0 %v3223
    %3431 = vmatprep.subr.mxu0 %v3226
    %3432 = vmatpush1.msra.mxu0 %v3225
    %3433 = vmatprep.subr.mxu0 %v3228
    %3434 = vmatpush1.msra.mxu0 %v3227
    %3435 = vmatprep.subr.mxu0 %v3230
    %3436 = vmatpush1.msra.mxu0 %v3229
    %3437 = vmatprep.subr.mxu0 %v3232
    %3438 = vmatpush1.msra.mxu0 %v3231
    %3439 = vmatprep.subr.mxu0 %v3234
    %3440 = vmatpush1.msra.mxu0 %v3233
    %3441 = vmatprep.subr.mxu0 %v3236
    %3442 = vmatpush1.msra.mxu0 %v3235
    %3443 = vmatprep.subr.mxu0 %v3238
    %3444 = vmatpush1.msra.mxu0 %v3237
    %3445 = vmatprep.subr.mxu0 %v3240
    %3446 = vmatpush1.msra.mxu0 %v3239
    %3447 = vmatprep.subr.mxu0 %v3242
    %3448 = vmatpush1.msra.mxu0 %v3241
    %3449 = vmatprep.subr.mxu0 %v3244
    %3450 = vmatpush1.msra.mxu0 %v3243
    %3451 = vmatprep.subr.mxu0 %v3246
    %3452 = vmatpush1.msra.mxu0 %v3245
    %3453 = vmatprep.subr.mxu0 %v3248
    %3454 = vmatpush1.msra.mxu0 %v3247
    %3455 = vmatprep.subr.mxu0 %v3250
    %3456 = vmatpush1.msra.mxu0 %v3249
    %3457 = vmatprep.subr.mxu0 %v3252
    %3458 = vmatpush1.msra.mxu0 %v3251
    %3459 = vmatprep.subr.mxu0 %v3254
    %3460 = vmatpush1.msra.mxu0 %v3253
    %3461 = vmatprep.subr.mxu0 %v3256
    %3462 = vmatpush1.msra.mxu0 %v3255
    %3463 = vmatprep.subr.mxu0 %v3258
    %3464 = vmatpush1.msra.mxu0 %v3257
    %3465 = vmatprep.subr.mxu0 %v3260
    %3466 = vmatpush1.msra.mxu0 %v3259
    %3467 = vmatprep.subr.mxu0 %v3262
    %3468 = vmatpush1.msra.mxu0 %v3261
    %3469 = vmatprep.subr.mxu0 %v3264
    %3470 = vmatpush1.msra.mxu0 %v3263
    %3471 = vmatprep.subr.mxu0 %v3266
    %3472 = vmatpush1.msra.mxu0 %v3265
    %3473 = vmatprep.subr.mxu0 %v3268
    %3474 = vmatpush1.msra.mxu0 %v3267
    %3475 = vmatprep.subr.mxu0 %v3270
    %3476 = vmatpush1.msra.mxu0 %v3269
    %3477 = vmatprep.subr.mxu0 %v3272
    %3478 = vmatpush1.msra.mxu0 %v3271
    %3479 = vmatprep.mubr.f32.mxu0 %v2984
    %3480 = vmatmul.mubr.f32.gmra.mrb[0].mxu0 %v2983
    %v3481 = vpop.f32.mrb[0].mxu0
    %v3482 = vadd.f32 %v3411, %v3481
    %v3483 = vpop.f32.mrb[0].mxu0
    %v3484 = vadd.f32 %v3413, %v3483
    %3485 = vdwg.mxu0
    %v3486 = vld [vmem:[#allocation6 + $0x10] sm:$0xf]
    %v3487 = vld [vmem:[#allocation6 + $0x24] sm:$0xf]
    %v3488 = vld [vmem:[#allocation6 + $0x38] sm:$0xf]
    %v3489 = vld [vmem:[#allocation6 + $0x4c] sm:$0xf]
    %v3490 = vld [vmem:[#allocation6 + $0x60] sm:$0xf]
    %v3491 = vld [vmem:[#allocation6 + $0x74] sm:$0xf]
    %v3492 = vld [vmem:[#allocation6 + $0x88] sm:$0xf]
    %v3493 = vld [vmem:[#allocation6 + $0x9c] sm:$0xf]
    %v3494 = vld [vmem:[#allocation6 + $0xb0] sm:$0xf]
    %v3495 = vld [vmem:[#allocation6 + $0xc4] sm:$0xf]
    %v3496 = vld [vmem:[#allocation6 + $0xd8] sm:$0xf]
    %v3497 = vld [vmem:[#allocation6 + $0xec] sm:$0xf]
    %v3498 = vld [vmem:[#allocation6 + $0x100] sm:$0xf]
    %v3499 = vld [vmem:[#allocation6 + $0x114] sm:$0xf]
    %v3500 = vld [vmem:[#allocation6 + $0x128] sm:$0xf]
    %v3501 = vld [vmem:[#allocation6 + $0x13c] sm:$0xf]
    %v3502 = vld [vmem:[#allocation6 + $0x150] sm:$0xf]
    %v3503 = vld [vmem:[#allocation6 + $0x164] sm:$0xf]
    %v3504 = vld [vmem:[#allocation6 + $0x178] sm:$0xf]
    %v3505 = vld [vmem:[#allocation6 + $0x18c] sm:$0xf]
    %v3506 = vld [vmem:[#allocation6 + $0x1a0] sm:$0xf]
    %v3507 = vld [vmem:[#allocation6 + $0x1b4] sm:$0xf]
    %v3508 = vld [vmem:[#allocation6 + $0x1c8] sm:$0xf]
    %v3509 = vld [vmem:[#allocation6 + $0x1dc] sm:$0xf]
    %v3510 = vld [vmem:[#allocation6 + $0x1f0] sm:$0xf]
    %v3511 = vld [vmem:[#allocation6 + $0x204] sm:$0xf]
    %v3512 = vld [vmem:[#allocation6 + $0x218] sm:$0xf]
    %v3513 = vld [vmem:[#allocation6 + $0x22c] sm:$0xf]
    %v3514 = vld [vmem:[#allocation6 + $0x240] sm:$0xf]
    %v3515 = vld [vmem:[#allocation6 + $0x254] sm:$0xf]
    %v3516 = vld [vmem:[#allocation6 + $0x268] sm:$0xf]
    %v3517 = vld [vmem:[#allocation6 + $0x27c] sm:$0xf]
    %v3518 = vunpack.c.l.bf16 %v3486
    %v3519 = vunpack.c.l.bf16 %v3487
    %v3520 = vunpack.c.l.bf16 %v3488
    %v3521 = vunpack.c.l.bf16 %v3489
    %v3522 = vunpack.c.l.bf16 %v3490
    %v3523 = vunpack.c.l.bf16 %v3491
    %v3524 = vunpack.c.l.bf16 %v3492
    %v3525 = vunpack.c.l.bf16 %v3493
    %v3526 = vunpack.c.l.bf16 %v3494
    %v3527 = vunpack.c.l.bf16 %v3495
    %v3528 = vunpack.c.l.bf16 %v3496
    %v3529 = vunpack.c.l.bf16 %v3497
    %v3530 = vunpack.c.l.bf16 %v3498
    %v3531 = vunpack.c.l.bf16 %v3499
    %v3532 = vunpack.c.l.bf16 %v3500
    %v3533 = vunpack.c.l.bf16 %v3501
    %v3534 = vunpack.c.l.bf16 %v3502
    %v3535 = vunpack.c.l.bf16 %v3503
    %v3536 = vunpack.c.l.bf16 %v3504
    %v3537 = vunpack.c.l.bf16 %v3505
    %v3538 = vunpack.c.l.bf16 %v3506
    %v3539 = vunpack.c.l.bf16 %v3507
    %v3540 = vunpack.c.l.bf16 %v3508
    %v3541 = vunpack.c.l.bf16 %v3509
    %v3542 = vunpack.c.l.bf16 %v3510
    %v3543 = vunpack.c.l.bf16 %v3511
    %v3544 = vunpack.c.l.bf16 %v3512
    %v3545 = vunpack.c.l.bf16 %v3513
    %v3546 = vunpack.c.l.bf16 %v3514
    %v3547 = vunpack.c.l.bf16 %v3515
    %v3548 = vunpack.c.l.bf16 %v3516
    %v3549 = vunpack.c.l.bf16 %v3517
    %v3550 = vld [vmem:[#allocation7 + $0x180] sm:$0xff]
    %v3551 = vld [vmem:[#allocation7 + $0x198] sm:$0xff]
    %v3552 = vld [vmem:[#allocation7 + $0x1b0] sm:$0xff]
    %v3553 = vld [vmem:[#allocation7 + $0x1c8] sm:$0xff]
    %v3554 = vld [vmem:[#allocation7 + $0x1e0] sm:$0xff]
    %v3555 = vld [vmem:[#allocation7 + $0x1f8] sm:$0xff]
    %v3556 = vld [vmem:[#allocation7 + $0x210] sm:$0xff]
    %v3557 = vld [vmem:[#allocation7 + $0x228] sm:$0xff]
    %v3558 = vld [vmem:[#allocation7 + $0x240] sm:$0xff]
    %v3559 = vld [vmem:[#allocation7 + $0x258] sm:$0xff]
    %v3560 = vld [vmem:[#allocation7 + $0x270] sm:$0xff]
    %v3561 = vld [vmem:[#allocation7 + $0x288] sm:$0xff]
    %v3562 = vld [vmem:[#allocation7 + $0x2a0] sm:$0xff]
    %v3563 = vld [vmem:[#allocation7 + $0x2b8] sm:$0xff]
    %v3564 = vld [vmem:[#allocation7 + $0x2d0] sm:$0xff]
    %v3565 = vld [vmem:[#allocation7 + $0x2e8] sm:$0xff]
    %v3566 = vunpack.c.l.bf16 %v3550
    %v3567 = vunpack.c.h.bf16 %v3550
    %v3568 = vunpack.c.l.bf16 %v3551
    %v3569 = vunpack.c.h.bf16 %v3551
    %v3570 = vunpack.c.l.bf16 %v3552
    %v3571 = vunpack.c.h.bf16 %v3552
    %v3572 = vunpack.c.l.bf16 %v3553
    %v3573 = vunpack.c.h.bf16 %v3553
    %v3574 = vunpack.c.l.bf16 %v3554
    %v3575 = vunpack.c.h.bf16 %v3554
    %v3576 = vunpack.c.l.bf16 %v3555
    %v3577 = vunpack.c.h.bf16 %v3555
    %v3578 = vunpack.c.l.bf16 %v3556
    %v3579 = vunpack.c.h.bf16 %v3556
    %v3580 = vunpack.c.l.bf16 %v3557
    %v3581 = vunpack.c.h.bf16 %v3557
    %v3582 = vunpack.c.l.bf16 %v3558
    %v3583 = vunpack.c.h.bf16 %v3558
    %v3584 = vunpack.c.l.bf16 %v3559
    %v3585 = vunpack.c.h.bf16 %v3559
    %v3586 = vunpack.c.l.bf16 %v3560
    %v3587 = vunpack.c.h.bf16 %v3560
    %v3588 = vunpack.c.l.bf16 %v3561
    %v3589 = vunpack.c.h.bf16 %v3561
    %v3590 = vunpack.c.l.bf16 %v3562
    %v3591 = vunpack.c.h.bf16 %v3562
    %v3592 = vunpack.c.l.bf16 %v3563
    %v3593 = vunpack.c.h.bf16 %v3563
    %v3594 = vunpack.c.l.bf16 %v3564
    %v3595 = vunpack.c.h.bf16 %v3564
    %v3596 = vunpack.c.l.bf16 %v3565
    %v3597 = vunpack.c.h.bf16 %v3565
    %v3598 = vmul.f32 %v3482, %v3482
    %v3599 = vmul.f32 %v3484, %v3484
    %v3602 = vrot.slane %v3598, 4
    %v3603 = vrot.slane %v3599, 4
    %v3606 = vsel %vm2457, %v3482, %v3602
    %v3607 = vsel %vm2457, %v3484, %v3603
    %3608 = vmatprep.subr.mxu0 0.0
    %3609 = vmatpush1.msra.mxu0 %v3518
    %3610 = vmatprep.subr.mxu0 0.0
    %3611 = vmatpush1.msra.mxu0 %v3519
    %3612 = vmatprep.subr.mxu0 0.0
    %3613 = vmatpush1.msra.mxu0 %v3520
    %3614 = vmatprep.subr.mxu0 0.0
    %3615 = vmatpush1.msra.mxu0 %v3521
    %3616 = vmatprep.subr.mxu0 0.0
    %3617 = vmatpush1.msra.mxu0 %v3522
    %3618 = vmatprep.subr.mxu0 0.0
    %3619 = vmatpush1.msra.mxu0 %v3523
    %3620 = vmatprep.subr.mxu0 0.0
    %3621 = vmatpush1.msra.mxu0 %v3524
    %3622 = vmatprep.subr.mxu0 0.0
    %3623 = vmatpush1.msra.mxu0 %v3525
    %3624 = vmatprep.subr.mxu0 0.0
    %3625 = vmatpush1.msra.mxu0 %v3526
    %3626 = vmatprep.subr.mxu0 0.0
    %3627 = vmatpush1.msra.mxu0 %v3527
    %3628 = vmatprep.subr.mxu0 0.0
    %3629 = vmatpush1.msra.mxu0 %v3528
    %3630 = vmatprep.subr.mxu0 0.0
    %3631 = vmatpush1.msra.mxu0 %v3529
    %3632 = vmatprep.subr.mxu0 0.0
    %3633 = vmatpush1.msra.mxu0 %v3530
    %3634 = vmatprep.subr.mxu0 0.0
    %3635 = vmatpush1.msra.mxu0 %v3531
    %3636 = vmatprep.subr.mxu0 0.0
    %3637 = vmatpush1.msra.mxu0 %v3532
    %3638 = vmatprep.subr.mxu0 0.0
    %3639 = vmatpush1.msra.mxu0 %v3533
    %3640 = vmatprep.subr.mxu0 0.0
    %3641 = vmatpush1.msra.mxu0 %v3534
    %3642 = vmatprep.subr.mxu0 0.0
    %3643 = vmatpush1.msra.mxu0 %v3535
    %3644 = vmatprep.subr.mxu0 0.0
    %3645 = vmatpush1.msra.mxu0 %v3536
    %3646 = vmatprep.subr.mxu0 0.0
    %3647 = vmatpush1.msra.mxu0 %v3537
    %3648 = vmatprep.subr.mxu0 0.0
    %3649 = vmatpush1.msra.mxu0 %v3538
    %3650 = vmatprep.subr.mxu0 0.0
    %3651 = vmatpush1.msra.mxu0 %v3539
    %3652 = vmatprep.subr.mxu0 0.0
    %3653 = vmatpush1.msra.mxu0 %v3540
    %3654 = vmatprep.subr.mxu0 0.0
    %3655 = vmatpush1.msra.mxu0 %v3541
    %3656 = vmatprep.subr.mxu0 0.0
    %3657 = vmatpush1.msra.mxu0 %v3542
    %3658 = vmatprep.subr.mxu0 0.0
    %3659 = vmatpush1.msra.mxu0 %v3543
    %3660 = vmatprep.subr.mxu0 0.0
    %3661 = vmatpush1.msra.mxu0 %v3544
    %3662 = vmatprep.subr.mxu0 0.0
    %3663 = vmatpush1.msra.mxu0 %v3545
    %3664 = vmatprep.subr.mxu0 0.0
    %3665 = vmatpush1.msra.mxu0 %v3546
    %3666 = vmatprep.subr.mxu0 0.0
    %3667 = vmatpush1.msra.mxu0 %v3547
    %3668 = vmatprep.subr.mxu0 0.0
    %3669 = vmatpush1.msra.mxu0 %v3548
    %3670 = vmatprep.subr.mxu0 0.0
    %3671 = vmatpush1.msra.mxu0 %v3549
    %3672 = vmatprep.mubr.f32.mxu0 %v3607
    %3673 = vmatmul.mubr.f32.gmra.mrb[0].mxu0 %v3606
    %v3674 = vpop.f32.mrb[0].mxu0
    %v3675 = vadd.f32 0.0, %v3674
    %v3676 = vpop.f32.mrb[0].mxu0
    %3677 = vdwg.mxu0
    %v3678 = vsel %vm2674, %v3675, 0.0
    %v3679 = vrot.slane %v3678, 4
    %v3680 = vadd.f32 %v3678, %v3679
    %v3681 = vrot.slane %v3680, 2
    %v3682 = vadd.f32 %v3680, %v3681
    %v3683 = vrot.slane %v3682, 1
    %v3684 = vadd.f32 %v3682, %v3683
    %v3685 = vmul.f32 %v3684, 0.03125
    %v3687 = vrot.slane %v3675, 2
    %v3689 = vsel %vm2674, %v3687, 0.0
    %v3690 = vrot.slane %v3689, 4
    %v3691 = vadd.f32 %v3689, %v3690
    %v3692 = vrot.slane %v3691, 2
    %v3693 = vadd.f32 %v3691, %v3692
    %v3694 = vrot.slane %v3693, 1
    %v3695 = vadd.f32 %v3693, %v3694
    %v3696 = vmul.f32 %v3695, 0.03125
    %v3697 = vrot.slane %v3675, 4
    %v3699 = vsel %vm2674, %v3697, 0.0
    %v3700 = vrot.slane %v3699, 4
    %v3701 = vadd.f32 %v3699, %v3700
    %v3702 = vrot.slane %v3701, 2
    %v3703 = vadd.f32 %v3701, %v3702
    %v3704 = vrot.slane %v3703, 1
    %v3705 = vadd.f32 %v3703, %v3704
    %v3706 = vmul.f32 %v3705, 0.03125
    %v3707 = vrot.slane %v3675, 6
    %v3709 = vsel %vm2674, %v3707, 0.0
    %v3710 = vrot.slane %v3709, 4
    %v3711 = vadd.f32 %v3709, %v3710
    %v3712 = vrot.slane %v3711, 2
    %v3713 = vadd.f32 %v3711, %v3712
    %v3714 = vrot.slane %v3713, 1
    %v3715 = vadd.f32 %v3713, %v3714
    %v3716 = vmul.f32 %v3715, 0.03125
    %v3717 = vmul.f32 %v3685, %v3685
    %v3718 = vsub.f32 %v3706, %v3717
    %v3719 = vadd.f32 %v3718, 1e-05
    %v3720 = vrsqrt.pop %v3719
    %v3721 = vmul.f32 %v3696, %v3696
    %v3722 = vsub.f32 %v3716, %v3721
    %v3723 = vadd.f32 %v3722, 1e-05
    %v3724 = vrsqrt.pop %v3723
    %v3725 = vsub.f32 0.0, %v3685
    %v3726 = vmul.f32 %v3725, %v3720
    %v3727 = vsub.f32 0.0, %v3696
    %v3728 = vmul.f32 %v3727, %v3724
    %v3729 = vsel %vm2674, %v3720, %v3724
    %v3730 = vsel %vm2727, %v3729, %v3724
    %v3731 = vsel %vm2457, %v3730, %v3726
    %v3732 = vsel %vm2730, %v3731, %v3726
    %v3733 = vsel %vm2732, %v3732, %v3728
    %v3734 = vsel %vm2734, %v3733, %v3728
    %3735 = vmatprep.subr.mxu0 %v3567
    %3736 = vmatpush1.msra.mxu0 %v3566
    %3737 = vmatprep.subr.mxu0 %v3569
    %3738 = vmatpush1.msra.mxu0 %v3568
    %3739 = vmatprep.subr.mxu0 %v3571
    %3740 = vmatpush1.msra.mxu0 %v3570
    %3741 = vmatprep.subr.mxu0 %v3573
    %3742 = vmatpush1.msra.mxu0 %v3572
    %3743 = vmatprep.subr.mxu0 %v3575
    %3744 = vmatpush1.msra.mxu0 %v3574
    %3745 = vmatprep.subr.mxu0 %v3577
    %3746 = vmatpush1.msra.mxu0 %v3576
    %3747 = vmatprep.subr.mxu0 %v3579
    %3748 = vmatpush1.msra.mxu0 %v3578
    %3749 = vmatprep.subr.mxu0 %v3581
    %3750 = vmatpush1.msra.mxu0 %v3580
    %3751 = vmatprep.subr.mxu0 %v3583
    %3752 = vmatpush1.msra.mxu0 %v3582
    %3753 = vmatprep.subr.mxu0 %v3585
    %3754 = vmatpush1.msra.mxu0 %v3584
    %3755 = vmatprep.subr.mxu0 %v3587
    %3756 = vmatpush1.msra.mxu0 %v3586
    %3757 = vmatprep.subr.mxu0 %v3589
    %3758 = vmatpush1.msra.mxu0 %v3588
    %3759 = vmatprep.subr.mxu0 %v3591
    %3760 = vmatpush1.msra.mxu0 %v3590
    %3761 = vmatprep.subr.mxu0 %v3593
    %3762 = vmatpush1.msra.mxu0 %v3592
    %3763 = vmatprep.subr.mxu0 %v3595
    %3764 = vmatpush1.msra.mxu0 %v3594
    %3765 = vmatprep.subr.mxu0 %v3597
    %3766 = vmatpush1.msra.mxu0 %v3596
    %3767 = vmatprep.subr.mxu0 0.0
    %3768 = vmatpush1.msra.mxu0 0.0
    %3769 = vmatprep.subr.mxu0 0.0
    %3770 = vmatpush1.msra.mxu0 0.0
    %3771 = vmatprep.subr.mxu0 0.0
    %3772 = vmatpush1.msra.mxu0 0.0
    %3773 = vmatprep.subr.mxu0 0.0
    %3774 = vmatpush1.msra.mxu0 0.0
    %3775 = vmatprep.subr.mxu0 0.0
    %3776 = vmatpush1.msra.mxu0 0.0
    %3777 = vmatprep.subr.mxu0 0.0
    %3778 = vmatpush1.msra.mxu0 0.0
    %3779 = vmatprep.subr.mxu0 0.0
    %3780 = vmatpush1.msra.mxu0 0.0
    %3781 = vmatprep.subr.mxu0 0.0
    %3782 = vmatpush1.msra.mxu0 0.0
    %3783 = vmatprep.subr.mxu0 0.0
    %3784 = vmatpush1.msra.mxu0 0.0
    %3785 = vmatprep.subr.mxu0 0.0
    %3786 = vmatpush1.msra.mxu0 0.0
    %3787 = vmatprep.subr.mxu0 0.0
    %3788 = vmatpush1.msra.mxu0 0.0
    %3789 = vmatprep.subr.mxu0 0.0
    %3790 = vmatpush1.msra.mxu0 0.0
    %3791 = vmatprep.subr.mxu0 0.0
    %3792 = vmatpush1.msra.mxu0 0.0
    %3793 = vmatprep.subr.mxu0 0.0
    %3794 = vmatpush1.msra.mxu0 0.0
    %3795 = vmatprep.subr.mxu0 0.0
    %3796 = vmatpush1.msra.mxu0 0.0
    %3797 = vmatprep.subr.mxu0 0.0
    %3798 = vmatpush1.msra.mxu0 0.0
    %3799 = vmatprep.mubr.f32.mxu0 0.0
    %3800 = vmatmul.mubr.f32.gmra.mrb[0].mxu0 %v3734
    %v3801 = vpop.f32.mrb[0].mxu0
    %v3802 = vadd.f32 0.0, %v3801
    %v3803 = vpop.f32.mrb[0].mxu0
    %v3804 = vadd.f32 0.0, %v3803
    %3805 = vdwg.mxu0
    %v3806 = vmul.f32 %v3482, %v3802
    %v3807 = vmul.f32 %v3484, %v3804
    %v3810 = vrot.slane %v3802, 4
    %v3811 = vrot.slane %v3804, 4
    %v3814 = vadd.f32 %v3806, %v3810
    %v3815 = vadd.f32 %v3807, %v3811
    %v3816 = vld [vmem:[#allocation6] sm:$0xff]
    %v3817 = vld [vmem:[#allocation6 + $0x8] sm:$0xff]
    %v3818 = vld [vmem:[#allocation6 + $0x14] sm:$0xff]
    %v3819 = vld [vmem:[#allocation6 + $0x1c] sm:$0xff]
    %v3820 = vld [vmem:[#allocation6 + $0x28] sm:$0xff]
    %v3821 = vld [vmem:[#allocation6 + $0x30] sm:$0xff]
    %v3822 = vld [vmem:[#allocation6 + $0x3c] sm:$0xff]
    %v3823 = vld [vmem:[#allocation6 + $0x44] sm:$0xff]
    %v3824 = vld [vmem:[#allocation6 + $0x50] sm:$0xff]
    %v3825 = vld [vmem:[#allocation6 + $0x58] sm:$0xff]
    %v3826 = vld [vmem:[#allocation6 + $0x64] sm:$0xff]
    %v3827 = vld [vmem:[#allocation6 + $0x6c] sm:$0xff]
    %v3828 = vld [vmem:[#allocation6 + $0x78] sm:$0xff]
    %v3829 = vld [vmem:[#allocation6 + $0x80] sm:$0xff]
    %v3830 = vld [vmem:[#allocation6 + $0x8c] sm:$0xff]
    %v3831 = vld [vmem:[#allocation6 + $0x94] sm:$0xff]
    %v3832 = vld [vmem:[#allocation6 + $0xa0] sm:$0xff]
    %v3833 = vld [vmem:[#allocation6 + $0xa8] sm:$0xff]
    %v3834 = vld [vmem:[#allocation6 + $0xb4] sm:$0xff]
    %v3835 = vld [vmem:[#allocation6 + $0xbc] sm:$0xff]
    %v3836 = vld [vmem:[#allocation6 + $0xc8] sm:$0xff]
    %v3837 = vld [vmem:[#allocation6 + $0xd0] sm:$0xff]
    %v3838 = vld [vmem:[#allocation6 + $0xdc] sm:$0xff]
    %v3839 = vld [vmem:[#allocation6 + $0xe4] sm:$0xff]
    %v3840 = vld [vmem:[#allocation6 + $0xf0] sm:$0xff]
    %v3841 = vld [vmem:[#allocation6 + $0xf8] sm:$0xff]
    %v3842 = vld [vmem:[#allocation6 + $0x104] sm:$0xff]
    %v3843 = vld [vmem:[#allocation6 + $0x10c] sm:$0xff]
    %v3844 = vld [vmem:[#allocation6 + $0x118] sm:$0xff]
    %v3845 = vld [vmem:[#allocation6 + $0x120] sm:$0xff]
    %v3846 = vld [vmem:[#allocation6 + $0x12c] sm:$0xff]
    %v3847 = vld [vmem:[#allocation6 + $0x134] sm:$0xff]
    %v3848 = vld [vmem:[#allocation6 + $0x140] sm:$0xff]
    %v3849 = vld [vmem:[#allocation6 + $0x148] sm:$0xff]
    %v3850 = vld [vmem:[#allocation6 + $0x154] sm:$0xff]
    %v3851 = vld [vmem:[#allocation6 + $0x15c] sm:$0xff]
    %v3852 = vld [vmem:[#allocation6 + $0x168] sm:$0xff]
    %v3853 = vld [vmem:[#allocation6 + $0x170] sm:$0xff]
    %v3854 = vld [vmem:[#allocation6 + $0x17c] sm:$0xff]
    %v3855 = vld [vmem:[#allocation6 + $0x184] sm:$0xff]
    %v3856 = vld [vmem:[#allocation6 + $0x190] sm:$0xff]
    %v3857 = vld [vmem:[#allocation6 + $0x198] sm:$0xff]
    %v3858 = vld [vmem:[#allocation6 + $0x1a4] sm:$0xff]
    %v3859 = vld [vmem:[#allocation6 + $0x1ac] sm:$0xff]
    %v3860 = vld [vmem:[#allocation6 + $0x1b8] sm:$0xff]
    %v3861 = vld [vmem:[#allocation6 + $0x1c0] sm:$0xff]
    %v3862 = vld [vmem:[#allocation6 + $0x1cc] sm:$0xff]
    %v3863 = vld [vmem:[#allocation6 + $0x1d4] sm:$0xff]
    %v3864 = vld [vmem:[#allocation6 + $0x1e0] sm:$0xff]
    %v3865 = vld [vmem:[#allocation6 + $0x1e8] sm:$0xff]
    %v3866 = vld [vmem:[#allocation6 + $0x1f4] sm:$0xff]
    %v3867 = vld [vmem:[#allocation6 + $0x1fc] sm:$0xff]
    %v3868 = vld [vmem:[#allocation6 + $0x208] sm:$0xff]
    %v3869 = vld [vmem:[#allocation6 + $0x210] sm:$0xff]
    %v3870 = vld [vmem:[#allocation6 + $0x21c] sm:$0xff]
    %v3871 = vld [vmem:[#allocation6 + $0x224] sm:$0xff]
    %v3872 = vld [vmem:[#allocation6 + $0x230] sm:$0xff]
    %v3873 = vld [vmem:[#allocation6 + $0x238] sm:$0xff]
    %v3874 = vld [vmem:[#allocation6 + $0x244] sm:$0xff]
    %v3875 = vld [vmem:[#allocation6 + $0x24c] sm:$0xff]
    %v3876 = vld [vmem:[#allocation6 + $0x258] sm:$0xff]
    %v3877 = vld [vmem:[#allocation6 + $0x260] sm:$0xff]
    %v3878 = vld [vmem:[#allocation6 + $0x26c] sm:$0xff]
    %v3879 = vld [vmem:[#allocation6 + $0x274] sm:$0xff]
    %v3880 = vunpack.c.l.bf16 %v3816
    %v3881 = vunpack.c.h.bf16 %v3816
    %v3882 = vunpack.c.l.bf16 %v3817
    %v3883 = vunpack.c.h.bf16 %v3817
    %v3884 = vunpack.c.l.bf16 %v3818
    %v3885 = vunpack.c.h.bf16 %v3818
    %v3886 = vunpack.c.l.bf16 %v3819
    %v3887 = vunpack.c.h.bf16 %v3819
    %v3888 = vunpack.c.l.bf16 %v3820
    %v3889 = vunpack.c.h.bf16 %v3820
    %v3890 = vunpack.c.l.bf16 %v3821
    %v3891 = vunpack.c.h.bf16 %v3821
    %v3892 = vunpack.c.l.bf16 %v3822
    %v3893 = vunpack.c.h.bf16 %v3822
    %v3894 = vunpack.c.l.bf16 %v3823
    %v3895 = vunpack.c.h.bf16 %v3823
    %v3896 = vunpack.c.l.bf16 %v3824
    %v3897 = vunpack.c.h.bf16 %v3824
    %v3898 = vunpack.c.l.bf16 %v3825
    %v3899 = vunpack.c.h.bf16 %v3825
    %v3900 = vunpack.c.l.bf16 %v3826
    %v3901 = vunpack.c.h.bf16 %v3826
    %v3902 = vunpack.c.l.bf16 %v3827
    %v3903 = vunpack.c.h.bf16 %v3827
    %v3904 = vunpack.c.l.bf16 %v3828
    %v3905 = vunpack.c.h.bf16 %v3828
    %v3906 = vunpack.c.l.bf16 %v3829
    %v3907 = vunpack.c.h.bf16 %v3829
    %v3908 = vunpack.c.l.bf16 %v3830
    %v3909 = vunpack.c.h.bf16 %v3830
    %v3910 = vunpack.c.l.bf16 %v3831
    %v3911 = vunpack.c.h.bf16 %v3831
    %v3912 = vunpack.c.l.bf16 %v3832
    %v3913 = vunpack.c.h.bf16 %v3832
    %v3914 = vunpack.c.l.bf16 %v3833
    %v3915 = vunpack.c.h.bf16 %v3833
    %v3916 = vunpack.c.l.bf16 %v3834
    %v3917 = vunpack.c.h.bf16 %v3834
    %v3918 = vunpack.c.l.bf16 %v3835
    %v3919 = vunpack.c.h.bf16 %v3835
    %v3920 = vunpack.c.l.bf16 %v3836
    %v3921 = vunpack.c.h.bf16 %v3836
    %v3922 = vunpack.c.l.bf16 %v3837
    %v3923 = vunpack.c.h.bf16 %v3837
    %v3924 = vunpack.c.l.bf16 %v3838
    %v3925 = vunpack.c.h.bf16 %v3838
    %v3926 = vunpack.c.l.bf16 %v3839
    %v3927 = vunpack.c.h.bf16 %v3839
    %v3928 = vunpack.c.l.bf16 %v3840
    %v3929 = vunpack.c.h.bf16 %v3840
    %v3930 = vunpack.c.l.bf16 %v3841
    %v3931 = vunpack.c.h.bf16 %v3841
    %v3932 = vunpack.c.l.bf16 %v3842
    %v3933 = vunpack.c.h.bf16 %v3842
    %v3934 = vunpack.c.l.bf16 %v3843
    %v3935 = vunpack.c.h.bf16 %v3843
    %v3936 = vunpack.c.l.bf16 %v3844
    %v3937 = vunpack.c.h.bf16 %v3844
    %v3938 = vunpack.c.l.bf16 %v3845
    %v3939 = vunpack.c.h.bf16 %v3845
    %v3940 = vunpack.c.l.bf16 %v3846
    %v3941 = vunpack.c.h.bf16 %v3846
    %v3942 = vunpack.c.l.bf16 %v3847
    %v3943 = vunpack.c.h.bf16 %v3847
    %v3944 = vunpack.c.l.bf16 %v3848
    %v3945 = vunpack.c.h.bf16 %v3848
    %v3946 = vunpack.c.l.bf16 %v3849
    %v3947 = vunpack.c.h.bf16 %v3849
    %v3948 = vunpack.c.l.bf16 %v3850
    %v3949 = vunpack.c.h.bf16 %v3850
    %v3950 = vunpack.c.l.bf16 %v3851
    %v3951 = vunpack.c.h.bf16 %v3851
    %v3952 = vunpack.c.l.bf16 %v3852
    %v3953 = vunpack.c.h.bf16 %v3852
    %v3954 = vunpack.c.l.bf16 %v3853
    %v3955 = vunpack.c.h.bf16 %v3853
    %v3956 = vunpack.c.l.bf16 %v3854
    %v3957 = vunpack.c.h.bf16 %v3854
    %v3958 = vunpack.c.l.bf16 %v3855
    %v3959 = vunpack.c.h.bf16 %v3855
    %v3960 = vunpack.c.l.bf16 %v3856
    %v3961 = vunpack.c.h.bf16 %v3856
    %v3962 = vunpack.c.l.bf16 %v3857
    %v3963 = vunpack.c.h.bf16 %v3857
    %v3964 = vunpack.c.l.bf16 %v3858
    %v3965 = vunpack.c.h.bf16 %v3858
    %v3966 = vunpack.c.l.bf16 %v3859
    %v3967 = vunpack.c.h.bf16 %v3859
    %v3968 = vunpack.c.l.bf16 %v3860
    %v3969 = vunpack.c.h.bf16 %v3860
    %v3970 = vunpack.c.l.bf16 %v3861
    %v3971 = vunpack.c.h.bf16 %v3861
    %v3972 = vunpack.c.l.bf16 %v3862
    %v3973 = vunpack.c.h.bf16 %v3862
    %v3974 = vunpack.c.l.bf16 %v3863
    %v3975 = vunpack.c.h.bf16 %v3863
    %v3976 = vunpack.c.l.bf16 %v3864
    %v3977 = vunpack.c.h.bf16 %v3864
    %v3978 = vunpack.c.l.bf16 %v3865
    %v3979 = vunpack.c.h.bf16 %v3865
    %v3980 = vunpack.c.l.bf16 %v3866
    %v3981 = vunpack.c.h.bf16 %v3866
    %v3982 = vunpack.c.l.bf16 %v3867
    %v3983 = vunpack.c.h.bf16 %v3867
    %v3984 = vunpack.c.l.bf16 %v3868
    %v3985 = vunpack.c.h.bf16 %v3868
    %v3986 = vunpack.c.l.bf16 %v3869
    %v3987 = vunpack.c.h.bf16 %v3869
    %v3988 = vunpack.c.l.bf16 %v3870
    %v3989 = vunpack.c.h.bf16 %v3870
    %v3990 = vunpack.c.l.bf16 %v3871
    %v3991 = vunpack.c.h.bf16 %v3871
    %v3992 = vunpack.c.l.bf16 %v3872
    %v3993 = vunpack.c.h.bf16 %v3872
    %v3994 = vunpack.c.l.bf16 %v3873
    %v3995 = vunpack.c.h.bf16 %v3873
    %v3996 = vunpack.c.l.bf16 %v3874
    %v3997 = vunpack.c.h.bf16 %v3874
    %v3998 = vunpack.c.l.bf16 %v3875
    %v3999 = vunpack.c.h.bf16 %v3875
    %v4000 = vunpack.c.l.bf16 %v3876
    %v4001 = vunpack.c.h.bf16 %v3876
    %v4002 = vunpack.c.l.bf16 %v3877
    %v4003 = vunpack.c.h.bf16 %v3877
    %v4004 = vunpack.c.l.bf16 %v3878
    %v4005 = vunpack.c.h.bf16 %v3878
    %v4006 = vunpack.c.l.bf16 %v3879
    %v4007 = vunpack.c.h.bf16 %v3879
    %4008 = vmatprep.subr.mxu0 %v3881
    %4009 = vmatpush1.msra.mxu0 %v3880
    %4010 = vmatprep.subr.mxu0 %v3885
    %4011 = vmatpush1.msra.mxu0 %v3884
    %4012 = vmatprep.subr.mxu0 %v3889
    %4013 = vmatpush1.msra.mxu0 %v3888
    %4014 = vmatprep.subr.mxu0 %v3893
    %4015 = vmatpush1.msra.mxu0 %v3892
    %4016 = vmatprep.subr.mxu0 %v3897
    %4017 = vmatpush1.msra.mxu0 %v3896
    %4018 = vmatprep.subr.mxu0 %v3901
    %4019 = vmatpush1.msra.mxu0 %v3900
    %4020 = vmatprep.subr.mxu0 %v3905
    %4021 = vmatpush1.msra.mxu0 %v3904
    %4022 = vmatprep.subr.mxu0 %v3909
    %4023 = vmatpush1.msra.mxu0 %v3908
    %4024 = vmatprep.subr.mxu0 %v3913
    %4025 = vmatpush1.msra.mxu0 %v3912
    %4026 = vmatprep.subr.mxu0 %v3917
    %4027 = vmatpush1.msra.mxu0 %v3916
    %4028 = vmatprep.subr.mxu0 %v3921
    %4029 = vmatpush1.msra.mxu0 %v3920
    %4030 = vmatprep.subr.mxu0 %v3925
    %4031 = vmatpush1.msra.mxu0 %v3924
    %4032 = vmatprep.subr.mxu0 %v3929
    %4033 = vmatpush1.msra.mxu0 %v3928
    %4034 = vmatprep.subr.mxu0 %v3933
    %4035 = vmatpush1.msra.mxu0 %v3932
    %4036 = vmatprep.subr.mxu0 %v3937
    %4037 = vmatpush1.msra.mxu0 %v3936
    %4038 = vmatprep.subr.mxu0 %v3941
    %4039 = vmatpush1.msra.mxu0 %v3940
    %4040 = vmatprep.subr.mxu0 %v3945
    %4041 = vmatpush1.msra.mxu0 %v3944
    %4042 = vmatprep.subr.mxu0 %v3949
    %4043 = vmatpush1.msra.mxu0 %v3948
    %4044 = vmatprep.subr.mxu0 %v3953
    %4045 = vmatpush1.msra.mxu0 %v3952
    %4046 = vmatprep.subr.mxu0 %v3957
    %4047 = vmatpush1.msra.mxu0 %v3956
    %4048 = vmatprep.subr.mxu0 %v3961
    %4049 = vmatpush1.msra.mxu0 %v3960
    %4050 = vmatprep.subr.mxu0 %v3965
    %4051 = vmatpush1.msra.mxu0 %v3964
    %4052 = vmatprep.subr.mxu0 %v3969
    %4053 = vmatpush1.msra.mxu0 %v3968
    %4054 = vmatprep.subr.mxu0 %v3973
    %4055 = vmatpush1.msra.mxu0 %v3972
    %4056 = vmatprep.subr.mxu0 %v3977
    %4057 = vmatpush1.msra.mxu0 %v3976
    %4058 = vmatprep.subr.mxu0 %v3981
    %4059 = vmatpush1.msra.mxu0 %v3980
    %4060 = vmatprep.subr.mxu0 %v3985
    %4061 = vmatpush1.msra.mxu0 %v3984
    %4062 = vmatprep.subr.mxu0 %v3989
    %4063 = vmatpush1.msra.mxu0 %v3988
    %4064 = vmatprep.subr.mxu0 %v3993
    %4065 = vmatpush1.msra.mxu0 %v3992
    %4066 = vmatprep.subr.mxu0 %v3997
    %4067 = vmatpush1.msra.mxu0 %v3996
    %4068 = vmatprep.subr.mxu0 %v4001
    %4069 = vmatpush1.msra.mxu0 %v4000
    %4070 = vmatprep.subr.mxu0 %v4005
    %4071 = vmatpush1.msra.mxu0 %v4004
    %4072 = vmatprep.mubr.f32.mxu0 %v3815
    %4073 = vmatmul.mubr.f32.gmra.mrb[0].mxu0 %v3814
    %v4074 = vpop.f32.mrb[0].mxu0
    %v4075 = vadd.f32 0.0, %v4074
    %v4076 = vpop.f32.mrb[0].mxu0
    %v4077 = vadd.f32 0.0, %v4076
    %4078 = vdwg.mxu0
    %4079 = vmatprep.subr.mxu0 %v3883
    %4080 = vmatpush1.msra.mxu0 %v3882
    %4081 = vmatprep.subr.mxu0 %v3887
    %4082 = vmatpush1.msra.mxu0 %v3886
    %4083 = vmatprep.subr.mxu0 %v3891
    %4084 = vmatpush1.msra.mxu0 %v3890
    %4085 = vmatprep.subr.mxu0 %v3895
    %4086 = vmatpush1.msra.mxu0 %v3894
    %4087 = vmatprep.subr.mxu0 %v3899
    %4088 = vmatpush1.msra.mxu0 %v3898
    %4089 = vmatprep.subr.mxu0 %v3903
    %4090 = vmatpush1.msra.mxu0 %v3902
    %4091 = vmatprep.subr.mxu0 %v3907
    %4092 = vmatpush1.msra.mxu0 %v3906
    %4093 = vmatprep.subr.mxu0 %v3911
    %4094 = vmatpush1.msra.mxu0 %v3910
    %4095 = vmatprep.subr.mxu0 %v3915
    %4096 = vmatpush1.msra.mxu0 %v3914
    %4097 = vmatprep.subr.mxu0 %v3919
    %4098 = vmatpush1.msra.mxu0 %v3918
    %4099 = vmatprep.subr.mxu0 %v3923
    %4100 = vmatpush1.msra.mxu0 %v3922
    %4101 = vmatprep.subr.mxu0 %v3927
    %4102 = vmatpush1.msra.mxu0 %v3926
    %4103 = vmatprep.subr.mxu0 %v3931
    %4104 = vmatpush1.msra.mxu0 %v3930
    %4105 = vmatprep.subr.mxu0 %v3935
    %4106 = vmatpush1.msra.mxu0 %v3934
    %4107 = vmatprep.subr.mxu0 %v3939
    %4108 = vmatpush1.msra.mxu0 %v3938
    %4109 = vmatprep.subr.mxu0 %v3943
    %4110 = vmatpush1.msra.mxu0 %v3942
    %4111 = vmatprep.subr.mxu0 %v3947
    %4112 = vmatpush1.msra.mxu0 %v3946
    %4113 = vmatprep.subr.mxu0 %v3951
    %4114 = vmatpush1.msra.mxu0 %v3950
    %4115 = vmatprep.subr.mxu0 %v3955
    %4116 = vmatpush1.msra.mxu0 %v3954
    %4117 = vmatprep.subr.mxu0 %v3959
    %4118 = vmatpush1.msra.mxu0 %v3958
    %4119 = vmatprep.subr.mxu0 %v3963
    %4120 = vmatpush1.msra.mxu0 %v3962
    %4121 = vmatprep.subr.mxu0 %v3967
    %4122 = vmatpush1.msra.mxu0 %v3966
    %4123 = vmatprep.subr.mxu0 %v3971
    %4124 = vmatpush1.msra.mxu0 %v3970
    %4125 = vmatprep.subr.mxu0 %v3975
    %4126 = vmatpush1.msra.mxu0 %v3974
    %4127 = vmatprep.subr.mxu0 %v3979
    %4128 = vmatpush1.msra.mxu0 %v3978
    %4129 = vmatprep.subr.mxu0 %v3983
    %4130 = vmatpush1.msra.mxu0 %v3982
    %4131 = vmatprep.subr.mxu0 %v3987
    %4132 = vmatpush1.msra.mxu0 %v3986
    %4133 = vmatprep.subr.mxu0 %v3991
    %4134 = vmatpush1.msra.mxu0 %v3990
    %4135 = vmatprep.subr.mxu0 %v3995
    %4136 = vmatpush1.msra.mxu0 %v3994
    %4137 = vmatprep.subr.mxu0 %v3999
    %4138 = vmatpush1.msra.mxu0 %v3998
    %4139 = vmatprep.subr.mxu0 %v4003
    %4140 = vmatpush1.msra.mxu0 %v4002
    %4141 = vmatprep.subr.mxu0 %v4007
    %4142 = vmatpush1.msra.mxu0 %v4006
    %4143 = vmatprep.mubr.f32.mxu0 %v3815
    %4144 = vmatmul.mubr.f32.gmra.mrb[0].mxu0 %v3814
    %v4145 = vpop.f32.mrb[0].mxu0
    %v4146 = vadd.f32 0.0, %v4145
    %v4147 = vpop.f32.mrb[0].mxu0
    %v4148 = vadd.f32 0.0, %v4147
    %4149 = vdwg.mxu0
    %v4150 = vmax.f32 %v4075, %v4077
    %v4151 = vmax.f32 %v4146, %v4148
    %v4152 = vmax.f32 %v4150, %v4151
    %v4153 = vmax.f32 %v4152, 0.0
    %v4154 = vld [vmem:[#allocation7 + $0x188] sm:$0xf]
    %v4155 = vld [vmem:[#allocation7 + $0x1a0] sm:$0xf]
    %v4156 = vld [vmem:[#allocation7 + $0x1b8] sm:$0xf]
    %v4157 = vld [vmem:[#allocation7 + $0x1d0] sm:$0xf]
    %v4158 = vld [vmem:[#allocation7 + $0x1e8] sm:$0xf]
    %v4159 = vld [vmem:[#allocation7 + $0x200] sm:$0xf]
    %v4160 = vld [vmem:[#allocation7 + $0x218] sm:$0xf]
    %v4161 = vld [vmem:[#allocation7 + $0x230] sm:$0xf]
    %v4162 = vld [vmem:[#allocation7 + $0x248] sm:$0xf]
    %v4163 = vld [vmem:[#allocation7 + $0x260] sm:$0xf]
    %v4164 = vld [vmem:[#allocation7 + $0x278] sm:$0xf]
    %v4165 = vld [vmem:[#allocation7 + $0x290] sm:$0xf]
    %v4166 = vld [vmem:[#allocation7 + $0x2a8] sm:$0xf]
    %v4167 = vld [vmem:[#allocation7 + $0x2c0] sm:$0xf]
    %v4168 = vld [vmem:[#allocation7 + $0x2d8] sm:$0xf]
    %v4169 = vld [vmem:[#allocation7 + $0x2f0] sm:$0xf]
    %v4170 = vunpack.c.l.bf16 %v4154
    %v4171 = vunpack.c.l.bf16 %v4155
    %v4172 = vunpack.c.l.bf16 %v4156
    %v4173 = vunpack.c.l.bf16 %v4157
    %v4174 = vunpack.c.l.bf16 %v4158
    %v4175 = vunpack.c.l.bf16 %v4159
    %v4176 = vunpack.c.l.bf16 %v4160
    %v4177 = vunpack.c.l.bf16 %v4161
    %v4178 = vunpack.c.l.bf16 %v4162
    %v4179 = vunpack.c.l.bf16 %v4163
    %v4180 = vunpack.c.l.bf16 %v4164
    %v4181 = vunpack.c.l.bf16 %v4165
    %v4182 = vunpack.c.l.bf16 %v4166
    %v4183 = vunpack.c.l.bf16 %v4167
    %v4184 = vunpack.c.l.bf16 %v4168
    %v4185 = vunpack.c.l.bf16 %v4169
    %4186 = vmatprep.subr.mxu0 0.0
    %4187 = vmatpush1.msra.mxu0 %v4170
    %4188 = vmatprep.subr.mxu0 0.0
    %4189 = vmatpush1.msra.mxu0 %v4171
    %4190 = vmatprep.subr.mxu0 0.0
    %4191 = vmatpush1.msra.mxu0 %v4172
    %4192 = vmatprep.subr.mxu0 0.0
    %4193 = vmatpush1.msra.mxu0 %v4173
    %4194 = vmatprep.subr.mxu0 0.0
    %4195 = vmatpush1.msra.mxu0 %v4174
    %4196 = vmatprep.subr.mxu0 0.0
    %4197 = vmatpush1.msra.mxu0 %v4175
    %4198 = vmatprep.subr.mxu0 0.0
    %4199 = vmatpush1.msra.mxu0 %v4176
    %4200 = vmatprep.subr.mxu0 0.0
    %4201 = vmatpush1.msra.mxu0 %v4177
    %4202 = vmatprep.subr.mxu0 0.0
    %4203 = vmatpush1.msra.mxu0 %v4178
    %4204 = vmatprep.subr.mxu0 0.0
    %4205 = vmatpush1.msra.mxu0 %v4179
    %4206 = vmatprep.subr.mxu0 0.0
    %4207 = vmatpush1.msra.mxu0 %v4180
    %4208 = vmatprep.subr.mxu0 0.0
    %4209 = vmatpush1.msra.mxu0 %v4181
    %4210 = vmatprep.subr.mxu0 0.0
    %4211 = vmatpush1.msra.mxu0 %v4182
    %4212 = vmatprep.subr.mxu0 0.0
    %4213 = vmatpush1.msra.mxu0 %v4183
    %4214 = vmatprep.subr.mxu0 0.0
    %4215 = vmatpush1.msra.mxu0 %v4184
    %4216 = vmatprep.subr.mxu0 0.0
    %4217 = vmatpush1.msra.mxu0 %v4185
    %4218 = vmatprep.subr.mxu0 0.0
    %4219 = vmatpush1.msra.mxu0 0.0
    %4220 = vmatprep.subr.mxu0 0.0
    %4221 = vmatpush1.msra.mxu0 0.0
    %4222 = vmatprep.subr.mxu0 0.0
    %4223 = vmatpush1.msra.mxu0 0.0
    %4224 = vmatprep.subr.mxu0 0.0
    %4225 = vmatpush1.msra.mxu0 0.0
    %4226 = vmatprep.subr.mxu0 0.0
    %4227 = vmatpush1.msra.mxu0 0.0
    %4228 = vmatprep.subr.mxu0 0.0
    %4229 = vmatpush1.msra.mxu0 0.0
    %4230 = vmatprep.subr.mxu0 0.0
    %4231 = vmatpush1.msra.mxu0 0.0
    %4232 = vmatprep.subr.mxu0 0.0
    %4233 = vmatpush1.msra.mxu0 0.0
    %4234 = vmatprep.subr.mxu0 0.0
    %4235 = vmatpush1.msra.mxu0 0.0
    %4236 = vmatprep.subr.mxu0 0.0
    %4237 = vmatpush1.msra.mxu0 0.0
    %4238 = vmatprep.subr.mxu0 0.0
    %4239 = vmatpush1.msra.mxu0 0.0
    %4240 = vmatprep.subr.mxu0 0.0
    %4241 = vmatpush1.msra.mxu0 0.0
    %4242 = vmatprep.subr.mxu0 0.0
    %4243 = vmatpush1.msra.mxu0 0.0
    %4244 = vmatprep.subr.mxu0 0.0
    %4245 = vmatpush1.msra.mxu0 0.0
    %4246 = vmatprep.subr.mxu0 0.0
    %4247 = vmatpush1.msra.mxu0 0.0
    %4248 = vmatprep.subr.mxu0 0.0
    %4249 = vmatpush1.msra.mxu0 0.0
    %4250 = vmatprep.mubr.f32.mxu0 0.0
    %4251 = vmatmul.mubr.f32.gmra.mrb[0].mxu0 %v4153
    %v4252 = vpop.f32.mrb[0].mxu0
    %v4253 = vadd.f32 0.0, %v4252
    %v4254 = vpop.f32.mrb[0].mxu0
    %4255 = vdwg.mxu0
    %v4256 = vlaneseq
    %v4257 = vand.u32 %v4256, 127
    %vm4258 = vcmp.lt.s32.totalorder %v4257, 7
    %v4259 = vsel %vm4258, %v4253, -1e+30
    %v4260 = vsel %vm2457, %v4259, -inf
    %4261 = vmax.xlane.f32.xlu0 %v4260
    %v4262 = vpop.xlane.xlu0 %4261
    %v4263 = vsub.f32 %v4259, %v4262
    %v4264 = vmul.f32 %v4263, 1.442695
    %v4265 = vpow.pop %v4264
    %v4266 = vsel %vm2457, %v4265, 0.0
    %4267 = vadd.xlane.f32.xlu0 %v4266
    %v4268 = vpop.xlane.xlu0 %4267
    %v4269 = vrcp.pop %v4268
    %v4270 = vmul.f32 %v4265, %v4269
    %4271 = vst [vmem:[%s5] sm:$0xf] %v4270
    %v4272 = vld [vmem:[#allocation7 + $0x18c] sm:$0xf]
    %v4273 = vld [vmem:[#allocation7 + $0x1a4] sm:$0xf]
    %v4274 = vld [vmem:[#allocation7 + $0x1bc] sm:$0xf]
    %v4275 = vld [vmem:[#allocation7 + $0x1d4] sm:$0xf]
    %v4276 = vld [vmem:[#allocation7 + $0x1ec] sm:$0xf]
    %v4277 = vld [vmem:[#allocation7 + $0x204] sm:$0xf]
    %v4278 = vld [vmem:[#allocation7 + $0x21c] sm:$0xf]
    %v4279 = vld [vmem:[#allocation7 + $0x234] sm:$0xf]
    %v4280 = vld [vmem:[#allocation7 + $0x24c] sm:$0xf]
    %v4281 = vld [vmem:[#allocation7 + $0x264] sm:$0xf]
    %v4282 = vld [vmem:[#allocation7 + $0x27c] sm:$0xf]
    %v4283 = vld [vmem:[#allocation7 + $0x294] sm:$0xf]
    %v4284 = vld [vmem:[#allocation7 + $0x2ac] sm:$0xf]
    %v4285 = vld [vmem:[#allocation7 + $0x2c4] sm:$0xf]
    %v4286 = vld [vmem:[#allocation7 + $0x2dc] sm:$0xf]
    %v4287 = vld [vmem:[#allocation7 + $0x2f4] sm:$0xf]
    %v4288 = vunpack.c.l.bf16 %v4272
    %v4289 = vunpack.c.l.bf16 %v4273
    %v4290 = vunpack.c.l.bf16 %v4274
    %v4291 = vunpack.c.l.bf16 %v4275
    %v4292 = vunpack.c.l.bf16 %v4276
    %v4293 = vunpack.c.l.bf16 %v4277
    %v4294 = vunpack.c.l.bf16 %v4278
    %v4295 = vunpack.c.l.bf16 %v4279
    %v4296 = vunpack.c.l.bf16 %v4280
    %v4297 = vunpack.c.l.bf16 %v4281
    %v4298 = vunpack.c.l.bf16 %v4282
    %v4299 = vunpack.c.l.bf16 %v4283
    %v4300 = vunpack.c.l.bf16 %v4284
    %v4301 = vunpack.c.l.bf16 %v4285
    %v4302 = vunpack.c.l.bf16 %v4286
    %v4303 = vunpack.c.l.bf16 %v4287
    %4304 = vmatprep.subr.mxu0 0.0
    %4305 = vmatpush1.msra.mxu0 %v4288
    %4306 = vmatprep.subr.mxu0 0.0
    %4307 = vmatpush1.msra.mxu0 %v4289
    %4308 = vmatprep.subr.mxu0 0.0
    %4309 = vmatpush1.msra.mxu0 %v4290
    %4310 = vmatprep.subr.mxu0 0.0
    %4311 = vmatpush1.msra.mxu0 %v4291
    %4312 = vmatprep.subr.mxu0 0.0
    %4313 = vmatpush1.msra.mxu0 %v4292
    %4314 = vmatprep.subr.mxu0 0.0
    %4315 = vmatpush1.msra.mxu0 %v4293
    %4316 = vmatprep.subr.mxu0 0.0
    %4317 = vmatpush1.msra.mxu0 %v4294
    %4318 = vmatprep.subr.mxu0 0.0
    %4319 = vmatpush1.msra.mxu0 %v4295
    %4320 = vmatprep.subr.mxu0 0.0
    %4321 = vmatpush1.msra.mxu0 %v4296
    %4322 = vmatprep.subr.mxu0 0.0
    %4323 = vmatpush1.msra.mxu0 %v4297
    %4324 = vmatprep.subr.mxu0 0.0
    %4325 = vmatpush1.msra.mxu0 %v4298
    %4326 = vmatprep.subr.mxu0 0.0
    %4327 = vmatpush1.msra.mxu0 %v4299
    %4328 = vmatprep.subr.mxu0 0.0
    %4329 = vmatpush1.msra.mxu0 %v4300
    %4330 = vmatprep.subr.mxu0 0.0
    %4331 = vmatpush1.msra.mxu0 %v4301
    %4332 = vmatprep.subr.mxu0 0.0
    %4333 = vmatpush1.msra.mxu0 %v4302
    %4334 = vmatprep.subr.mxu0 0.0
    %4335 = vmatpush1.msra.mxu0 %v4303
    %4336 = vmatprep.subr.mxu0 0.0
    %4337 = vmatpush1.msra.mxu0 0.0
    %4338 = vmatprep.subr.mxu0 0.0
    %4339 = vmatpush1.msra.mxu0 0.0
    %4340 = vmatprep.subr.mxu0 0.0
    %4341 = vmatpush1.msra.mxu0 0.0
    %4342 = vmatprep.subr.mxu0 0.0
    %4343 = vmatpush1.msra.mxu0 0.0
    %4344 = vmatprep.subr.mxu0 0.0
    %4345 = vmatpush1.msra.mxu0 0.0
    %4346 = vmatprep.subr.mxu0 0.0
    %4347 = vmatpush1.msra.mxu0 0.0
    %4348 = vmatprep.subr.mxu0 0.0
    %4349 = vmatpush1.msra.mxu0 0.0
    %4350 = vmatprep.subr.mxu0 0.0
    %4351 = vmatpush1.msra.mxu0 0.0
    %4352 = vmatprep.subr.mxu0 0.0
    %4353 = vmatpush1.msra.mxu0 0.0
    %4354 = vmatprep.subr.mxu0 0.0
    %4355 = vmatpush1.msra.mxu0 0.0
    %4356 = vmatprep.subr.mxu0 0.0
    %4357 = vmatpush1.msra.mxu0 0.0
    %4358 = vmatprep.subr.mxu0 0.0
    %4359 = vmatpush1.msra.mxu0 0.0
    %4360 = vmatprep.subr.mxu0 0.0
    %4361 = vmatpush1.msra.mxu0 0.0
    %4362 = vmatprep.subr.mxu0 0.0
    %4363 = vmatpush1.msra.mxu0 0.0
    %4364 = vmatprep.subr.mxu0 0.0
    %4365 = vmatpush1.msra.mxu0 0.0
    %4366 = vmatprep.subr.mxu0 0.0
    %4367 = vmatpush1.msra.mxu0 0.0
    %4368 = vmatprep.mubr.f32.mxu0 0.0
    %4369 = vmatmul.mubr.f32.gmra.mrb[0].mxu0 %v4270
    %v4370 = vpop.f32.mrb[0].mxu0
    %v4371 = vadd.f32 0.0, %v4370
    %v4372 = vpop.f32.mrb[0].mxu0
    %4373 = vdwg.mxu0
    %v4375 = vrot.slane %v4270, 2
    %v4377 = vmul.f32 %v4371, %v4375
    %v4378 = vsel %vm2674, %v4377, 0.0
    %4379 = vadd.xlane.f32.xlu0 %v4378
    %v4380 = vpop.xlane.xlu0 %4379
    %v4381 = vadd.f32 %v4380, 0.0
    %4382 = vst [vmem:[%s6] sm:$0x3] %v4381
    // Predicated region
    $region38: #{forward.1} parent=1 // pred_check
      _
    $region39: #{forward.1} parent=1 // pred_check_branch
      %4384 = sbr.rel (0) target = $region41
    $region40: #{forward.1} parent=1 // pred_region
      _
    $region41: #{forward.1} parent=1 // pred_fallthru
      _
    // Predicated region
    $region42: #{forward.1} parent=1 // pred_check
      _
    $region43: #{forward.1} parent=1 // pred_check_branch
      %4386 = sbr.rel (0) target = $region45
    $region44: #{forward.1} parent=1 // pred_region
      _
    $region45: #{forward.1} parent=1 // pred_fallthru
      _
    // Predicated region
    $region46: #{forward.1} parent=1 // pred_check
      _
    $region47: #{forward.1} parent=1 // pred_check_branch
      %4388 = sbr.rel (0) target = $region49
    $region48: #{forward.1} parent=1 // pred_region
      _
    $region49: #{forward.1} parent=1 // pred_fallthru
      _
    // Predicated region
    $region50: #{forward.1} parent=1 // pred_check
      _
    $region51: #{forward.1} parent=1 // pred_check_branch
      %4390 = sbr.rel (0) target = $region53
    $region52: #{forward.1} parent=1 // pred_region
      _
    $region53: #{forward.1} parent=1 // pred_fallthru
      _
    %4391 = vsyncpa [#allocation3], 1
    %4392 = vsyncpa [#allocation5], 1
    %4393 = vsyncpa [#allocation8], 1

</llo_original>
